<compile_context>
chip_gen: v7x
topology: tpu7x:2x2x1
jax: 0.10.0
libtpu: 0.0.40
codegen_flags: <defaults>
</compile_context>

<pallas_src>
import math

import jax
import jax.numpy as jnp
from jax.experimental import pallas as pl
from jax.experimental.pallas import tpu as pltpu

_GELU_C = math.sqrt(2.0 / math.pi)


def _gelu_new(x):
    # GPT-2 / transformer-lens "gelu_new":
    #   0.5*x*(1 + tanh(sqrt(2/pi)*(x + 0.044715*x^3)))
    # x*x*x (2 VPU muls) instead of jnp.power(x, 3.0) (EUP exp/log path).
    x3 = x * x * x
    return 0.5 * x * (1.0 + jnp.tanh(_GELU_C * (x + 0.044715 * x3)))


def _mlp_kernel(x_ref, w_in_ref, b_in_ref, w_out_ref, b_out_ref, o_ref, acc_ref):
    # x_ref:     (tm, d_model)      row tile of flattened residual stream
    # w_in_ref:  (d_model, t_mlp)   chunk of W_in along d_mlp
    # b_in_ref:  (1, t_mlp)         matching chunk of b_in
    # w_out_ref: (t_mlp, d_model)   chunk of W_out along d_mlp
    # b_out_ref: (1, d_model)
    # o_ref:     (tm, d_model)      output tile (written on last k step)
    # acc_ref:   (tm, d_model) f32  VMEM accumulator across the d_mlp chunks
    k = pl.program_id(1)

    @pl.when(k == 0)
    def _():
        acc_ref[...] = jnp.zeros_like(acc_ref)

    # First matmul for this d_mlp chunk, f32 accumulation on the MXU.
    h = jnp.dot(x_ref[...], w_in_ref[...], preferred_element_type=jnp.float32)
    h = h + b_in_ref[...].astype(jnp.float32)
    a = _gelu_new(h)  # GELU / bias math kept in f32 (v5e has no bf16 VPU/EUP)

    # Second matmul chunk, accumulated into the f32 scratch.
    acc_ref[...] += jnp.dot(
        a.astype(w_out_ref.dtype),
        w_out_ref[...],
        preferred_element_type=jnp.float32,
    )

    @pl.when(k == pl.num_programs(1) - 1)
    def _():
        o_ref[...] = (
            acc_ref[...] + b_out_ref[...].astype(jnp.float32)
        ).astype(o_ref.dtype)


def _round_up(a, b):
    return (a + b - 1) // b * b


def mlp_forward(x, w_in, b_in, w_out, b_out, *, tm=256, t_mlp=1024,
                vmem_limit_bytes=64 * 1024 * 1024):
    """x: [batch, posn, d_model] -> [batch, posn, d_model]."""
    batch, posn, d_model = x.shape
    d_mlp = w_in.shape[1]
    M = batch * posn

    # Row tile: large enough to feed the MXU, multiple of 16 (covers f32 and
    # bf16 sublane packing); never over-pad tiny inputs.
    row_align = 16
    tm = max(row_align, min(tm, _round_up(M, row_align)))
    tm = _round_up(tm, row_align)
    M_pad = _round_up(M, tm)

    # d_mlp reduction tile: a multiple of 128 that divides d_mlp (else full).
    if d_mlp % 128 == 0:
        t_mlp = max(128, (min(t_mlp, d_mlp) // 128) * 128)
        while d_mlp % t_mlp != 0:
            t_mlp -= 128
    else:
        t_mlp = d_mlp
    n_k = d_mlp // t_mlp

    x2d = x.reshape(M, d_model)
    if M_pad != M:
        x2d = jnp.pad(x2d, ((0, M_pad - M), (0, 0)))
    b_in2d = b_in.reshape(1, d_mlp)
    b_out2d = b_out.reshape(1, d_model)

    cost = pl.CostEstimate(
        flops=4 * M * d_model * d_mlp,        # two matmuls
        transcendentals=M * d_mlp,            # tanh in the GELU
        bytes_accessed=(
            2 * M * d_model * x.dtype.itemsize
            + d_model * d_mlp * w_in.dtype.itemsize
            + d_mlp * d_model * w_out.dtype.itemsize
            + d_mlp * b_in.dtype.itemsize
            + d_model * b_out.dtype.itemsize
        ),
    )

    out2d = pl.pallas_call(
        _mlp_kernel,
        out_shape=jax.ShapeDtypeStruct((M_pad, d_model), x.dtype),
        grid_spec=pltpu.PrefetchScalarGridSpec(
            num_scalar_prefetch=0,
            grid=(M_pad // tm, n_k),
            in_specs=[
                pl.BlockSpec((tm, d_model), lambda i, k: (i, 0)),      # x row tile
                pl.BlockSpec((d_model, t_mlp), lambda i, k: (0, k)),   # W_in chunk
                pl.BlockSpec((1, t_mlp), lambda i, k: (0, k)),         # b_in chunk
                pl.BlockSpec((t_mlp, d_model), lambda i, k: (k, 0)),   # W_out chunk
                pl.BlockSpec((1, d_model), lambda i, k: (0, 0)),       # b_out
            ],
            out_specs=pl.BlockSpec((tm, d_model), lambda i, k: (i, 0)),
            scratch_shapes=[pltpu.VMEM((tm, d_model), jnp.float32)],
        ),
        compiler_params=pltpu.CompilerParams(
            dimension_semantics=("parallel", "arbitrary"),
            vmem_limit_bytes=vmem_limit_bytes,
        ),
        cost_estimate=cost,
    )(x2d, w_in, b_in2d, w_out, b_out2d)

    return out2d[:M].reshape(batch, posn, d_model)


def mlp_reference(x, w_in, b_in, w_out, b_out):
    acts_pre = jnp.einsum("bpd,dm->bpm", x, w_in) + b_in
    acts = _gelu_new(acts_pre)
    return jnp.einsum("bpm,md->bpd", acts, w_out) + b_out


if __name__ == "__main__":
    # GPT-2-small MLP dims from the Config, small batch/seq.
    batch, posn = 2, 9          # M=18 also exercises the row-padding path
    d_model, d_mlp = 768, 3072
    init_range = 0.02

    key = jax.random.PRNGKey(0)
    k_x, k_win, k_wout = jax.random.split(key, 3)

    x = jax.random.normal(k_x, (batch, posn, d_model), dtype=jnp.float32)
    W_in = init_range * jax.random.normal(k_win, (d_model, d_mlp), dtype=jnp.float32)
    W_out = init_range * jax.random.normal(k_wout, (d_mlp, d_model), dtype=jnp.float32)
    b_in = jnp.zeros((d_mlp,), dtype=jnp.float32)
    b_out = jnp.zeros((d_model,), dtype=jnp.float32)

    ref = mlp_reference(x, W_in, b_in, W_out, b_out)

    # f32 path (matches the PyTorch module semantics; tolerance allows for the
    # chunked f32 accumulation order vs the single-dot reference).
    out = jax.block_until_ready(mlp_forward(x, W_in, b_in, W_out, b_out))
    assert out.shape == (batch, posn, d_model)
    assert jnp.allclose(out, ref, atol=1e-4, rtol=1e-4), "f32 mismatch vs reference"

    # bf16 weights/activations (MXU-friendly inference path), f32 accumulation.
    to_bf16 = lambda a: a.astype(jnp.bfloat16)
    out_bf16 = jax.block_until_ready(
        mlp_forward(to_bf16(x), to_bf16(W_in), to_bf16(b_in),
                    to_bf16(W_out), to_bf16(b_out))
    )
    assert jnp.allclose(out_bf16.astype(jnp.float32), ref, atol=5e-2, rtol=5e-2), \
        "bf16 mismatch vs reference"

    print("KERNEL_OK")
</pallas_src>

<mosaic_0001>
module attributes {stable_mosaic.version = 11 : i64} {
  func.func @_mlp_kernel(%arg0: i32, %arg1: i32, %arg2: memref<32x768xf32, #tpu.memory_space<vmem>>, %arg3: memref<768x1024xf32, #tpu.memory_space<vmem>>, %arg4: memref<1x1024xf32, #tpu.memory_space<vmem>>, %arg5: memref<1024x768xf32, #tpu.memory_space<vmem>>, %arg6: memref<1x768xf32, #tpu.memory_space<vmem>>, %arg7: memref<32x768xf32, #tpu.memory_space<vmem>>, %arg8: memref<32x768xf32, #tpu.memory_space<vmem>>) attributes {dimension_semantics = [#tpu.dimension_semantics<parallel>, #tpu.dimension_semantics<arbitrary>], iteration_bounds = array<i64: 1, 3>, scalar_prefetch = 0 : i64, scratch_operands = 1 : i64, tpu.core_type = #tpu.core_type<tc>, window_params = [{transform_indices = @transform_0, window_bounds = array<i64: 32, 768>}, {transform_indices = @transform_1, window_bounds = array<i64: 768, 1024>}, {transform_indices = @transform_2, window_bounds = array<i64: 1, 1024>}, {transform_indices = @transform_3, window_bounds = array<i64: 1024, 768>}, {pipeline_mode = #tpu.pipeline_mode<synchronous>, transform_indices = @transform_4, window_bounds = array<i64: 1, 768>}, {transform_indices = @transform_5, window_bounds = array<i64: 32, 768>}]} {
    %c0_i32 = arith.constant 0 : i32
    %0 = arith.cmpi eq, %arg1, %c0_i32 : i32
    %1 = arith.extui %0 : i1 to i32
    %c0_i32_0 = arith.constant 0 : i32
    %2 = arith.cmpi ne, %1, %c0_i32_0 : i32
    scf.if %2 {
      %cst_18 = arith.constant 0.000000e+00 : f32
      %30 = vector.broadcast %cst_18 : f32 to vector<32x768xf32>
      %c0_19 = arith.constant 0 : index
      %c0_20 = arith.constant 0 : index
      %31 = vector.load %arg8[%c0_19, %c0_20] : memref<32x768xf32, #tpu.memory_space<vmem>>, vector<32x768xf32>
      tpu.vector_store %arg8[%c0_19, %c0_20], %30 {strides = array<i32>} : memref<32x768xf32, #tpu.memory_space<vmem>>, vector<32x768xf32>,
    } else {
    }
    %c0 = arith.constant 0 : index
    %c0_1 = arith.constant 0 : index
    %3 = vector.load %arg2[%c0, %c0_1] : memref<32x768xf32, #tpu.memory_space<vmem>>, vector<32x768xf32>
    %c0_2 = arith.constant 0 : index
    %c0_3 = arith.constant 0 : index
    %4 = vector.load %arg3[%c0_2, %c0_3] : memref<768x1024xf32, #tpu.memory_space<vmem>>, vector<768x1024xf32>
    %cst = arith.constant dense<0.000000e+00> : vector<32x1024xf32>
    %5 = tpu.matmul %3, %4, %cst {dimension_numbers = #tpu.dot_dimension_numbers<[1], [0], [0], [1], [0, 0, 1, 1], [], []>} : vector<32x768xf32>, vector<768x1024xf32>, vector<32x1024xf32> -> vector<32x1024xf32>
    %c0_4 = arith.constant 0 : index
    %c0_5 = arith.constant 0 : index
    %6 = vector.load %arg4[%c0_4, %c0_5] : memref<1x1024xf32, #tpu.memory_space<vmem>>, vector<1x1024xf32>
    %7 = vector.broadcast %6 : vector<1x1024xf32> to vector<32x1024xf32>
    %8 = arith.addf %5, %7 : vector<32x1024xf32>
    %9 = arith.mulf %8, %8 : vector<32x1024xf32>
    %10 = arith.mulf %9, %8 : vector<32x1024xf32>
    %cst_6 = arith.constant 5.000000e-01 : f32
    %11 = vector.broadcast %cst_6 : f32 to vector<32x1024xf32>
    %12 = arith.mulf %11, %8 : vector<32x1024xf32>
    %cst_7 = arith.constant 4.471500e-02 : f32
    %13 = vector.broadcast %cst_7 : f32 to vector<32x1024xf32>
    %14 = arith.mulf %13, %10 : vector<32x1024xf32>
    %15 = arith.addf %8, %14 : vector<32x1024xf32>
    %cst_8 = arith.constant 0.797884583 : f32
    %16 = vector.broadcast %cst_8 : f32 to vector<32x1024xf32>
    %17 = arith.mulf %16, %15 : vector<32x1024xf32>
    %18 = math.tanh %17 : vector<32x1024xf32>
    %cst_9 = arith.constant 1.000000e+00 : f32
    %19 = vector.broadcast %cst_9 : f32 to vector<32x1024xf32>
    %20 = arith.addf %19, %18 : vector<32x1024xf32>
    %21 = arith.mulf %12, %20 : vector<32x1024xf32>
    %c0_10 = arith.constant 0 : index
    %c0_11 = arith.constant 0 : index
    %22 = vector.load %arg8[%c0_10, %c0_11] : memref<32x768xf32, #tpu.memory_space<vmem>>, vector<32x768xf32>
    %c0_12 = arith.constant 0 : index
    %c0_13 = arith.constant 0 : index
    %23 = vector.load %arg5[%c0_12, %c0_13] : memref<1024x768xf32, #tpu.memory_space<vmem>>, vector<1024x768xf32>
    %cst_14 = arith.constant dense<0.000000e+00> : vector<32x768xf32>
    %24 = tpu.matmul %21, %23, %cst_14 {dimension_numbers = #tpu.dot_dimension_numbers<[1], [0], [0], [1], [0, 0, 1, 1], [], []>} : vector<32x1024xf32>, vector<1024x768xf32>, vector<32x768xf32> -> vector<32x768xf32>
    %25 = arith.addf %22, %24 : vector<32x768xf32>
    %c0_15 = arith.constant 0 : index
    %c0_16 = arith.constant 0 : index
    %26 = vector.load %arg8[%c0_15, %c0_16] : memref<32x768xf32, #tpu.memory_space<vmem>>, vector<32x768xf32>
    tpu.vector_store %arg8[%c0_15, %c0_16], %25 {strides = array<i32>} : memref<32x768xf32, #tpu.memory_space<vmem>>, vector<32x768xf32>,
    %c2_i32 = arith.constant 2 : i32
    %27 = arith.cmpi eq, %arg1, %c2_i32 : i32
    %28 = arith.extui %27 : i1 to i32
    %c0_i32_17 = arith.constant 0 : i32
    %29 = arith.cmpi ne, %28, %c0_i32_17 : i32
    scf.if %29 {
      %c0_18 = arith.constant 0 : index
      %c0_19 = arith.constant 0 : index
      %30 = vector.load %arg8[%c0_18, %c0_19] : memref<32x768xf32, #tpu.memory_space<vmem>>, vector<32x768xf32>
      %c0_20 = arith.constant 0 : index
      %c0_21 = arith.constant 0 : index
      %31 = vector.load %arg6[%c0_20, %c0_21] : memref<1x768xf32, #tpu.memory_space<vmem>>, vector<1x768xf32>
      %32 = vector.broadcast %31 : vector<1x768xf32> to vector<32x768xf32>
      %33 = arith.addf %30, %32 : vector<32x768xf32>
      %c0_22 = arith.constant 0 : index
      %c0_23 = arith.constant 0 : index
      %34 = vector.load %arg7[%c0_22, %c0_23] : memref<32x768xf32, #tpu.memory_space<vmem>>, vector<32x768xf32>
      tpu.vector_store %arg7[%c0_22, %c0_23], %33 {strides = array<i32>} : memref<32x768xf32, #tpu.memory_space<vmem>>, vector<32x768xf32>,
    } else {
    }
    return
  }
  func.func @transform_0(%arg0: i32, %arg1: i32) -> (i32, i32) {
    %c0_i32 = arith.constant 0 : i32
    %c0_i32_0 = arith.constant 0 : i32
    return %arg0, %c0_i32 : i32, i32
  }
  func.func @transform_1(%arg0: i32, %arg1: i32) -> (i32, i32) {
    %c0_i32 = arith.constant 0 : i32
    %c0_i32_0 = arith.constant 0 : i32
    return %c0_i32, %arg1 : i32, i32
  }
  func.func @transform_2(%arg0: i32, %arg1: i32) -> (i32, i32) {
    %c0_i32 = arith.constant 0 : i32
    %c0_i32_0 = arith.constant 0 : i32
    return %c0_i32, %arg1 : i32, i32
  }
  func.func @transform_3(%arg0: i32, %arg1: i32) -> (i32, i32) {
    %c0_i32 = arith.constant 0 : i32
    %c0_i32_0 = arith.constant 0 : i32
    return %arg1, %c0_i32 : i32, i32
  }
  func.func @transform_4(%arg0: i32, %arg1: i32) -> (i32, i32) {
    %c0_i32 = arith.constant 0 : i32
    %c0_i32_0 = arith.constant 0 : i32
    %c0_i32_1 = arith.constant 0 : i32
    return %c0_i32, %c0_i32_0 : i32, i32
  }
  func.func @transform_5(%arg0: i32, %arg1: i32) -> (i32, i32) {
    %c0_i32 = arith.constant 0 : i32
    %c0_i32_0 = arith.constant 0 : i32
    return %arg0, %c0_i32 : i32, i32
  }
}

</mosaic_0001>

<llo_original>
// kernel: tpu_custom_call.1
$region0: #{tpu_custom_call.1}
  #allocation0 [shape = 'u32[]', space=smem, size = 0x4, offset = 0x4, fixed_abs, tag = 'smem constant byte address 0x4 - core index']
  #allocation1 [shape = 'u32[144,128]{1,0:T(1,128)}', space=vmem, size = 0x12000, scoped, tag = 'internal scratch']
  #allocation2 [shape = 'f32[32,768]{1,0:T(8,128)}', space=vmem, size = 0x18000, scoped, tag = 'scratch operand']
  %s0 = inlined_call_operand.hbm [shape: f32[32,768], index: 0, kind: input, shape index: {}]
  %s1 = inlined_call_operand.hbm [shape: f32[768,3072], index: 1, kind: input, shape index: {}]
  %s2 = inlined_call_operand.hbm [shape: f32[1,3072], index: 2, kind: input, shape index: {}]
  %s3 = inlined_call_operand.hbm [shape: f32[3072,768], index: 3, kind: input, shape index: {}]
  %s4 = inlined_call_operand.hbm [shape: f32[1,768], index: 4, kind: input, shape index: {}]
  %s5 = inlined_call_operand.hbm [shape: f32[32,768], index: 5, kind: output, shape index: {}]
  %s6 = sld [smem:[#allocation0]]
  $region81: #{tpu_custom_call.1} parent=0
    _
  %s8 = ssub.s32 1, %s6
  %s9 = scalar_select 0, %s8, %s6
  $region1: #{tpu_custom_call.1} parent=0
    #allocation3 [shape = 'u8[98304]{0}', space=vmem, size = 0x18000, scoped, tag = 'input window, operand 0, single buffered']
    #allocation4 [shape = 's32[2]{0}', space=sflag, size = 0x8, scoped, tag = 'scoped memory for tpu_custom_call.1']
    #allocation5 [shape = 's32[2]{0}', space=sflag, size = 0x8, scoped, tag = 'scoped memory for tpu_custom_call.1']
    #allocation6 [shape = 'u8[6291456]{0}', space=vmem, size = 0x600000, scoped, tag = 'input window, operand 1']
    #allocation7 [shape = 's32[2]{0}', space=sflag, size = 0x8, scoped, tag = 'scoped memory for tpu_custom_call.1']
    #allocation8 [shape = 'u8[8192]{0}', space=vmem, size = 0x2000, scoped, tag = 'input window, operand 2']
    #allocation9 [shape = 'u8[6291456]{0}', space=vmem, size = 0x600000, scoped, tag = 'input window, operand 3']
    #allocation10 [shape = 's32[2]{0}', space=sflag, size = 0x8, scoped, tag = 'scoped memory for tpu_custom_call.1']
    #allocation11 [shape = 'u8[3072]{0}', space=vmem, size = 0xc00, scoped, tag = 'input window, operand 4, single buffered']
    #allocation12 [shape = 'u8[98304]{0}', space=vmem, size = 0x18000, scoped, tag = 'output window, operand 0, single buffered']
    %10 = vsyncpa [#allocation4], 0
    %11 = vsyncpa [#allocation7], 0
    %s12 = scalar_lea.sflag [#allocation7], 1
    %13 = vsyncpa %s12, 0
    %14 = vsyncpa [#allocation10], 0
    %s15 = scalar_lea.sflag [#allocation10], 1
    %16 = vsyncpa %s15, 0
    %17 = vsyncpa [#allocation5], 0
    loop: start=0, step=1, limit=5
    $region2: #{tpu_custom_call.1} parent=1 // loop_pre_header
      _
    $region3: #{tpu_custom_call.1} parent=1 // loop_header
      %s19 = sphi 0, %s23
      %p20 = scmp.ge.s32.totalorder %s19, 5
      %s26 = sphi 0, %s38
      %s27 = sphi 0, %s34
      %s28 = sphi 0, %s26
      %s29 = sphi 0, %s27
      %s30 = sphi 0, %s28
      %s31 = sphi 0, %s29
      %s41 = sphi 0, %s43
      %s44 = sphi 0, %s41
      %s45 = sphi 0, %s44
      %s61 = sphi 0, %s45
      %s67 = sphi 0, %s69
      %s70 = sphi 0, %s67
      %s71 = sphi 0, %s70
      %s87 = sphi 0, %s71
      %s93 = sphi 0, %s95
      %s96 = sphi 0, %s93
      %s97 = sphi 0, %s96
      %s113 = sphi 0, %s97
      %s119 = sphi 0, %s121
      %s122 = sphi 0, %s119
      %s123 = sphi 0, %s122
      %s139 = sphi 0, %s123
      %s143 = sphi 0, %s143
      %s145 = sphi 0, %s143
      %s146 = sphi 0, %s145
      %s160 = sphi 0, %s146
      %s166 = sphi 0, %s168
      %s169 = sphi 0, %s166
      %s170 = sphi 0, %s169
      %s186 = sphi 0, %s170
    $region4: #{tpu_custom_call.1} parent=1 // loop_header_branch
      %22 = sbr.rel (%p20) target = $region8
    $region5: #{tpu_custom_call.1} parent=1 // loop_body
      %s24 = ssub.s32 %s19, 1
      %s25 = ssub.s32 %s19, 2
      %s32 = sadd.s32 1, %s27
      %p33 = scmp.ge.s32.totalorder %s32, 3
      %s34 = scalar_select %p33, 0, %s32
      %s35 = sadd.s32 1, %s26
      %s36 = scalar_select %p33, %s35, %s26
      %p37 = scmp.ge.s32.totalorder %s36, 1
      %s38 = scalar_select %p37, 0, %s36
      %s39 = ssub.s32 %s26, %s38
      %p40 = scmp.eq.s32.totalorder %s39, 0
      %s42 = sadd.s32 %s41, 1
      %s43 = scalar_select %p40, %s41, %s42
      %p46 = pneg %p40
      %p47 = scmp.eq.s32.totalorder %s19, 2
      %p48 = por %p46, %p47
      %p49 = scmp.ne.s32.totalorder %s41, %s44
      %p50 = scmp.eq.s32.totalorder %s19, 0
      %p51 = por %p49, %p50
      %p52 = scmp.ne.s32.totalorder %s41, %s44
      %p53 = scmp.eq.s32.totalorder %s24, 2
      %p54 = por %p52, %p53
      %p55 = scmp.ne.s32.totalorder %s44, %s45
      %p56 = scmp.eq.s32.totalorder %s24, 0
      %p57 = por %p55, %p56
      %p58 = scmp.ne.s32.totalorder %s44, %s45
      %p59 = scmp.eq.s32.totalorder %s25, 2
      %p60 = por %p58, %p59
      %p62 = scmp.ne.s32.totalorder %s45, %s61
      %p63 = scmp.eq.s32.totalorder %s25, 0
      %p64 = por %p62, %p63
      %s65 = ssub.s32 %s27, %s34
      %p66 = scmp.eq.s32.totalorder %s65, 0
      %s68 = sadd.s32 %s67, 1
      %s69 = scalar_select %p66, %s67, %s68
      %p72 = pneg %p66
      %p73 = scmp.eq.s32.totalorder %s19, 2
      %p74 = por %p72, %p73
      %p75 = scmp.ne.s32.totalorder %s67, %s70
      %p76 = scmp.eq.s32.totalorder %s19, 0
      %p77 = por %p75, %p76
      %p78 = scmp.ne.s32.totalorder %s67, %s70
      %p79 = scmp.eq.s32.totalorder %s24, 2
      %p80 = por %p78, %p79
      %p81 = scmp.ne.s32.totalorder %s70, %s71
      %p82 = scmp.eq.s32.totalorder %s24, 0
      %p83 = por %p81, %p82
      %p84 = scmp.ne.s32.totalorder %s70, %s71
      %p85 = scmp.eq.s32.totalorder %s25, 2
      %p86 = por %p84, %p85
      %p88 = scmp.ne.s32.totalorder %s71, %s87
      %p89 = scmp.eq.s32.totalorder %s25, 0
      %p90 = por %p88, %p89
      %s91 = ssub.s32 %s27, %s34
      %p92 = scmp.eq.s32.totalorder %s91, 0
      %s94 = sadd.s32 %s93, 1
      %s95 = scalar_select %p92, %s93, %s94
      %p98 = pneg %p92
      %p99 = scmp.eq.s32.totalorder %s19, 2
      %p100 = por %p98, %p99
      %p101 = scmp.ne.s32.totalorder %s93, %s96
      %p102 = scmp.eq.s32.totalorder %s19, 0
      %p103 = por %p101, %p102
      %p104 = scmp.ne.s32.totalorder %s93, %s96
      %p105 = scmp.eq.s32.totalorder %s24, 2
      %p106 = por %p104, %p105
      %p107 = scmp.ne.s32.totalorder %s96, %s97
      %p108 = scmp.eq.s32.totalorder %s24, 0
      %p109 = por %p107, %p108
      %p110 = scmp.ne.s32.totalorder %s96, %s97
      %p111 = scmp.eq.s32.totalorder %s25, 2
      %p112 = por %p110, %p111
      %p114 = scmp.ne.s32.totalorder %s97, %s113
      %p115 = scmp.eq.s32.totalorder %s25, 0
      %p116 = por %p114, %p115
      %s117 = ssub.s32 %s27, %s34
      %p118 = scmp.eq.s32.totalorder %s117, 0
      %s120 = sadd.s32 %s119, 1
      %s121 = scalar_select %p118, %s119, %s120
      %p124 = pneg %p118
      %p125 = scmp.eq.s32.totalorder %s19, 2
      %p126 = por %p124, %p125
      %p127 = scmp.ne.s32.totalorder %s119, %s122
      %p128 = scmp.eq.s32.totalorder %s19, 0
      %p129 = por %p127, %p128
      %p130 = scmp.ne.s32.totalorder %s119, %s122
      %p131 = scmp.eq.s32.totalorder %s24, 2
      %p132 = por %p130, %p131
      %p133 = scmp.ne.s32.totalorder %s122, %s123
      %p134 = scmp.eq.s32.totalorder %s24, 0
      %p135 = por %p133, %p134
      %p136 = scmp.ne.s32.totalorder %s122, %s123
      %p137 = scmp.eq.s32.totalorder %s25, 2
      %p138 = por %p136, %p137
      %p140 = scmp.ne.s32.totalorder %s123, %s139
      %p141 = scmp.eq.s32.totalorder %s25, 0
      %p142 = por %p140, %p141
      %s144 = sadd.s32 %s143, 1
      %p147 = scmp.eq.s32.totalorder %s19, 2
      %p148 = scmp.ne.s32.totalorder %s143, %s145
      %p149 = scmp.eq.s32.totalorder %s19, 0
      %p150 = por %p148, %p149
      %p151 = scmp.ne.s32.totalorder %s143, %s145
      %p152 = scmp.eq.s32.totalorder %s24, 2
      %p153 = por %p151, %p152
      %p154 = scmp.ne.s32.totalorder %s145, %s146
      %p155 = scmp.eq.s32.totalorder %s24, 0
      %p156 = por %p154, %p155
      %p157 = scmp.ne.s32.totalorder %s145, %s146
      %p158 = scmp.eq.s32.totalorder %s25, 2
      %p159 = por %p157, %p158
      %p161 = scmp.ne.s32.totalorder %s146, %s160
      %p162 = scmp.eq.s32.totalorder %s25, 0
      %p163 = por %p161, %p162
      %s164 = ssub.s32 %s26, %s38
      %p165 = scmp.eq.s32.totalorder %s164, 0
      %s167 = sadd.s32 %s166, 1
      %s168 = scalar_select %p165, %s166, %s167
      %p171 = pneg %p165
      %p172 = scmp.eq.s32.totalorder %s19, 2
      %p173 = por %p171, %p172
      %p174 = scmp.ne.s32.totalorder %s166, %s169
      %p175 = scmp.eq.s32.totalorder %s19, 0
      %p176 = por %p174, %p175
      %p177 = scmp.ne.s32.totalorder %s166, %s169
      %p178 = scmp.eq.s32.totalorder %s24, 2
      %p179 = por %p177, %p178
      %p180 = scmp.ne.s32.totalorder %s169, %s170
      %p181 = scmp.eq.s32.totalorder %s24, 0
      %p182 = por %p180, %p181
      %p183 = scmp.ne.s32.totalorder %s169, %s170
      %p184 = scmp.eq.s32.totalorder %s25, 2
      %p185 = por %p183, %p184
      %p187 = scmp.ne.s32.totalorder %s170, %s186
      %p188 = scmp.eq.s32.totalorder %s25, 0
      %p189 = por %p187, %p188
      %p190 = scmp.le.s32.totalorder 1, %s19
      %p191 = scmp.lt.s32.totalorder %s19, 4
      %p192 = pnand %p190, %p191
      %p193 = pneg %p192
      // Predicated region
      $region9: #{tpu_custom_call.1} parent=5 // pred_check
        _
      $region10: #{tpu_custom_call.1} parent=5 // pred_check_branch
        %195 = sbr.rel (%p192) target = $region12
      $region11: #{tpu_custom_call.1} parent=5 // pred_region
        %s196 = ssub.s32 %s19, 1
        // Predicated region
        $region13: #{tpu_custom_call.1} parent=11 // pred_check
          %p197 = pneg %p57
        $region14: #{tpu_custom_call.1} parent=11 // pred_check_branch
          %199 = sbr.rel (%p197) target = $region16
        $region15: #{tpu_custom_call.1} parent=11 // pred_region
          %s200 = smul.u32 4, %s28
          %s202 = ssub.s32 3072, 3072
          %203 = vsyncadd [#allocation4], %s202
          %s204 = smul.addr %s200, 6
          %s205 = smul.addr %s204, 128
          %s206 = scalar_lea.hbm %s0, %s205
          %s207 = sshll.u32 [#allocation3], 4
          %s208 = int_to_ptr.vmem [resolvable:$true] %s207
          %213 = dma.hbm_to_vmem [thread:$0]  %s206, 3072, %s208, [#allocation4], 768, 768, 48
        $region16: #{tpu_custom_call.1} parent=11 // pred_fallthru
          _
        // Predicated region
        $region17: #{tpu_custom_call.1} parent=11 // pred_check
          %p214 = pneg %p156
        $region18: #{tpu_custom_call.1} parent=11 // pred_check_branch
          %216 = sbr.rel (%p214) target = $region20
        $region19: #{tpu_custom_call.1} parent=11 // pred_region
          %s218 = ssub.s32 96, 96
          %219 = vsyncadd [#allocation10], %s218
          %s221 = sshll.u32 [#allocation11], 4
          %s222 = int_to_ptr.vmem [resolvable:$true] %s221
          %224 = dma.hbm_to_vmem [thread:$0]  %s4, 96, %s222, [#allocation10]
        $region20: #{tpu_custom_call.1} parent=11 // pred_fallthru
          _
      $region12: #{tpu_custom_call.1} parent=5 // pred_fallthru
        _
      %p225 = scmp.lt.s32.totalorder %s19, 3
      // Predicated region
      $region21: #{tpu_custom_call.1} parent=5 // pred_check
        %p226 = pneg %p225
      $region22: #{tpu_custom_call.1} parent=5 // pred_check_branch
        %228 = sbr.rel (%p226) target = $region24
      $region23: #{tpu_custom_call.1} parent=5 // pred_region
        // Predicated region
        $region25: #{tpu_custom_call.1} parent=23 // pred_check
          %p229 = pneg %p77
        $region26: #{tpu_custom_call.1} parent=23 // pred_check_branch
          %231 = sbr.rel (%p229) target = $region28
        $region27: #{tpu_custom_call.1} parent=23 // pred_region
          %s232 = sand.u32 %s19, 1
          %s233 = scalar_lea.sflag [#allocation7], %s232
          %s234 = sand.u32 %s67, 1
          %s235 = smul.addr %s234, 6144
          %s236 = scalar_lea.vmem [#allocation6], %s235
          %s237 = smul.u32 8, %s27
          %s239 = ssub.s32 98304, 98304
          %240 = vsyncadd %s233, %s239
          %s241 = smul.addr %s237, 128
          %s242 = scalar_lea.hbm %s1, %s241
          %s243 = sshll.u32 %s236, 4
          %s244 = int_to_ptr.vmem [resolvable:$true] %s243
          %249 = dma.hbm_to_vmem [thread:$0]  %s242, 98304, %s244, %s233, 3072, 1024, 64
        $region28: #{tpu_custom_call.1} parent=23 // pred_fallthru
          _
        // Predicated region
        $region29: #{tpu_custom_call.1} parent=23 // pred_check
          %p250 = pneg %p103
        $region30: #{tpu_custom_call.1} parent=23 // pred_check_branch
          %252 = sbr.rel (%p250) target = $region32
        $region31: #{tpu_custom_call.1} parent=23 // pred_region
          %s253 = sand.u32 %s19, 1
          %s254 = scalar_lea.sflag [#allocation7], %s253
          %s255 = sand.u32 %s93, 1
          %s256 = smul.addr %s255, 8
          %s257 = scalar_lea.vmem [#allocation8], %s256
          %s258 = smul.u32 8, %s27
          %s260 = ssub.s32 128, 128
          %261 = vsyncadd %s254, %s260
          %s262 = smul.addr %s258, 16
          %s263 = scalar_lea.hbm %s2, %s262
          %s265 = sshll.u32 %s257, 4
          %s266 = int_to_ptr.vmem [resolvable:$true] %s265
          %268 = dma.hbm_to_vmem [thread:$0]  %s263, 128, %s266, %s254
        $region32: #{tpu_custom_call.1} parent=23 // pred_fallthru
          _
        // Predicated region
        $region33: #{tpu_custom_call.1} parent=23 // pred_check
          %p269 = pneg %p129
        $region34: #{tpu_custom_call.1} parent=23 // pred_check_branch
          %271 = sbr.rel (%p269) target = $region36
        $region35: #{tpu_custom_call.1} parent=23 // pred_region
          %s272 = sand.u32 %s19, 1
          %s273 = scalar_lea.sflag [#allocation10], %s272
          %s274 = sand.u32 %s119, 1
          %s275 = smul.addr %s274, 6144
          %s276 = scalar_lea.vmem [#allocation9], %s275
          %s277 = smul.u32 128, %s27
          %s279 = ssub.s32 98304, 98304
          %280 = vsyncadd %s273, %s279
          %s281 = smul.addr %s277, 6
          %s282 = smul.addr %s281, 128
          %s283 = scalar_lea.hbm %s3, %s282
          %s284 = sshll.u32 %s276, 4
          %s285 = int_to_ptr.vmem [resolvable:$true] %s284
          %290 = dma.hbm_to_vmem [thread:$0]  %s283, 98304, %s285, %s273, 768, 768, 48
        $region36: #{tpu_custom_call.1} parent=23 // pred_fallthru
          _
      $region24: #{tpu_custom_call.1} parent=5 // pred_fallthru
        _
      %p291 = scmp.le.s32.totalorder 1, %s19
      %p292 = scmp.lt.s32.totalorder %s19, 4
      %p293 = pnand %p291, %p292
      %p294 = pneg %p293
      // Predicated region
      $region37: #{tpu_custom_call.1} parent=5 // pred_check
        _
      $region38: #{tpu_custom_call.1} parent=5 // pred_check_branch
        %296 = sbr.rel (%p293) target = $region40
      $region39: #{tpu_custom_call.1} parent=5 // pred_region
        %s297 = ssub.s32 %s19, 1
        // Predicated region
        $region41: #{tpu_custom_call.1} parent=39 // pred_check
          %p298 = pneg %p57
        $region42: #{tpu_custom_call.1} parent=39 // pred_check_branch
          %300 = sbr.rel (%p298) target = $region44
        $region43: #{tpu_custom_call.1} parent=39 // pred_region
          %301 = dma.done [#allocation4], 3072
        $region44: #{tpu_custom_call.1} parent=39 // pred_fallthru
          _
        %s302 = sand.u32 %s24, 1
        %s303 = scalar_lea.sflag [#allocation7], %s302
        %s304 = sand.u32 %s70, 1
        %s305 = smul.addr %s304, 6144
        %s306 = scalar_lea.vmem [#allocation6], %s305
        // Predicated region
        $region45: #{tpu_custom_call.1} parent=39 // pred_check
          %p307 = pneg %p83
        $region46: #{tpu_custom_call.1} parent=39 // pred_check_branch
          %309 = sbr.rel (%p307) target = $region48
        $region47: #{tpu_custom_call.1} parent=39 // pred_region
          %310 = dma.done %s303, 98304
        $region48: #{tpu_custom_call.1} parent=39 // pred_fallthru
          _
        %s311 = sand.u32 %s24, 1
        %s312 = scalar_lea.sflag [#allocation7], %s311
        %s313 = sand.u32 %s96, 1
        %s314 = smul.addr %s313, 8
        %s315 = scalar_lea.vmem [#allocation8], %s314
        // Predicated region
        $region49: #{tpu_custom_call.1} parent=39 // pred_check
          %p316 = pneg %p109
        $region50: #{tpu_custom_call.1} parent=39 // pred_check_branch
          %318 = sbr.rel (%p316) target = $region52
        $region51: #{tpu_custom_call.1} parent=39 // pred_region
          %319 = dma.done %s312, 128
        $region52: #{tpu_custom_call.1} parent=39 // pred_fallthru
          _
        %s320 = sand.u32 %s24, 1
        %s321 = scalar_lea.sflag [#allocation10], %s320
        %s322 = sand.u32 %s122, 1
        %s323 = smul.addr %s322, 6144
        %s324 = scalar_lea.vmem [#allocation9], %s323
        // Predicated region
        $region53: #{tpu_custom_call.1} parent=39 // pred_check
          %p325 = pneg %p135
        $region54: #{tpu_custom_call.1} parent=39 // pred_check_branch
          %327 = sbr.rel (%p325) target = $region56
        $region55: #{tpu_custom_call.1} parent=39 // pred_region
          %328 = dma.done %s321, 98304
        $region56: #{tpu_custom_call.1} parent=39 // pred_fallthru
          _
        // Predicated region
        $region57: #{tpu_custom_call.1} parent=39 // pred_check
          %p329 = pneg %p156
        $region58: #{tpu_custom_call.1} parent=39 // pred_check_branch
          %331 = sbr.rel (%p329) target = $region60
        $region59: #{tpu_custom_call.1} parent=39 // pred_region
          %332 = dma.done [#allocation10], 96
        $region60: #{tpu_custom_call.1} parent=39 // pred_fallthru
          _
        %p333 = pneg %p57
        %p334 = pneg %p54
        %s335 = sand.u32 %s24, 1
        %s336 = scalar_lea.sflag [#allocation7], %s335
        %s337 = sand.u32 %s70, 1
        %s338 = smul.addr %s337, 6144
        %s339 = scalar_lea.vmem [#allocation6], %s338
        %p340 = pneg %p83
        %p341 = pneg %p80
        %s342 = sand.u32 %s24, 1
        %s343 = scalar_lea.sflag [#allocation7], %s342
        %s344 = sand.u32 %s96, 1
        %s345 = smul.addr %s344, 8
        %s346 = scalar_lea.vmem [#allocation8], %s345
        %p347 = pneg %p109
        %p348 = pneg %p106
        %s349 = sand.u32 %s24, 1
        %s350 = scalar_lea.sflag [#allocation10], %s349
        %s351 = sand.u32 %s122, 1
        %s352 = smul.addr %s351, 6144
        %s353 = scalar_lea.vmem [#allocation9], %s352
        %p354 = pneg %p135
        %p355 = pneg %p132
        %p356 = pneg %p156
        %p357 = pneg %p153
        %p358 = pneg %p182
        %p359 = pneg %p179
        %s360 = smul.u32 4, %s28
        %s361 = smul.u32 8, %s29
        %s362 = smul.u32 8, %s29
        %s363 = smul.u32 128, %s29
        %s364 = smul.u32 4, %s28
        %p365 = scmp.eq.s32.totalorder %s29, 0
        // Predicated region
        $region61: #{tpu_custom_call.1} parent=39 // pred_check
          %p366 = pneg %p365
        $region62: #{tpu_custom_call.1} parent=39 // pred_check_branch
          %368 = sbr.rel (%p366) target = $region64
        $region63: #{tpu_custom_call.1} parent=39 // pred_region
          %369 = vst [vmem:[#allocation2] sm:$0xff] 0.0
          %370 = vst [vmem:[#allocation2 + $0x8] sm:$0xff] 0.0
          %371 = vst [vmem:[#allocation2 + $0x10] sm:$0xff] 0.0
          %372 = vst [vmem:[#allocation2 + $0x18] sm:$0xff] 0.0
          %373 = vst [vmem:[#allocation2 + $0x20] sm:$0xff] 0.0
          %374 = vst [vmem:[#allocation2 + $0x28] sm:$0xff] 0.0
          %375 = vst [vmem:[#allocation2 + $0x30] sm:$0xff] 0.0
          %376 = vst [vmem:[#allocation2 + $0x38] sm:$0xff] 0.0
          %377 = vst [vmem:[#allocation2 + $0x40] sm:$0xff] 0.0
          %378 = vst [vmem:[#allocation2 + $0x48] sm:$0xff] 0.0
          %379 = vst [vmem:[#allocation2 + $0x50] sm:$0xff] 0.0
          %380 = vst [vmem:[#allocation2 + $0x58] sm:$0xff] 0.0
          %381 = vst [vmem:[#allocation2 + $0x60] sm:$0xff] 0.0
          %382 = vst [vmem:[#allocation2 + $0x68] sm:$0xff] 0.0
          %383 = vst [vmem:[#allocation2 + $0x70] sm:$0xff] 0.0
          %384 = vst [vmem:[#allocation2 + $0x78] sm:$0xff] 0.0
          %385 = vst [vmem:[#allocation2 + $0x80] sm:$0xff] 0.0
          %386 = vst [vmem:[#allocation2 + $0x88] sm:$0xff] 0.0
          %387 = vst [vmem:[#allocation2 + $0x90] sm:$0xff] 0.0
          %388 = vst [vmem:[#allocation2 + $0x98] sm:$0xff] 0.0
          %389 = vst [vmem:[#allocation2 + $0xa0] sm:$0xff] 0.0
          %390 = vst [vmem:[#allocation2 + $0xa8] sm:$0xff] 0.0
          %391 = vst [vmem:[#allocation2 + $0xb0] sm:$0xff] 0.0
          %392 = vst [vmem:[#allocation2 + $0xb8] sm:$0xff] 0.0
        $region64: #{tpu_custom_call.1} parent=39 // pred_fallthru
          _
        %v393 = vld [vmem:[#allocation3] sm:$0xff]
        %v394 = vld [vmem:[#allocation3 + $0x8] sm:$0xff]
        %v395 = vld [vmem:[#allocation3 + $0x10] sm:$0xff]
        %v396 = vld [vmem:[#allocation3 + $0x18] sm:$0xff]
        %v397 = vld [vmem:[#allocation3 + $0x20] sm:$0xff]
        %v398 = vld [vmem:[#allocation3 + $0x28] sm:$0xff]
        %v399 = vld [vmem:[#allocation3 + $0x30] sm:$0xff]
        %v400 = vld [vmem:[#allocation3 + $0x38] sm:$0xff]
        %v401 = vld [vmem:[#allocation3 + $0x40] sm:$0xff]
        %v402 = vld [vmem:[#allocation3 + $0x48] sm:$0xff]
        %v403 = vld [vmem:[#allocation3 + $0x50] sm:$0xff]
        %v404 = vld [vmem:[#allocation3 + $0x58] sm:$0xff]
        %v405 = vld [vmem:[#allocation3 + $0x60] sm:$0xff]
        %v406 = vld [vmem:[#allocation3 + $0x68] sm:$0xff]
        %v407 = vld [vmem:[#allocation3 + $0x70] sm:$0xff]
        %v408 = vld [vmem:[#allocation3 + $0x78] sm:$0xff]
        %v409 = vld [vmem:[#allocation3 + $0x80] sm:$0xff]
        %v410 = vld [vmem:[#allocation3 + $0x88] sm:$0xff]
        %v411 = vld [vmem:[#allocation3 + $0x90] sm:$0xff]
        %v412 = vld [vmem:[#allocation3 + $0x98] sm:$0xff]
        %v413 = vld [vmem:[#allocation3 + $0xa0] sm:$0xff]
        %v414 = vld [vmem:[#allocation3 + $0xa8] sm:$0xff]
        %v415 = vld [vmem:[#allocation3 + $0xb0] sm:$0xff]
        %v416 = vld [vmem:[#allocation3 + $0xb8] sm:$0xff]
        %v417 = vld [vmem:[%s306] sm:$0xff]
        %v418 = vld [vmem:[%s306 + $0x8] sm:$0xff]
        %v419 = vld [vmem:[%s306 + $0x10] sm:$0xff]
        %v420 = vld [vmem:[%s306 + $0x18] sm:$0xff]
        %v421 = vld [vmem:[%s306 + $0x20] sm:$0xff]
        %v422 = vld [vmem:[%s306 + $0x28] sm:$0xff]
        %v423 = vld [vmem:[%s306 + $0x30] sm:$0xff]
        %v424 = vld [vmem:[%s306 + $0x38] sm:$0xff]
        %v425 = vld [vmem:[%s306 + $0x40] sm:$0xff]
        %v426 = vld [vmem:[%s306 + $0x48] sm:$0xff]
        %v427 = vld [vmem:[%s306 + $0x50] sm:$0xff]
        %v428 = vld [vmem:[%s306 + $0x58] sm:$0xff]
        %v429 = vld [vmem:[%s306 + $0x60] sm:$0xff]
        %v430 = vld [vmem:[%s306 + $0x68] sm:$0xff]
        %v431 = vld [vmem:[%s306 + $0x70] sm:$0xff]
        %v432 = vld [vmem:[%s306 + $0x78] sm:$0xff]
        %v433 = vld [vmem:[%s306 + $0x80] sm:$0xff]
        %v434 = vld [vmem:[%s306 + $0x88] sm:$0xff]
        %v435 = vld [vmem:[%s306 + $0x90] sm:$0xff]
        %v436 = vld [vmem:[%s306 + $0x98] sm:$0xff]
        %v437 = vld [vmem:[%s306 + $0xa0] sm:$0xff]
        %v438 = vld [vmem:[%s306 + $0xa8] sm:$0xff]
        %v439 = vld [vmem:[%s306 + $0xb0] sm:$0xff]
        %v440 = vld [vmem:[%s306 + $0xb8] sm:$0xff]
        %v441 = vld [vmem:[%s306 + $0xc0] sm:$0xff]
        %v442 = vld [vmem:[%s306 + $0xc8] sm:$0xff]
        %v443 = vld [vmem:[%s306 + $0xd0] sm:$0xff]
        %v444 = vld [vmem:[%s306 + $0xd8] sm:$0xff]
        %v445 = vld [vmem:[%s306 + $0xe0] sm:$0xff]
        %v446 = vld [vmem:[%s306 + $0xe8] sm:$0xff]
        %v447 = vld [vmem:[%s306 + $0xf0] sm:$0xff]
        %v448 = vld [vmem:[%s306 + $0xf8] sm:$0xff]
        %v449 = vld [vmem:[%s306 + $0x100] sm:$0xff]
        %v450 = vld [vmem:[%s306 + $0x108] sm:$0xff]
        %v451 = vld [vmem:[%s306 + $0x110] sm:$0xff]
        %v452 = vld [vmem:[%s306 + $0x118] sm:$0xff]
        %v453 = vld [vmem:[%s306 + $0x120] sm:$0xff]
        %v454 = vld [vmem:[%s306 + $0x128] sm:$0xff]
        %v455 = vld [vmem:[%s306 + $0x130] sm:$0xff]
        %v456 = vld [vmem:[%s306 + $0x138] sm:$0xff]
        %v457 = vld [vmem:[%s306 + $0x140] sm:$0xff]
        %v458 = vld [vmem:[%s306 + $0x148] sm:$0xff]
        %v459 = vld [vmem:[%s306 + $0x150] sm:$0xff]
        %v460 = vld [vmem:[%s306 + $0x158] sm:$0xff]
        %v461 = vld [vmem:[%s306 + $0x160] sm:$0xff]
        %v462 = vld [vmem:[%s306 + $0x168] sm:$0xff]
        %v463 = vld [vmem:[%s306 + $0x170] sm:$0xff]
        %v464 = vld [vmem:[%s306 + $0x178] sm:$0xff]
        %v465 = vld [vmem:[%s306 + $0x180] sm:$0xff]
        %v466 = vld [vmem:[%s306 + $0x188] sm:$0xff]
        %v467 = vld [vmem:[%s306 + $0x190] sm:$0xff]
        %v468 = vld [vmem:[%s306 + $0x198] sm:$0xff]
        %v469 = vld [vmem:[%s306 + $0x1a0] sm:$0xff]
        %v470 = vld [vmem:[%s306 + $0x1a8] sm:$0xff]
        %v471 = vld [vmem:[%s306 + $0x1b0] sm:$0xff]
        %v472 = vld [vmem:[%s306 + $0x1b8] sm:$0xff]
        %v473 = vld [vmem:[%s306 + $0x1c0] sm:$0xff]
        %v474 = vld [vmem:[%s306 + $0x1c8] sm:$0xff]
        %v475 = vld [vmem:[%s306 + $0x1d0] sm:$0xff]
        %v476 = vld [vmem:[%s306 + $0x1d8] sm:$0xff]
        %v477 = vld [vmem:[%s306 + $0x1e0] sm:$0xff]
        %v478 = vld [vmem:[%s306 + $0x1e8] sm:$0xff]
        %v479 = vld [vmem:[%s306 + $0x1f0] sm:$0xff]
        %v480 = vld [vmem:[%s306 + $0x1f8] sm:$0xff]
        %v481 = vld [vmem:[%s306 + $0x200] sm:$0xff]
        %v482 = vld [vmem:[%s306 + $0x208] sm:$0xff]
        %v483 = vld [vmem:[%s306 + $0x210] sm:$0xff]
        %v484 = vld [vmem:[%s306 + $0x218] sm:$0xff]
        %v485 = vld [vmem:[%s306 + $0x220] sm:$0xff]
        %v486 = vld [vmem:[%s306 + $0x228] sm:$0xff]
        %v487 = vld [vmem:[%s306 + $0x230] sm:$0xff]
        %v488 = vld [vmem:[%s306 + $0x238] sm:$0xff]
        %v489 = vld [vmem:[%s306 + $0x240] sm:$0xff]
        %v490 = vld [vmem:[%s306 + $0x248] sm:$0xff]
        %v491 = vld [vmem:[%s306 + $0x250] sm:$0xff]
        %v492 = vld [vmem:[%s306 + $0x258] sm:$0xff]
        %v493 = vld [vmem:[%s306 + $0x260] sm:$0xff]
        %v494 = vld [vmem:[%s306 + $0x268] sm:$0xff]
        %v495 = vld [vmem:[%s306 + $0x270] sm:$0xff]
        %v496 = vld [vmem:[%s306 + $0x278] sm:$0xff]
        %v497 = vld [vmem:[%s306 + $0x280] sm:$0xff]
        %v498 = vld [vmem:[%s306 + $0x288] sm:$0xff]
        %v499 = vld [vmem:[%s306 + $0x290] sm:$0xff]
        %v500 = vld [vmem:[%s306 + $0x298] sm:$0xff]
        %v501 = vld [vmem:[%s306 + $0x2a0] sm:$0xff]
        %v502 = vld [vmem:[%s306 + $0x2a8] sm:$0xff]
        %v503 = vld [vmem:[%s306 + $0x2b0] sm:$0xff]
        %v504 = vld [vmem:[%s306 + $0x2b8] sm:$0xff]
        %v505 = vld [vmem:[%s306 + $0x2c0] sm:$0xff]
        %v506 = vld [vmem:[%s306 + $0x2c8] sm:$0xff]
        %v507 = vld [vmem:[%s306 + $0x2d0] sm:$0xff]
        %v508 = vld [vmem:[%s306 + $0x2d8] sm:$0xff]
        %v509 = vld [vmem:[%s306 + $0x2e0] sm:$0xff]
        %v510 = vld [vmem:[%s306 + $0x2e8] sm:$0xff]
        %v511 = vld [vmem:[%s306 + $0x2f0] sm:$0xff]
        %v512 = vld [vmem:[%s306 + $0x2f8] sm:$0xff]
        %v513 = vld [vmem:[%s306 + $0x300] sm:$0xff]
        %v514 = vld [vmem:[%s306 + $0x308] sm:$0xff]
        %v515 = vld [vmem:[%s306 + $0x310] sm:$0xff]
        %v516 = vld [vmem:[%s306 + $0x318] sm:$0xff]
        %v517 = vld [vmem:[%s306 + $0x320] sm:$0xff]
        %v518 = vld [vmem:[%s306 + $0x328] sm:$0xff]
        %v519 = vld [vmem:[%s306 + $0x330] sm:$0xff]
        %v520 = vld [vmem:[%s306 + $0x338] sm:$0xff]
        %v521 = vld [vmem:[%s306 + $0x340] sm:$0xff]
        %v522 = vld [vmem:[%s306 + $0x348] sm:$0xff]
        %v523 = vld [vmem:[%s306 + $0x350] sm:$0xff]
        %v524 = vld [vmem:[%s306 + $0x358] sm:$0xff]
        %v525 = vld [vmem:[%s306 + $0x360] sm:$0xff]
        %v526 = vld [vmem:[%s306 + $0x368] sm:$0xff]
        %v527 = vld [vmem:[%s306 + $0x370] sm:$0xff]
        %v528 = vld [vmem:[%s306 + $0x378] sm:$0xff]
        %v529 = vld [vmem:[%s306 + $0x380] sm:$0xff]
        %v530 = vld [vmem:[%s306 + $0x388] sm:$0xff]
        %v531 = vld [vmem:[%s306 + $0x390] sm:$0xff]
        %v532 = vld [vmem:[%s306 + $0x398] sm:$0xff]
        %v533 = vld [vmem:[%s306 + $0x3a0] sm:$0xff]
        %v534 = vld [vmem:[%s306 + $0x3a8] sm:$0xff]
        %v535 = vld [vmem:[%s306 + $0x3b0] sm:$0xff]
        %v536 = vld [vmem:[%s306 + $0x3b8] sm:$0xff]
        %v537 = vld [vmem:[%s306 + $0x3c0] sm:$0xff]
        %v538 = vld [vmem:[%s306 + $0x3c8] sm:$0xff]
        %v539 = vld [vmem:[%s306 + $0x3d0] sm:$0xff]
        %v540 = vld [vmem:[%s306 + $0x3d8] sm:$0xff]
        %v541 = vld [vmem:[%s306 + $0x3e0] sm:$0xff]
        %v542 = vld [vmem:[%s306 + $0x3e8] sm:$0xff]
        %v543 = vld [vmem:[%s306 + $0x3f0] sm:$0xff]
        %v544 = vld [vmem:[%s306 + $0x3f8] sm:$0xff]
        %v545 = vld [vmem:[%s306 + $0x400] sm:$0xff]
        %v546 = vld [vmem:[%s306 + $0x408] sm:$0xff]
        %v547 = vld [vmem:[%s306 + $0x410] sm:$0xff]
        %v548 = vld [vmem:[%s306 + $0x418] sm:$0xff]
        %v549 = vld [vmem:[%s306 + $0x420] sm:$0xff]
        %v550 = vld [vmem:[%s306 + $0x428] sm:$0xff]
        %v551 = vld [vmem:[%s306 + $0x430] sm:$0xff]
        %v552 = vld [vmem:[%s306 + $0x438] sm:$0xff]
        %v553 = vld [vmem:[%s306 + $0x440] sm:$0xff]
        %v554 = vld [vmem:[%s306 + $0x448] sm:$0xff]
        %v555 = vld [vmem:[%s306 + $0x450] sm:$0xff]
        %v556 = vld [vmem:[%s306 + $0x458] sm:$0xff]
        %v557 = vld [vmem:[%s306 + $0x460] sm:$0xff]
        %v558 = vld [vmem:[%s306 + $0x468] sm:$0xff]
        %v559 = vld [vmem:[%s306 + $0x470] sm:$0xff]
        %v560 = vld [vmem:[%s306 + $0x478] sm:$0xff]
        %v561 = vld [vmem:[%s306 + $0x480] sm:$0xff]
        %v562 = vld [vmem:[%s306 + $0x488] sm:$0xff]
        %v563 = vld [vmem:[%s306 + $0x490] sm:$0xff]
        %v564 = vld [vmem:[%s306 + $0x498] sm:$0xff]
        %v565 = vld [vmem:[%s306 + $0x4a0] sm:$0xff]
        %v566 = vld [vmem:[%s306 + $0x4a8] sm:$0xff]
        %v567 = vld [vmem:[%s306 + $0x4b0] sm:$0xff]
        %v568 = vld [vmem:[%s306 + $0x4b8] sm:$0xff]
        %v569 = vld [vmem:[%s306 + $0x4c0] sm:$0xff]
        %v570 = vld [vmem:[%s306 + $0x4c8] sm:$0xff]
        %v571 = vld [vmem:[%s306 + $0x4d0] sm:$0xff]
        %v572 = vld [vmem:[%s306 + $0x4d8] sm:$0xff]
        %v573 = vld [vmem:[%s306 + $0x4e0] sm:$0xff]
        %v574 = vld [vmem:[%s306 + $0x4e8] sm:$0xff]
        %v575 = vld [vmem:[%s306 + $0x4f0] sm:$0xff]
        %v576 = vld [vmem:[%s306 + $0x4f8] sm:$0xff]
        %v577 = vld [vmem:[%s306 + $0x500] sm:$0xff]
        %v578 = vld [vmem:[%s306 + $0x508] sm:$0xff]
        %v579 = vld [vmem:[%s306 + $0x510] sm:$0xff]
        %v580 = vld [vmem:[%s306 + $0x518] sm:$0xff]
        %v581 = vld [vmem:[%s306 + $0x520] sm:$0xff]
        %v582 = vld [vmem:[%s306 + $0x528] sm:$0xff]
        %v583 = vld [vmem:[%s306 + $0x530] sm:$0xff]
        %v584 = vld [vmem:[%s306 + $0x538] sm:$0xff]
        %v585 = vld [vmem:[%s306 + $0x540] sm:$0xff]
        %v586 = vld [vmem:[%s306 + $0x548] sm:$0xff]
        %v587 = vld [vmem:[%s306 + $0x550] sm:$0xff]
        %v588 = vld [vmem:[%s306 + $0x558] sm:$0xff]
        %v589 = vld [vmem:[%s306 + $0x560] sm:$0xff]
        %v590 = vld [vmem:[%s306 + $0x568] sm:$0xff]
        %v591 = vld [vmem:[%s306 + $0x570] sm:$0xff]
        %v592 = vld [vmem:[%s306 + $0x578] sm:$0xff]
        %v593 = vld [vmem:[%s306 + $0x580] sm:$0xff]
        %v594 = vld [vmem:[%s306 + $0x588] sm:$0xff]
        %v595 = vld [vmem:[%s306 + $0x590] sm:$0xff]
        %v596 = vld [vmem:[%s306 + $0x598] sm:$0xff]
        %v597 = vld [vmem:[%s306 + $0x5a0] sm:$0xff]
        %v598 = vld [vmem:[%s306 + $0x5a8] sm:$0xff]
        %v599 = vld [vmem:[%s306 + $0x5b0] sm:$0xff]
        %v600 = vld [vmem:[%s306 + $0x5b8] sm:$0xff]
        %v601 = vld [vmem:[%s306 + $0x5c0] sm:$0xff]
        %v602 = vld [vmem:[%s306 + $0x5c8] sm:$0xff]
        %v603 = vld [vmem:[%s306 + $0x5d0] sm:$0xff]
        %v604 = vld [vmem:[%s306 + $0x5d8] sm:$0xff]
        %v605 = vld [vmem:[%s306 + $0x5e0] sm:$0xff]
        %v606 = vld [vmem:[%s306 + $0x5e8] sm:$0xff]
        %v607 = vld [vmem:[%s306 + $0x5f0] sm:$0xff]
        %v608 = vld [vmem:[%s306 + $0x5f8] sm:$0xff]
        %v609 = vld [vmem:[%s306 + $0x600] sm:$0xff]
        %v610 = vld [vmem:[%s306 + $0x608] sm:$0xff]
        %v611 = vld [vmem:[%s306 + $0x610] sm:$0xff]
        %v612 = vld [vmem:[%s306 + $0x618] sm:$0xff]
        %v613 = vld [vmem:[%s306 + $0x620] sm:$0xff]
        %v614 = vld [vmem:[%s306 + $0x628] sm:$0xff]
        %v615 = vld [vmem:[%s306 + $0x630] sm:$0xff]
        %v616 = vld [vmem:[%s306 + $0x638] sm:$0xff]
        %v617 = vld [vmem:[%s306 + $0x640] sm:$0xff]
        %v618 = vld [vmem:[%s306 + $0x648] sm:$0xff]
        %v619 = vld [vmem:[%s306 + $0x650] sm:$0xff]
        %v620 = vld [vmem:[%s306 + $0x658] sm:$0xff]
        %v621 = vld [vmem:[%s306 + $0x660] sm:$0xff]
        %v622 = vld [vmem:[%s306 + $0x668] sm:$0xff]
        %v623 = vld [vmem:[%s306 + $0x670] sm:$0xff]
        %v624 = vld [vmem:[%s306 + $0x678] sm:$0xff]
        %v625 = vld [vmem:[%s306 + $0x680] sm:$0xff]
        %v626 = vld [vmem:[%s306 + $0x688] sm:$0xff]
        %v627 = vld [vmem:[%s306 + $0x690] sm:$0xff]
        %v628 = vld [vmem:[%s306 + $0x698] sm:$0xff]
        %v629 = vld [vmem:[%s306 + $0x6a0] sm:$0xff]
        %v630 = vld [vmem:[%s306 + $0x6a8] sm:$0xff]
        %v631 = vld [vmem:[%s306 + $0x6b0] sm:$0xff]
        %v632 = vld [vmem:[%s306 + $0x6b8] sm:$0xff]
        %v633 = vld [vmem:[%s306 + $0x6c0] sm:$0xff]
        %v634 = vld [vmem:[%s306 + $0x6c8] sm:$0xff]
        %v635 = vld [vmem:[%s306 + $0x6d0] sm:$0xff]
        %v636 = vld [vmem:[%s306 + $0x6d8] sm:$0xff]
        %v637 = vld [vmem:[%s306 + $0x6e0] sm:$0xff]
        %v638 = vld [vmem:[%s306 + $0x6e8] sm:$0xff]
        %v639 = vld [vmem:[%s306 + $0x6f0] sm:$0xff]
        %v640 = vld [vmem:[%s306 + $0x6f8] sm:$0xff]
        %v641 = vld [vmem:[%s306 + $0x700] sm:$0xff]
        %v642 = vld [vmem:[%s306 + $0x708] sm:$0xff]
        %v643 = vld [vmem:[%s306 + $0x710] sm:$0xff]
        %v644 = vld [vmem:[%s306 + $0x718] sm:$0xff]
        %v645 = vld [vmem:[%s306 + $0x720] sm:$0xff]
        %v646 = vld [vmem:[%s306 + $0x728] sm:$0xff]
        %v647 = vld [vmem:[%s306 + $0x730] sm:$0xff]
        %v648 = vld [vmem:[%s306 + $0x738] sm:$0xff]
        %v649 = vld [vmem:[%s306 + $0x740] sm:$0xff]
        %v650 = vld [vmem:[%s306 + $0x748] sm:$0xff]
        %v651 = vld [vmem:[%s306 + $0x750] sm:$0xff]
        %v652 = vld [vmem:[%s306 + $0x758] sm:$0xff]
        %v653 = vld [vmem:[%s306 + $0x760] sm:$0xff]
        %v654 = vld [vmem:[%s306 + $0x768] sm:$0xff]
        %v655 = vld [vmem:[%s306 + $0x770] sm:$0xff]
        %v656 = vld [vmem:[%s306 + $0x778] sm:$0xff]
        %v657 = vld [vmem:[%s306 + $0x780] sm:$0xff]
        %v658 = vld [vmem:[%s306 + $0x788] sm:$0xff]
        %v659 = vld [vmem:[%s306 + $0x790] sm:$0xff]
        %v660 = vld [vmem:[%s306 + $0x798] sm:$0xff]
        %v661 = vld [vmem:[%s306 + $0x7a0] sm:$0xff]
        %v662 = vld [vmem:[%s306 + $0x7a8] sm:$0xff]
        %v663 = vld [vmem:[%s306 + $0x7b0] sm:$0xff]
        %v664 = vld [vmem:[%s306 + $0x7b8] sm:$0xff]
        %v665 = vld [vmem:[%s306 + $0x7c0] sm:$0xff]
        %v666 = vld [vmem:[%s306 + $0x7c8] sm:$0xff]
        %v667 = vld [vmem:[%s306 + $0x7d0] sm:$0xff]
        %v668 = vld [vmem:[%s306 + $0x7d8] sm:$0xff]
        %v669 = vld [vmem:[%s306 + $0x7e0] sm:$0xff]
        %v670 = vld [vmem:[%s306 + $0x7e8] sm:$0xff]
        %v671 = vld [vmem:[%s306 + $0x7f0] sm:$0xff]
        %v672 = vld [vmem:[%s306 + $0x7f8] sm:$0xff]
        %v673 = vld [vmem:[%s306 + $0x800] sm:$0xff]
        %v674 = vld [vmem:[%s306 + $0x808] sm:$0xff]
        %v675 = vld [vmem:[%s306 + $0x810] sm:$0xff]
        %v676 = vld [vmem:[%s306 + $0x818] sm:$0xff]
        %v677 = vld [vmem:[%s306 + $0x820] sm:$0xff]
        %v678 = vld [vmem:[%s306 + $0x828] sm:$0xff]
        %v679 = vld [vmem:[%s306 + $0x830] sm:$0xff]
        %v680 = vld [vmem:[%s306 + $0x838] sm:$0xff]
        %v681 = vld [vmem:[%s306 + $0x840] sm:$0xff]
        %v682 = vld [vmem:[%s306 + $0x848] sm:$0xff]
        %v683 = vld [vmem:[%s306 + $0x850] sm:$0xff]
        %v684 = vld [vmem:[%s306 + $0x858] sm:$0xff]
        %v685 = vld [vmem:[%s306 + $0x860] sm:$0xff]
        %v686 = vld [vmem:[%s306 + $0x868] sm:$0xff]
        %v687 = vld [vmem:[%s306 + $0x870] sm:$0xff]
        %v688 = vld [vmem:[%s306 + $0x878] sm:$0xff]
        %v689 = vld [vmem:[%s306 + $0x880] sm:$0xff]
        %v690 = vld [vmem:[%s306 + $0x888] sm:$0xff]
        %v691 = vld [vmem:[%s306 + $0x890] sm:$0xff]
        %v692 = vld [vmem:[%s306 + $0x898] sm:$0xff]
        %v693 = vld [vmem:[%s306 + $0x8a0] sm:$0xff]
        %v694 = vld [vmem:[%s306 + $0x8a8] sm:$0xff]
        %v695 = vld [vmem:[%s306 + $0x8b0] sm:$0xff]
        %v696 = vld [vmem:[%s306 + $0x8b8] sm:$0xff]
        %v697 = vld [vmem:[%s306 + $0x8c0] sm:$0xff]
        %v698 = vld [vmem:[%s306 + $0x8c8] sm:$0xff]
        %v699 = vld [vmem:[%s306 + $0x8d0] sm:$0xff]
        %v700 = vld [vmem:[%s306 + $0x8d8] sm:$0xff]
        %v701 = vld [vmem:[%s306 + $0x8e0] sm:$0xff]
        %v702 = vld [vmem:[%s306 + $0x8e8] sm:$0xff]
        %v703 = vld [vmem:[%s306 + $0x8f0] sm:$0xff]
        %v704 = vld [vmem:[%s306 + $0x8f8] sm:$0xff]
        %v705 = vld [vmem:[%s306 + $0x900] sm:$0xff]
        %v706 = vld [vmem:[%s306 + $0x908] sm:$0xff]
        %v707 = vld [vmem:[%s306 + $0x910] sm:$0xff]
        %v708 = vld [vmem:[%s306 + $0x918] sm:$0xff]
        %v709 = vld [vmem:[%s306 + $0x920] sm:$0xff]
        %v710 = vld [vmem:[%s306 + $0x928] sm:$0xff]
        %v711 = vld [vmem:[%s306 + $0x930] sm:$0xff]
        %v712 = vld [vmem:[%s306 + $0x938] sm:$0xff]
        %v713 = vld [vmem:[%s306 + $0x940] sm:$0xff]
        %v714 = vld [vmem:[%s306 + $0x948] sm:$0xff]
        %v715 = vld [vmem:[%s306 + $0x950] sm:$0xff]
        %v716 = vld [vmem:[%s306 + $0x958] sm:$0xff]
        %v717 = vld [vmem:[%s306 + $0x960] sm:$0xff]
        %v718 = vld [vmem:[%s306 + $0x968] sm:$0xff]
        %v719 = vld [vmem:[%s306 + $0x970] sm:$0xff]
        %v720 = vld [vmem:[%s306 + $0x978] sm:$0xff]
        %v721 = vld [vmem:[%s306 + $0x980] sm:$0xff]
        %v722 = vld [vmem:[%s306 + $0x988] sm:$0xff]
        %v723 = vld [vmem:[%s306 + $0x990] sm:$0xff]
        %v724 = vld [vmem:[%s306 + $0x998] sm:$0xff]
        %v725 = vld [vmem:[%s306 + $0x9a0] sm:$0xff]
        %v726 = vld [vmem:[%s306 + $0x9a8] sm:$0xff]
        %v727 = vld [vmem:[%s306 + $0x9b0] sm:$0xff]
        %v728 = vld [vmem:[%s306 + $0x9b8] sm:$0xff]
        %v729 = vld [vmem:[%s306 + $0x9c0] sm:$0xff]
        %v730 = vld [vmem:[%s306 + $0x9c8] sm:$0xff]
        %v731 = vld [vmem:[%s306 + $0x9d0] sm:$0xff]
        %v732 = vld [vmem:[%s306 + $0x9d8] sm:$0xff]
        %v733 = vld [vmem:[%s306 + $0x9e0] sm:$0xff]
        %v734 = vld [vmem:[%s306 + $0x9e8] sm:$0xff]
        %v735 = vld [vmem:[%s306 + $0x9f0] sm:$0xff]
        %v736 = vld [vmem:[%s306 + $0x9f8] sm:$0xff]
        %v737 = vld [vmem:[%s306 + $0xa00] sm:$0xff]
        %v738 = vld [vmem:[%s306 + $0xa08] sm:$0xff]
        %v739 = vld [vmem:[%s306 + $0xa10] sm:$0xff]
        %v740 = vld [vmem:[%s306 + $0xa18] sm:$0xff]
        %v741 = vld [vmem:[%s306 + $0xa20] sm:$0xff]
        %v742 = vld [vmem:[%s306 + $0xa28] sm:$0xff]
        %v743 = vld [vmem:[%s306 + $0xa30] sm:$0xff]
        %v744 = vld [vmem:[%s306 + $0xa38] sm:$0xff]
        %v745 = vld [vmem:[%s306 + $0xa40] sm:$0xff]
        %v746 = vld [vmem:[%s306 + $0xa48] sm:$0xff]
        %v747 = vld [vmem:[%s306 + $0xa50] sm:$0xff]
        %v748 = vld [vmem:[%s306 + $0xa58] sm:$0xff]
        %v749 = vld [vmem:[%s306 + $0xa60] sm:$0xff]
        %v750 = vld [vmem:[%s306 + $0xa68] sm:$0xff]
        %v751 = vld [vmem:[%s306 + $0xa70] sm:$0xff]
        %v752 = vld [vmem:[%s306 + $0xa78] sm:$0xff]
        %v753 = vld [vmem:[%s306 + $0xa80] sm:$0xff]
        %v754 = vld [vmem:[%s306 + $0xa88] sm:$0xff]
        %v755 = vld [vmem:[%s306 + $0xa90] sm:$0xff]
        %v756 = vld [vmem:[%s306 + $0xa98] sm:$0xff]
        %v757 = vld [vmem:[%s306 + $0xaa0] sm:$0xff]
        %v758 = vld [vmem:[%s306 + $0xaa8] sm:$0xff]
        %v759 = vld [vmem:[%s306 + $0xab0] sm:$0xff]
        %v760 = vld [vmem:[%s306 + $0xab8] sm:$0xff]
        %v761 = vld [vmem:[%s306 + $0xac0] sm:$0xff]
        %v762 = vld [vmem:[%s306 + $0xac8] sm:$0xff]
        %v763 = vld [vmem:[%s306 + $0xad0] sm:$0xff]
        %v764 = vld [vmem:[%s306 + $0xad8] sm:$0xff]
        %v765 = vld [vmem:[%s306 + $0xae0] sm:$0xff]
        %v766 = vld [vmem:[%s306 + $0xae8] sm:$0xff]
        %v767 = vld [vmem:[%s306 + $0xaf0] sm:$0xff]
        %v768 = vld [vmem:[%s306 + $0xaf8] sm:$0xff]
        %v769 = vld [vmem:[%s306 + $0xb00] sm:$0xff]
        %v770 = vld [vmem:[%s306 + $0xb08] sm:$0xff]
        %v771 = vld [vmem:[%s306 + $0xb10] sm:$0xff]
        %v772 = vld [vmem:[%s306 + $0xb18] sm:$0xff]
        %v773 = vld [vmem:[%s306 + $0xb20] sm:$0xff]
        %v774 = vld [vmem:[%s306 + $0xb28] sm:$0xff]
        %v775 = vld [vmem:[%s306 + $0xb30] sm:$0xff]
        %v776 = vld [vmem:[%s306 + $0xb38] sm:$0xff]
        %v777 = vld [vmem:[%s306 + $0xb40] sm:$0xff]
        %v778 = vld [vmem:[%s306 + $0xb48] sm:$0xff]
        %v779 = vld [vmem:[%s306 + $0xb50] sm:$0xff]
        %v780 = vld [vmem:[%s306 + $0xb58] sm:$0xff]
        %v781 = vld [vmem:[%s306 + $0xb60] sm:$0xff]
        %v782 = vld [vmem:[%s306 + $0xb68] sm:$0xff]
        %v783 = vld [vmem:[%s306 + $0xb70] sm:$0xff]
        %v784 = vld [vmem:[%s306 + $0xb78] sm:$0xff]
        %v785 = vld [vmem:[%s306 + $0xb80] sm:$0xff]
        %v786 = vld [vmem:[%s306 + $0xb88] sm:$0xff]
        %v787 = vld [vmem:[%s306 + $0xb90] sm:$0xff]
        %v788 = vld [vmem:[%s306 + $0xb98] sm:$0xff]
        %v789 = vld [vmem:[%s306 + $0xba0] sm:$0xff]
        %v790 = vld [vmem:[%s306 + $0xba8] sm:$0xff]
        %v791 = vld [vmem:[%s306 + $0xbb0] sm:$0xff]
        %v792 = vld [vmem:[%s306 + $0xbb8] sm:$0xff]
        %v793 = vld [vmem:[%s306 + $0xbc0] sm:$0xff]
        %v794 = vld [vmem:[%s306 + $0xbc8] sm:$0xff]
        %v795 = vld [vmem:[%s306 + $0xbd0] sm:$0xff]
        %v796 = vld [vmem:[%s306 + $0xbd8] sm:$0xff]
        %v797 = vld [vmem:[%s306 + $0xbe0] sm:$0xff]
        %v798 = vld [vmem:[%s306 + $0xbe8] sm:$0xff]
        %v799 = vld [vmem:[%s306 + $0xbf0] sm:$0xff]
        %v800 = vld [vmem:[%s306 + $0xbf8] sm:$0xff]
        %v801 = vld [vmem:[%s306 + $0xc00] sm:$0xff]
        %v802 = vld [vmem:[%s306 + $0xc08] sm:$0xff]
        %v803 = vld [vmem:[%s306 + $0xc10] sm:$0xff]
        %v804 = vld [vmem:[%s306 + $0xc18] sm:$0xff]
        %v805 = vld [vmem:[%s306 + $0xc20] sm:$0xff]
        %v806 = vld [vmem:[%s306 + $0xc28] sm:$0xff]
        %v807 = vld [vmem:[%s306 + $0xc30] sm:$0xff]
        %v808 = vld [vmem:[%s306 + $0xc38] sm:$0xff]
        %v809 = vld [vmem:[%s306 + $0xc40] sm:$0xff]
        %v810 = vld [vmem:[%s306 + $0xc48] sm:$0xff]
        %v811 = vld [vmem:[%s306 + $0xc50] sm:$0xff]
        %v812 = vld [vmem:[%s306 + $0xc58] sm:$0xff]
        %v813 = vld [vmem:[%s306 + $0xc60] sm:$0xff]
        %v814 = vld [vmem:[%s306 + $0xc68] sm:$0xff]
        %v815 = vld [vmem:[%s306 + $0xc70] sm:$0xff]
        %v816 = vld [vmem:[%s306 + $0xc78] sm:$0xff]
        %v817 = vld [vmem:[%s306 + $0xc80] sm:$0xff]
        %v818 = vld [vmem:[%s306 + $0xc88] sm:$0xff]
        %v819 = vld [vmem:[%s306 + $0xc90] sm:$0xff]
        %v820 = vld [vmem:[%s306 + $0xc98] sm:$0xff]
        %v821 = vld [vmem:[%s306 + $0xca0] sm:$0xff]
        %v822 = vld [vmem:[%s306 + $0xca8] sm:$0xff]
        %v823 = vld [vmem:[%s306 + $0xcb0] sm:$0xff]
        %v824 = vld [vmem:[%s306 + $0xcb8] sm:$0xff]
        %v825 = vld [vmem:[%s306 + $0xcc0] sm:$0xff]
        %v826 = vld [vmem:[%s306 + $0xcc8] sm:$0xff]
        %v827 = vld [vmem:[%s306 + $0xcd0] sm:$0xff]
        %v828 = vld [vmem:[%s306 + $0xcd8] sm:$0xff]
        %v829 = vld [vmem:[%s306 + $0xce0] sm:$0xff]
        %v830 = vld [vmem:[%s306 + $0xce8] sm:$0xff]
        %v831 = vld [vmem:[%s306 + $0xcf0] sm:$0xff]
        %v832 = vld [vmem:[%s306 + $0xcf8] sm:$0xff]
        %v833 = vld [vmem:[%s306 + $0xd00] sm:$0xff]
        %v834 = vld [vmem:[%s306 + $0xd08] sm:$0xff]
        %v835 = vld [vmem:[%s306 + $0xd10] sm:$0xff]
        %v836 = vld [vmem:[%s306 + $0xd18] sm:$0xff]
        %v837 = vld [vmem:[%s306 + $0xd20] sm:$0xff]
        %v838 = vld [vmem:[%s306 + $0xd28] sm:$0xff]
        %v839 = vld [vmem:[%s306 + $0xd30] sm:$0xff]
        %v840 = vld [vmem:[%s306 + $0xd38] sm:$0xff]
        %v841 = vld [vmem:[%s306 + $0xd40] sm:$0xff]
        %v842 = vld [vmem:[%s306 + $0xd48] sm:$0xff]
        %v843 = vld [vmem:[%s306 + $0xd50] sm:$0xff]
        %v844 = vld [vmem:[%s306 + $0xd58] sm:$0xff]
        %v845 = vld [vmem:[%s306 + $0xd60] sm:$0xff]
        %v846 = vld [vmem:[%s306 + $0xd68] sm:$0xff]
        %v847 = vld [vmem:[%s306 + $0xd70] sm:$0xff]
        %v848 = vld [vmem:[%s306 + $0xd78] sm:$0xff]
        %v849 = vld [vmem:[%s306 + $0xd80] sm:$0xff]
        %v850 = vld [vmem:[%s306 + $0xd88] sm:$0xff]
        %v851 = vld [vmem:[%s306 + $0xd90] sm:$0xff]
        %v852 = vld [vmem:[%s306 + $0xd98] sm:$0xff]
        %v853 = vld [vmem:[%s306 + $0xda0] sm:$0xff]
        %v854 = vld [vmem:[%s306 + $0xda8] sm:$0xff]
        %v855 = vld [vmem:[%s306 + $0xdb0] sm:$0xff]
        %v856 = vld [vmem:[%s306 + $0xdb8] sm:$0xff]
        %v857 = vld [vmem:[%s306 + $0xdc0] sm:$0xff]
        %v858 = vld [vmem:[%s306 + $0xdc8] sm:$0xff]
        %v859 = vld [vmem:[%s306 + $0xdd0] sm:$0xff]
        %v860 = vld [vmem:[%s306 + $0xdd8] sm:$0xff]
        %v861 = vld [vmem:[%s306 + $0xde0] sm:$0xff]
        %v862 = vld [vmem:[%s306 + $0xde8] sm:$0xff]
        %v863 = vld [vmem:[%s306 + $0xdf0] sm:$0xff]
        %v864 = vld [vmem:[%s306 + $0xdf8] sm:$0xff]
        %v865 = vld [vmem:[%s306 + $0xe00] sm:$0xff]
        %v866 = vld [vmem:[%s306 + $0xe08] sm:$0xff]
        %v867 = vld [vmem:[%s306 + $0xe10] sm:$0xff]
        %v868 = vld [vmem:[%s306 + $0xe18] sm:$0xff]
        %v869 = vld [vmem:[%s306 + $0xe20] sm:$0xff]
        %v870 = vld [vmem:[%s306 + $0xe28] sm:$0xff]
        %v871 = vld [vmem:[%s306 + $0xe30] sm:$0xff]
        %v872 = vld [vmem:[%s306 + $0xe38] sm:$0xff]
        %v873 = vld [vmem:[%s306 + $0xe40] sm:$0xff]
        %v874 = vld [vmem:[%s306 + $0xe48] sm:$0xff]
        %v875 = vld [vmem:[%s306 + $0xe50] sm:$0xff]
        %v876 = vld [vmem:[%s306 + $0xe58] sm:$0xff]
        %v877 = vld [vmem:[%s306 + $0xe60] sm:$0xff]
        %v878 = vld [vmem:[%s306 + $0xe68] sm:$0xff]
        %v879 = vld [vmem:[%s306 + $0xe70] sm:$0xff]
        %v880 = vld [vmem:[%s306 + $0xe78] sm:$0xff]
        %v881 = vld [vmem:[%s306 + $0xe80] sm:$0xff]
        %v882 = vld [vmem:[%s306 + $0xe88] sm:$0xff]
        %v883 = vld [vmem:[%s306 + $0xe90] sm:$0xff]
        %v884 = vld [vmem:[%s306 + $0xe98] sm:$0xff]
        %v885 = vld [vmem:[%s306 + $0xea0] sm:$0xff]
        %v886 = vld [vmem:[%s306 + $0xea8] sm:$0xff]
        %v887 = vld [vmem:[%s306 + $0xeb0] sm:$0xff]
        %v888 = vld [vmem:[%s306 + $0xeb8] sm:$0xff]
        %v889 = vld [vmem:[%s306 + $0xec0] sm:$0xff]
        %v890 = vld [vmem:[%s306 + $0xec8] sm:$0xff]
        %v891 = vld [vmem:[%s306 + $0xed0] sm:$0xff]
        %v892 = vld [vmem:[%s306 + $0xed8] sm:$0xff]
        %v893 = vld [vmem:[%s306 + $0xee0] sm:$0xff]
        %v894 = vld [vmem:[%s306 + $0xee8] sm:$0xff]
        %v895 = vld [vmem:[%s306 + $0xef0] sm:$0xff]
        %v896 = vld [vmem:[%s306 + $0xef8] sm:$0xff]
        %v897 = vld [vmem:[%s306 + $0xf00] sm:$0xff]
        %v898 = vld [vmem:[%s306 + $0xf08] sm:$0xff]
        %v899 = vld [vmem:[%s306 + $0xf10] sm:$0xff]
        %v900 = vld [vmem:[%s306 + $0xf18] sm:$0xff]
        %v901 = vld [vmem:[%s306 + $0xf20] sm:$0xff]
        %v902 = vld [vmem:[%s306 + $0xf28] sm:$0xff]
        %v903 = vld [vmem:[%s306 + $0xf30] sm:$0xff]
        %v904 = vld [vmem:[%s306 + $0xf38] sm:$0xff]
        %v905 = vld [vmem:[%s306 + $0xf40] sm:$0xff]
        %v906 = vld [vmem:[%s306 + $0xf48] sm:$0xff]
        %v907 = vld [vmem:[%s306 + $0xf50] sm:$0xff]
        %v908 = vld [vmem:[%s306 + $0xf58] sm:$0xff]
        %v909 = vld [vmem:[%s306 + $0xf60] sm:$0xff]
        %v910 = vld [vmem:[%s306 + $0xf68] sm:$0xff]
        %v911 = vld [vmem:[%s306 + $0xf70] sm:$0xff]
        %v912 = vld [vmem:[%s306 + $0xf78] sm:$0xff]
        %v913 = vld [vmem:[%s306 + $0xf80] sm:$0xff]
        %v914 = vld [vmem:[%s306 + $0xf88] sm:$0xff]
        %v915 = vld [vmem:[%s306 + $0xf90] sm:$0xff]
        %v916 = vld [vmem:[%s306 + $0xf98] sm:$0xff]
        %v917 = vld [vmem:[%s306 + $0xfa0] sm:$0xff]
        %v918 = vld [vmem:[%s306 + $0xfa8] sm:$0xff]
        %v919 = vld [vmem:[%s306 + $0xfb0] sm:$0xff]
        %v920 = vld [vmem:[%s306 + $0xfb8] sm:$0xff]
        %v921 = vld [vmem:[%s306 + $0xfc0] sm:$0xff]
        %v922 = vld [vmem:[%s306 + $0xfc8] sm:$0xff]
        %v923 = vld [vmem:[%s306 + $0xfd0] sm:$0xff]
        %v924 = vld [vmem:[%s306 + $0xfd8] sm:$0xff]
        %v925 = vld [vmem:[%s306 + $0xfe0] sm:$0xff]
        %v926 = vld [vmem:[%s306 + $0xfe8] sm:$0xff]
        %v927 = vld [vmem:[%s306 + $0xff0] sm:$0xff]
        %v928 = vld [vmem:[%s306 + $0xff8] sm:$0xff]
        %v929 = vld [vmem:[%s306 + $0x1000] sm:$0xff]
        %v930 = vld [vmem:[%s306 + $0x1008] sm:$0xff]
        %v931 = vld [vmem:[%s306 + $0x1010] sm:$0xff]
        %v932 = vld [vmem:[%s306 + $0x1018] sm:$0xff]
        %v933 = vld [vmem:[%s306 + $0x1020] sm:$0xff]
        %v934 = vld [vmem:[%s306 + $0x1028] sm:$0xff]
        %v935 = vld [vmem:[%s306 + $0x1030] sm:$0xff]
        %v936 = vld [vmem:[%s306 + $0x1038] sm:$0xff]
        %v937 = vld [vmem:[%s306 + $0x1040] sm:$0xff]
        %v938 = vld [vmem:[%s306 + $0x1048] sm:$0xff]
        %v939 = vld [vmem:[%s306 + $0x1050] sm:$0xff]
        %v940 = vld [vmem:[%s306 + $0x1058] sm:$0xff]
        %v941 = vld [vmem:[%s306 + $0x1060] sm:$0xff]
        %v942 = vld [vmem:[%s306 + $0x1068] sm:$0xff]
        %v943 = vld [vmem:[%s306 + $0x1070] sm:$0xff]
        %v944 = vld [vmem:[%s306 + $0x1078] sm:$0xff]
        %v945 = vld [vmem:[%s306 + $0x1080] sm:$0xff]
        %v946 = vld [vmem:[%s306 + $0x1088] sm:$0xff]
        %v947 = vld [vmem:[%s306 + $0x1090] sm:$0xff]
        %v948 = vld [vmem:[%s306 + $0x1098] sm:$0xff]
        %v949 = vld [vmem:[%s306 + $0x10a0] sm:$0xff]
        %v950 = vld [vmem:[%s306 + $0x10a8] sm:$0xff]
        %v951 = vld [vmem:[%s306 + $0x10b0] sm:$0xff]
        %v952 = vld [vmem:[%s306 + $0x10b8] sm:$0xff]
        %v953 = vld [vmem:[%s306 + $0x10c0] sm:$0xff]
        %v954 = vld [vmem:[%s306 + $0x10c8] sm:$0xff]
        %v955 = vld [vmem:[%s306 + $0x10d0] sm:$0xff]
        %v956 = vld [vmem:[%s306 + $0x10d8] sm:$0xff]
        %v957 = vld [vmem:[%s306 + $0x10e0] sm:$0xff]
        %v958 = vld [vmem:[%s306 + $0x10e8] sm:$0xff]
        %v959 = vld [vmem:[%s306 + $0x10f0] sm:$0xff]
        %v960 = vld [vmem:[%s306 + $0x10f8] sm:$0xff]
        %v961 = vld [vmem:[%s306 + $0x1100] sm:$0xff]
        %v962 = vld [vmem:[%s306 + $0x1108] sm:$0xff]
        %v963 = vld [vmem:[%s306 + $0x1110] sm:$0xff]
        %v964 = vld [vmem:[%s306 + $0x1118] sm:$0xff]
        %v965 = vld [vmem:[%s306 + $0x1120] sm:$0xff]
        %v966 = vld [vmem:[%s306 + $0x1128] sm:$0xff]
        %v967 = vld [vmem:[%s306 + $0x1130] sm:$0xff]
        %v968 = vld [vmem:[%s306 + $0x1138] sm:$0xff]
        %v969 = vld [vmem:[%s306 + $0x1140] sm:$0xff]
        %v970 = vld [vmem:[%s306 + $0x1148] sm:$0xff]
        %v971 = vld [vmem:[%s306 + $0x1150] sm:$0xff]
        %v972 = vld [vmem:[%s306 + $0x1158] sm:$0xff]
        %v973 = vld [vmem:[%s306 + $0x1160] sm:$0xff]
        %v974 = vld [vmem:[%s306 + $0x1168] sm:$0xff]
        %v975 = vld [vmem:[%s306 + $0x1170] sm:$0xff]
        %v976 = vld [vmem:[%s306 + $0x1178] sm:$0xff]
        %v977 = vld [vmem:[%s306 + $0x1180] sm:$0xff]
        %v978 = vld [vmem:[%s306 + $0x1188] sm:$0xff]
        %v979 = vld [vmem:[%s306 + $0x1190] sm:$0xff]
        %v980 = vld [vmem:[%s306 + $0x1198] sm:$0xff]
        %v981 = vld [vmem:[%s306 + $0x11a0] sm:$0xff]
        %v982 = vld [vmem:[%s306 + $0x11a8] sm:$0xff]
        %v983 = vld [vmem:[%s306 + $0x11b0] sm:$0xff]
        %v984 = vld [vmem:[%s306 + $0x11b8] sm:$0xff]
        %v985 = vld [vmem:[%s306 + $0x11c0] sm:$0xff]
        %v986 = vld [vmem:[%s306 + $0x11c8] sm:$0xff]
        %v987 = vld [vmem:[%s306 + $0x11d0] sm:$0xff]
        %v988 = vld [vmem:[%s306 + $0x11d8] sm:$0xff]
        %v989 = vld [vmem:[%s306 + $0x11e0] sm:$0xff]
        %v990 = vld [vmem:[%s306 + $0x11e8] sm:$0xff]
        %v991 = vld [vmem:[%s306 + $0x11f0] sm:$0xff]
        %v992 = vld [vmem:[%s306 + $0x11f8] sm:$0xff]
        %v993 = vld [vmem:[%s306 + $0x1200] sm:$0xff]
        %v994 = vld [vmem:[%s306 + $0x1208] sm:$0xff]
        %v995 = vld [vmem:[%s306 + $0x1210] sm:$0xff]
        %v996 = vld [vmem:[%s306 + $0x1218] sm:$0xff]
        %v997 = vld [vmem:[%s306 + $0x1220] sm:$0xff]
        %v998 = vld [vmem:[%s306 + $0x1228] sm:$0xff]
        %v999 = vld [vmem:[%s306 + $0x1230] sm:$0xff]
        %v1000 = vld [vmem:[%s306 + $0x1238] sm:$0xff]
        %v1001 = vld [vmem:[%s306 + $0x1240] sm:$0xff]
        %v1002 = vld [vmem:[%s306 + $0x1248] sm:$0xff]
        %v1003 = vld [vmem:[%s306 + $0x1250] sm:$0xff]
        %v1004 = vld [vmem:[%s306 + $0x1258] sm:$0xff]
        %v1005 = vld [vmem:[%s306 + $0x1260] sm:$0xff]
        %v1006 = vld [vmem:[%s306 + $0x1268] sm:$0xff]
        %v1007 = vld [vmem:[%s306 + $0x1270] sm:$0xff]
        %v1008 = vld [vmem:[%s306 + $0x1278] sm:$0xff]
        %v1009 = vld [vmem:[%s306 + $0x1280] sm:$0xff]
        %v1010 = vld [vmem:[%s306 + $0x1288] sm:$0xff]
        %v1011 = vld [vmem:[%s306 + $0x1290] sm:$0xff]
        %v1012 = vld [vmem:[%s306 + $0x1298] sm:$0xff]
        %v1013 = vld [vmem:[%s306 + $0x12a0] sm:$0xff]
        %v1014 = vld [vmem:[%s306 + $0x12a8] sm:$0xff]
        %v1015 = vld [vmem:[%s306 + $0x12b0] sm:$0xff]
        %v1016 = vld [vmem:[%s306 + $0x12b8] sm:$0xff]
        %v1017 = vld [vmem:[%s306 + $0x12c0] sm:$0xff]
        %v1018 = vld [vmem:[%s306 + $0x12c8] sm:$0xff]
        %v1019 = vld [vmem:[%s306 + $0x12d0] sm:$0xff]
        %v1020 = vld [vmem:[%s306 + $0x12d8] sm:$0xff]
        %v1021 = vld [vmem:[%s306 + $0x12e0] sm:$0xff]
        %v1022 = vld [vmem:[%s306 + $0x12e8] sm:$0xff]
        %v1023 = vld [vmem:[%s306 + $0x12f0] sm:$0xff]
        %v1024 = vld [vmem:[%s306 + $0x12f8] sm:$0xff]
        %v1025 = vld [vmem:[%s306 + $0x1300] sm:$0xff]
        %v1026 = vld [vmem:[%s306 + $0x1308] sm:$0xff]
        %v1027 = vld [vmem:[%s306 + $0x1310] sm:$0xff]
        %v1028 = vld [vmem:[%s306 + $0x1318] sm:$0xff]
        %v1029 = vld [vmem:[%s306 + $0x1320] sm:$0xff]
        %v1030 = vld [vmem:[%s306 + $0x1328] sm:$0xff]
        %v1031 = vld [vmem:[%s306 + $0x1330] sm:$0xff]
        %v1032 = vld [vmem:[%s306 + $0x1338] sm:$0xff]
        %v1033 = vld [vmem:[%s306 + $0x1340] sm:$0xff]
        %v1034 = vld [vmem:[%s306 + $0x1348] sm:$0xff]
        %v1035 = vld [vmem:[%s306 + $0x1350] sm:$0xff]
        %v1036 = vld [vmem:[%s306 + $0x1358] sm:$0xff]
        %v1037 = vld [vmem:[%s306 + $0x1360] sm:$0xff]
        %v1038 = vld [vmem:[%s306 + $0x1368] sm:$0xff]
        %v1039 = vld [vmem:[%s306 + $0x1370] sm:$0xff]
        %v1040 = vld [vmem:[%s306 + $0x1378] sm:$0xff]
        %v1041 = vld [vmem:[%s306 + $0x1380] sm:$0xff]
        %v1042 = vld [vmem:[%s306 + $0x1388] sm:$0xff]
        %v1043 = vld [vmem:[%s306 + $0x1390] sm:$0xff]
        %v1044 = vld [vmem:[%s306 + $0x1398] sm:$0xff]
        %v1045 = vld [vmem:[%s306 + $0x13a0] sm:$0xff]
        %v1046 = vld [vmem:[%s306 + $0x13a8] sm:$0xff]
        %v1047 = vld [vmem:[%s306 + $0x13b0] sm:$0xff]
        %v1048 = vld [vmem:[%s306 + $0x13b8] sm:$0xff]
        %v1049 = vld [vmem:[%s306 + $0x13c0] sm:$0xff]
        %v1050 = vld [vmem:[%s306 + $0x13c8] sm:$0xff]
        %v1051 = vld [vmem:[%s306 + $0x13d0] sm:$0xff]
        %v1052 = vld [vmem:[%s306 + $0x13d8] sm:$0xff]
        %v1053 = vld [vmem:[%s306 + $0x13e0] sm:$0xff]
        %v1054 = vld [vmem:[%s306 + $0x13e8] sm:$0xff]
        %v1055 = vld [vmem:[%s306 + $0x13f0] sm:$0xff]
        %v1056 = vld [vmem:[%s306 + $0x13f8] sm:$0xff]
        %v1057 = vld [vmem:[%s306 + $0x1400] sm:$0xff]
        %v1058 = vld [vmem:[%s306 + $0x1408] sm:$0xff]
        %v1059 = vld [vmem:[%s306 + $0x1410] sm:$0xff]
        %v1060 = vld [vmem:[%s306 + $0x1418] sm:$0xff]
        %v1061 = vld [vmem:[%s306 + $0x1420] sm:$0xff]
        %v1062 = vld [vmem:[%s306 + $0x1428] sm:$0xff]
        %v1063 = vld [vmem:[%s306 + $0x1430] sm:$0xff]
        %v1064 = vld [vmem:[%s306 + $0x1438] sm:$0xff]
        %v1065 = vld [vmem:[%s306 + $0x1440] sm:$0xff]
        %v1066 = vld [vmem:[%s306 + $0x1448] sm:$0xff]
        %v1067 = vld [vmem:[%s306 + $0x1450] sm:$0xff]
        %v1068 = vld [vmem:[%s306 + $0x1458] sm:$0xff]
        %v1069 = vld [vmem:[%s306 + $0x1460] sm:$0xff]
        %v1070 = vld [vmem:[%s306 + $0x1468] sm:$0xff]
        %v1071 = vld [vmem:[%s306 + $0x1470] sm:$0xff]
        %v1072 = vld [vmem:[%s306 + $0x1478] sm:$0xff]
        %v1073 = vld [vmem:[%s306 + $0x1480] sm:$0xff]
        %v1074 = vld [vmem:[%s306 + $0x1488] sm:$0xff]
        %v1075 = vld [vmem:[%s306 + $0x1490] sm:$0xff]
        %v1076 = vld [vmem:[%s306 + $0x1498] sm:$0xff]
        %v1077 = vld [vmem:[%s306 + $0x14a0] sm:$0xff]
        %v1078 = vld [vmem:[%s306 + $0x14a8] sm:$0xff]
        %v1079 = vld [vmem:[%s306 + $0x14b0] sm:$0xff]
        %v1080 = vld [vmem:[%s306 + $0x14b8] sm:$0xff]
        %v1081 = vld [vmem:[%s306 + $0x14c0] sm:$0xff]
        %v1082 = vld [vmem:[%s306 + $0x14c8] sm:$0xff]
        %v1083 = vld [vmem:[%s306 + $0x14d0] sm:$0xff]
        %v1084 = vld [vmem:[%s306 + $0x14d8] sm:$0xff]
        %v1085 = vld [vmem:[%s306 + $0x14e0] sm:$0xff]
        %v1086 = vld [vmem:[%s306 + $0x14e8] sm:$0xff]
        %v1087 = vld [vmem:[%s306 + $0x14f0] sm:$0xff]
        %v1088 = vld [vmem:[%s306 + $0x14f8] sm:$0xff]
        %v1089 = vld [vmem:[%s306 + $0x1500] sm:$0xff]
        %v1090 = vld [vmem:[%s306 + $0x1508] sm:$0xff]
        %v1091 = vld [vmem:[%s306 + $0x1510] sm:$0xff]
        %v1092 = vld [vmem:[%s306 + $0x1518] sm:$0xff]
        %v1093 = vld [vmem:[%s306 + $0x1520] sm:$0xff]
        %v1094 = vld [vmem:[%s306 + $0x1528] sm:$0xff]
        %v1095 = vld [vmem:[%s306 + $0x1530] sm:$0xff]
        %v1096 = vld [vmem:[%s306 + $0x1538] sm:$0xff]
        %v1097 = vld [vmem:[%s306 + $0x1540] sm:$0xff]
        %v1098 = vld [vmem:[%s306 + $0x1548] sm:$0xff]
        %v1099 = vld [vmem:[%s306 + $0x1550] sm:$0xff]
        %v1100 = vld [vmem:[%s306 + $0x1558] sm:$0xff]
        %v1101 = vld [vmem:[%s306 + $0x1560] sm:$0xff]
        %v1102 = vld [vmem:[%s306 + $0x1568] sm:$0xff]
        %v1103 = vld [vmem:[%s306 + $0x1570] sm:$0xff]
        %v1104 = vld [vmem:[%s306 + $0x1578] sm:$0xff]
        %v1105 = vld [vmem:[%s306 + $0x1580] sm:$0xff]
        %v1106 = vld [vmem:[%s306 + $0x1588] sm:$0xff]
        %v1107 = vld [vmem:[%s306 + $0x1590] sm:$0xff]
        %v1108 = vld [vmem:[%s306 + $0x1598] sm:$0xff]
        %v1109 = vld [vmem:[%s306 + $0x15a0] sm:$0xff]
        %v1110 = vld [vmem:[%s306 + $0x15a8] sm:$0xff]
        %v1111 = vld [vmem:[%s306 + $0x15b0] sm:$0xff]
        %v1112 = vld [vmem:[%s306 + $0x15b8] sm:$0xff]
        %v1113 = vld [vmem:[%s306 + $0x15c0] sm:$0xff]
        %v1114 = vld [vmem:[%s306 + $0x15c8] sm:$0xff]
        %v1115 = vld [vmem:[%s306 + $0x15d0] sm:$0xff]
        %v1116 = vld [vmem:[%s306 + $0x15d8] sm:$0xff]
        %v1117 = vld [vmem:[%s306 + $0x15e0] sm:$0xff]
        %v1118 = vld [vmem:[%s306 + $0x15e8] sm:$0xff]
        %v1119 = vld [vmem:[%s306 + $0x15f0] sm:$0xff]
        %v1120 = vld [vmem:[%s306 + $0x15f8] sm:$0xff]
        %v1121 = vld [vmem:[%s306 + $0x1600] sm:$0xff]
        %v1122 = vld [vmem:[%s306 + $0x1608] sm:$0xff]
        %v1123 = vld [vmem:[%s306 + $0x1610] sm:$0xff]
        %v1124 = vld [vmem:[%s306 + $0x1618] sm:$0xff]
        %v1125 = vld [vmem:[%s306 + $0x1620] sm:$0xff]
        %v1126 = vld [vmem:[%s306 + $0x1628] sm:$0xff]
        %v1127 = vld [vmem:[%s306 + $0x1630] sm:$0xff]
        %v1128 = vld [vmem:[%s306 + $0x1638] sm:$0xff]
        %v1129 = vld [vmem:[%s306 + $0x1640] sm:$0xff]
        %v1130 = vld [vmem:[%s306 + $0x1648] sm:$0xff]
        %v1131 = vld [vmem:[%s306 + $0x1650] sm:$0xff]
        %v1132 = vld [vmem:[%s306 + $0x1658] sm:$0xff]
        %v1133 = vld [vmem:[%s306 + $0x1660] sm:$0xff]
        %v1134 = vld [vmem:[%s306 + $0x1668] sm:$0xff]
        %v1135 = vld [vmem:[%s306 + $0x1670] sm:$0xff]
        %v1136 = vld [vmem:[%s306 + $0x1678] sm:$0xff]
        %v1137 = vld [vmem:[%s306 + $0x1680] sm:$0xff]
        %v1138 = vld [vmem:[%s306 + $0x1688] sm:$0xff]
        %v1139 = vld [vmem:[%s306 + $0x1690] sm:$0xff]
        %v1140 = vld [vmem:[%s306 + $0x1698] sm:$0xff]
        %v1141 = vld [vmem:[%s306 + $0x16a0] sm:$0xff]
        %v1142 = vld [vmem:[%s306 + $0x16a8] sm:$0xff]
        %v1143 = vld [vmem:[%s306 + $0x16b0] sm:$0xff]
        %v1144 = vld [vmem:[%s306 + $0x16b8] sm:$0xff]
        %v1145 = vld [vmem:[%s306 + $0x16c0] sm:$0xff]
        %v1146 = vld [vmem:[%s306 + $0x16c8] sm:$0xff]
        %v1147 = vld [vmem:[%s306 + $0x16d0] sm:$0xff]
        %v1148 = vld [vmem:[%s306 + $0x16d8] sm:$0xff]
        %v1149 = vld [vmem:[%s306 + $0x16e0] sm:$0xff]
        %v1150 = vld [vmem:[%s306 + $0x16e8] sm:$0xff]
        %v1151 = vld [vmem:[%s306 + $0x16f0] sm:$0xff]
        %v1152 = vld [vmem:[%s306 + $0x16f8] sm:$0xff]
        %v1153 = vld [vmem:[%s306 + $0x1700] sm:$0xff]
        %v1154 = vld [vmem:[%s306 + $0x1708] sm:$0xff]
        %v1155 = vld [vmem:[%s306 + $0x1710] sm:$0xff]
        %v1156 = vld [vmem:[%s306 + $0x1718] sm:$0xff]
        %v1157 = vld [vmem:[%s306 + $0x1720] sm:$0xff]
        %v1158 = vld [vmem:[%s306 + $0x1728] sm:$0xff]
        %v1159 = vld [vmem:[%s306 + $0x1730] sm:$0xff]
        %v1160 = vld [vmem:[%s306 + $0x1738] sm:$0xff]
        %v1161 = vld [vmem:[%s306 + $0x1740] sm:$0xff]
        %v1162 = vld [vmem:[%s306 + $0x1748] sm:$0xff]
        %v1163 = vld [vmem:[%s306 + $0x1750] sm:$0xff]
        %v1164 = vld [vmem:[%s306 + $0x1758] sm:$0xff]
        %v1165 = vld [vmem:[%s306 + $0x1760] sm:$0xff]
        %v1166 = vld [vmem:[%s306 + $0x1768] sm:$0xff]
        %v1167 = vld [vmem:[%s306 + $0x1770] sm:$0xff]
        %v1168 = vld [vmem:[%s306 + $0x1778] sm:$0xff]
        %v1169 = vld [vmem:[%s306 + $0x1780] sm:$0xff]
        %v1170 = vld [vmem:[%s306 + $0x1788] sm:$0xff]
        %v1171 = vld [vmem:[%s306 + $0x1790] sm:$0xff]
        %v1172 = vld [vmem:[%s306 + $0x1798] sm:$0xff]
        %v1173 = vld [vmem:[%s306 + $0x17a0] sm:$0xff]
        %v1174 = vld [vmem:[%s306 + $0x17a8] sm:$0xff]
        %v1175 = vld [vmem:[%s306 + $0x17b0] sm:$0xff]
        %v1176 = vld [vmem:[%s306 + $0x17b8] sm:$0xff]
        %v1177 = vld [vmem:[%s306 + $0x17c0] sm:$0xff]
        %v1178 = vld [vmem:[%s306 + $0x17c8] sm:$0xff]
        %v1179 = vld [vmem:[%s306 + $0x17d0] sm:$0xff]
        %v1180 = vld [vmem:[%s306 + $0x17d8] sm:$0xff]
        %v1181 = vld [vmem:[%s306 + $0x17e0] sm:$0xff]
        %v1182 = vld [vmem:[%s306 + $0x17e8] sm:$0xff]
        %v1183 = vld [vmem:[%s306 + $0x17f0] sm:$0xff]
        %v1184 = vld [vmem:[%s306 + $0x17f8] sm:$0xff]
        %v1185 = vld [vmem:[%s315] sm:$0xff]
        %v1187 = vlaneseq
        %v1188 = vshrl.u32 %v1187, 7
        %v1189 = vsub.s32 0, %v1188
        %v1190 = vrot.slane %v1185, %v1189
        %v1191 = vlaneseq
        %v1192 = vshrl.u32 %v1191, 7
        %v1193 = vsub.s32 1, %v1192
        %v1194 = vrot.slane %v1185, %v1193
        %v1195 = vlaneseq
        %v1196 = vshrl.u32 %v1195, 7
        %v1197 = vsub.s32 2, %v1196
        %v1198 = vrot.slane %v1185, %v1197
        %v1199 = vlaneseq
        %v1200 = vshrl.u32 %v1199, 7
        %v1201 = vsub.s32 3, %v1200
        %v1202 = vrot.slane %v1185, %v1201
        %v1203 = vlaneseq
        %v1204 = vshrl.u32 %v1203, 7
        %v1205 = vsub.s32 4, %v1204
        %v1206 = vrot.slane %v1185, %v1205
        %v1207 = vlaneseq
        %v1208 = vshrl.u32 %v1207, 7
        %v1209 = vsub.s32 5, %v1208
        %v1210 = vrot.slane %v1185, %v1209
        %v1211 = vlaneseq
        %v1212 = vshrl.u32 %v1211, 7
        %v1213 = vsub.s32 6, %v1212
        %v1214 = vrot.slane %v1185, %v1213
        %v1215 = vlaneseq
        %v1216 = vshrl.u32 %v1215, 7
        %v1217 = vsub.s32 7, %v1216
        %v1218 = vrot.slane %v1185, %v1217
        %1227 = vmatprep.subr.mxu0 %v418
        %1228 = vmatpush1.msra.mxu0 %v417
        %1229 = vmatprep.subr.mxu0 %v426
        %1230 = vmatpush1.msra.mxu0 %v425
        %1231 = vmatprep.subr.mxu0 %v434
        %1232 = vmatpush1.msra.mxu0 %v433
        %1233 = vmatprep.subr.mxu0 %v442
        %1234 = vmatpush1.msra.mxu0 %v441
        %1235 = vmatprep.subr.mxu0 %v450
        %1236 = vmatpush1.msra.mxu0 %v449
        %1237 = vmatprep.subr.mxu0 %v458
        %1238 = vmatpush1.msra.mxu0 %v457
        %1239 = vmatprep.subr.mxu0 %v466
        %1240 = vmatpush1.msra.mxu0 %v465
        %1241 = vmatprep.subr.mxu0 %v474
        %1242 = vmatpush1.msra.mxu0 %v473
        %1243 = vmatprep.subr.mxu0 %v482
        %1244 = vmatpush1.msra.mxu0 %v481
        %1245 = vmatprep.subr.mxu0 %v490
        %1246 = vmatpush1.msra.mxu0 %v489
        %1247 = vmatprep.subr.mxu0 %v498
        %1248 = vmatpush1.msra.mxu0 %v497
        %1249 = vmatprep.subr.mxu0 %v506
        %1250 = vmatpush1.msra.mxu0 %v505
        %1251 = vmatprep.subr.mxu0 %v514
        %1252 = vmatpush1.msra.mxu0 %v513
        %1253 = vmatprep.subr.mxu0 %v522
        %1254 = vmatpush1.msra.mxu0 %v521
        %1255 = vmatprep.subr.mxu0 %v530
        %1256 = vmatpush1.msra.mxu0 %v529
        %1257 = vmatprep.subr.mxu0 %v538
        %1258 = vmatpush1.msra.mxu0 %v537
        %1259 = vmatprep.subr.mxu0 %v546
        %1260 = vmatpush1.msra.mxu0 %v545
        %1261 = vmatprep.subr.mxu0 %v554
        %1262 = vmatpush1.msra.mxu0 %v553
        %1263 = vmatprep.subr.mxu0 %v562
        %1264 = vmatpush1.msra.mxu0 %v561
        %1265 = vmatprep.subr.mxu0 %v570
        %1266 = vmatpush1.msra.mxu0 %v569
        %1267 = vmatprep.subr.mxu0 %v578
        %1268 = vmatpush1.msra.mxu0 %v577
        %1269 = vmatprep.subr.mxu0 %v586
        %1270 = vmatpush1.msra.mxu0 %v585
        %1271 = vmatprep.subr.mxu0 %v594
        %1272 = vmatpush1.msra.mxu0 %v593
        %1273 = vmatprep.subr.mxu0 %v602
        %1274 = vmatpush1.msra.mxu0 %v601
        %1275 = vmatprep.subr.mxu0 %v610
        %1276 = vmatpush1.msra.mxu0 %v609
        %1277 = vmatprep.subr.mxu0 %v618
        %1278 = vmatpush1.msra.mxu0 %v617
        %1279 = vmatprep.subr.mxu0 %v626
        %1280 = vmatpush1.msra.mxu0 %v625
        %1281 = vmatprep.subr.mxu0 %v634
        %1282 = vmatpush1.msra.mxu0 %v633
        %1283 = vmatprep.subr.mxu0 %v642
        %1284 = vmatpush1.msra.mxu0 %v641
        %1285 = vmatprep.subr.mxu0 %v650
        %1286 = vmatpush1.msra.mxu0 %v649
        %1287 = vmatprep.subr.mxu0 %v658
        %1288 = vmatpush1.msra.mxu0 %v657
        %1289 = vmatprep.subr.mxu0 %v666
        %1290 = vmatpush1.msra.mxu0 %v665
        %1291 = vmatprep.mubr.f32.mxu0 %v394
        %1292 = vmatmul.mubr.f32.gmra.mrb[0].mxu0 %v393
        %v1293 = vpop.f32.mrb[0].mxu0
        %v1294 = vadd.f32 %v1190, %v1293
        %v1295 = vpop.f32.mrb[0].mxu0
        %v1296 = vadd.f32 %v1194, %v1295
        %1297 = vmatprep.mubr.f32.mxu0 %v400
        %1298 = vmatmul.mubr.f32.gmra.mrb[0].mxu0 %v399
        %v1299 = vpop.f32.mrb[0].mxu0
        %v1300 = vadd.f32 %v1190, %v1299
        %v1301 = vpop.f32.mrb[0].mxu0
        %v1302 = vadd.f32 %v1194, %v1301
        %1303 = vmatprep.mubr.f32.mxu0 %v406
        %1304 = vmatmul.mubr.f32.gmra.mrb[0].mxu0 %v405
        %v1305 = vpop.f32.mrb[0].mxu0
        %v1306 = vadd.f32 %v1190, %v1305
        %v1307 = vpop.f32.mrb[0].mxu0
        %v1308 = vadd.f32 %v1194, %v1307
        %1309 = vmatprep.mubr.f32.mxu0 %v412
        %1310 = vmatmul.mubr.f32.gmra.mrb[0].mxu0 %v411
        %v1311 = vpop.f32.mrb[0].mxu0
        %v1312 = vadd.f32 %v1190, %v1311
        %v1313 = vpop.f32.mrb[0].mxu0
        %v1314 = vadd.f32 %v1194, %v1313
        %1315 = vdwg.mxu0
        %1316 = vmatprep.subr.mxu0 %v674
        %1317 = vmatpush1.msra.mxu0 %v673
        %1318 = vmatprep.subr.mxu0 %v682
        %1319 = vmatpush1.msra.mxu0 %v681
        %1320 = vmatprep.subr.mxu0 %v690
        %1321 = vmatpush1.msra.mxu0 %v689
        %1322 = vmatprep.subr.mxu0 %v698
        %1323 = vmatpush1.msra.mxu0 %v697
        %1324 = vmatprep.subr.mxu0 %v706
        %1325 = vmatpush1.msra.mxu0 %v705
        %1326 = vmatprep.subr.mxu0 %v714
        %1327 = vmatpush1.msra.mxu0 %v713
        %1328 = vmatprep.subr.mxu0 %v722
        %1329 = vmatpush1.msra.mxu0 %v721
        %1330 = vmatprep.subr.mxu0 %v730
        %1331 = vmatpush1.msra.mxu0 %v729
        %1332 = vmatprep.subr.mxu0 %v738
        %1333 = vmatpush1.msra.mxu0 %v737
        %1334 = vmatprep.subr.mxu0 %v746
        %1335 = vmatpush1.msra.mxu0 %v745
        %1336 = vmatprep.subr.mxu0 %v754
        %1337 = vmatpush1.msra.mxu0 %v753
        %1338 = vmatprep.subr.mxu0 %v762
        %1339 = vmatpush1.msra.mxu0 %v761
        %1340 = vmatprep.subr.mxu0 %v770
        %1341 = vmatpush1.msra.mxu0 %v769
        %1342 = vmatprep.subr.mxu0 %v778
        %1343 = vmatpush1.msra.mxu0 %v777
        %1344 = vmatprep.subr.mxu0 %v786
        %1345 = vmatpush1.msra.mxu0 %v785
        %1346 = vmatprep.subr.mxu0 %v794
        %1347 = vmatpush1.msra.mxu0 %v793
        %1348 = vmatprep.subr.mxu0 %v802
        %1349 = vmatpush1.msra.mxu0 %v801
        %1350 = vmatprep.subr.mxu0 %v810
        %1351 = vmatpush1.msra.mxu0 %v809
        %1352 = vmatprep.subr.mxu0 %v818
        %1353 = vmatpush1.msra.mxu0 %v817
        %1354 = vmatprep.subr.mxu0 %v826
        %1355 = vmatpush1.msra.mxu0 %v825
        %1356 = vmatprep.subr.mxu0 %v834
        %1357 = vmatpush1.msra.mxu0 %v833
        %1358 = vmatprep.subr.mxu0 %v842
        %1359 = vmatpush1.msra.mxu0 %v841
        %1360 = vmatprep.subr.mxu0 %v850
        %1361 = vmatpush1.msra.mxu0 %v849
        %1362 = vmatprep.subr.mxu0 %v858
        %1363 = vmatpush1.msra.mxu0 %v857
        %1364 = vmatprep.subr.mxu0 %v866
        %1365 = vmatpush1.msra.mxu0 %v865
        %1366 = vmatprep.subr.mxu0 %v874
        %1367 = vmatpush1.msra.mxu0 %v873
        %1368 = vmatprep.subr.mxu0 %v882
        %1369 = vmatpush1.msra.mxu0 %v881
        %1370 = vmatprep.subr.mxu0 %v890
        %1371 = vmatpush1.msra.mxu0 %v889
        %1372 = vmatprep.subr.mxu0 %v898
        %1373 = vmatpush1.msra.mxu0 %v897
        %1374 = vmatprep.subr.mxu0 %v906
        %1375 = vmatpush1.msra.mxu0 %v905
        %1376 = vmatprep.subr.mxu0 %v914
        %1377 = vmatpush1.msra.mxu0 %v913
        %1378 = vmatprep.subr.mxu0 %v922
        %1379 = vmatpush1.msra.mxu0 %v921
        %1380 = vmatprep.mubr.f32.mxu0 %v396
        %1381 = vmatmul.mubr.f32.gmra.mrb[0].mxu0 %v395
        %v1382 = vpop.f32.mrb[0].mxu0
        %v1383 = vadd.f32 %v1294, %v1382
        %v1384 = vpop.f32.mrb[0].mxu0
        %v1385 = vadd.f32 %v1296, %v1384
        %1386 = vmatprep.mubr.f32.mxu0 %v402
        %1387 = vmatmul.mubr.f32.gmra.mrb[0].mxu0 %v401
        %v1388 = vpop.f32.mrb[0].mxu0
        %v1389 = vadd.f32 %v1300, %v1388
        %v1390 = vpop.f32.mrb[0].mxu0
        %v1391 = vadd.f32 %v1302, %v1390
        %1392 = vmatprep.mubr.f32.mxu0 %v408
        %1393 = vmatmul.mubr.f32.gmra.mrb[0].mxu0 %v407
        %v1394 = vpop.f32.mrb[0].mxu0
        %v1395 = vadd.f32 %v1306, %v1394
        %v1396 = vpop.f32.mrb[0].mxu0
        %v1397 = vadd.f32 %v1308, %v1396
        %1398 = vmatprep.mubr.f32.mxu0 %v414
        %1399 = vmatmul.mubr.f32.gmra.mrb[0].mxu0 %v413
        %v1400 = vpop.f32.mrb[0].mxu0
        %v1401 = vadd.f32 %v1312, %v1400
        %v1402 = vpop.f32.mrb[0].mxu0
        %v1403 = vadd.f32 %v1314, %v1402
        %1404 = vdwg.mxu0
        %1405 = vmatprep.subr.mxu0 %v930
        %1406 = vmatpush1.msra.mxu0 %v929
        %1407 = vmatprep.subr.mxu0 %v938
        %1408 = vmatpush1.msra.mxu0 %v937
        %1409 = vmatprep.subr.mxu0 %v946
        %1410 = vmatpush1.msra.mxu0 %v945
        %1411 = vmatprep.subr.mxu0 %v954
        %1412 = vmatpush1.msra.mxu0 %v953
        %1413 = vmatprep.subr.mxu0 %v962
        %1414 = vmatpush1.msra.mxu0 %v961
        %1415 = vmatprep.subr.mxu0 %v970
        %1416 = vmatpush1.msra.mxu0 %v969
        %1417 = vmatprep.subr.mxu0 %v978
        %1418 = vmatpush1.msra.mxu0 %v977
        %1419 = vmatprep.subr.mxu0 %v986
        %1420 = vmatpush1.msra.mxu0 %v985
        %1421 = vmatprep.subr.mxu0 %v994
        %1422 = vmatpush1.msra.mxu0 %v993
        %1423 = vmatprep.subr.mxu0 %v1002
        %1424 = vmatpush1.msra.mxu0 %v1001
        %1425 = vmatprep.subr.mxu0 %v1010
        %1426 = vmatpush1.msra.mxu0 %v1009
        %1427 = vmatprep.subr.mxu0 %v1018
        %1428 = vmatpush1.msra.mxu0 %v1017
        %1429 = vmatprep.subr.mxu0 %v1026
        %1430 = vmatpush1.msra.mxu0 %v1025
        %1431 = vmatprep.subr.mxu0 %v1034
        %1432 = vmatpush1.msra.mxu0 %v1033
        %1433 = vmatprep.subr.mxu0 %v1042
        %1434 = vmatpush1.msra.mxu0 %v1041
        %1435 = vmatprep.subr.mxu0 %v1050
        %1436 = vmatpush1.msra.mxu0 %v1049
        %1437 = vmatprep.subr.mxu0 %v1058
        %1438 = vmatpush1.msra.mxu0 %v1057
        %1439 = vmatprep.subr.mxu0 %v1066
        %1440 = vmatpush1.msra.mxu0 %v1065
        %1441 = vmatprep.subr.mxu0 %v1074
        %1442 = vmatpush1.msra.mxu0 %v1073
        %1443 = vmatprep.subr.mxu0 %v1082
        %1444 = vmatpush1.msra.mxu0 %v1081
        %1445 = vmatprep.subr.mxu0 %v1090
        %1446 = vmatpush1.msra.mxu0 %v1089
        %1447 = vmatprep.subr.mxu0 %v1098
        %1448 = vmatpush1.msra.mxu0 %v1097
        %1449 = vmatprep.subr.mxu0 %v1106
        %1450 = vmatpush1.msra.mxu0 %v1105
        %1451 = vmatprep.subr.mxu0 %v1114
        %1452 = vmatpush1.msra.mxu0 %v1113
        %1453 = vmatprep.subr.mxu0 %v1122
        %1454 = vmatpush1.msra.mxu0 %v1121
        %1455 = vmatprep.subr.mxu0 %v1130
        %1456 = vmatpush1.msra.mxu0 %v1129
        %1457 = vmatprep.subr.mxu0 %v1138
        %1458 = vmatpush1.msra.mxu0 %v1137
        %1459 = vmatprep.subr.mxu0 %v1146
        %1460 = vmatpush1.msra.mxu0 %v1145
        %1461 = vmatprep.subr.mxu0 %v1154
        %1462 = vmatpush1.msra.mxu0 %v1153
        %1463 = vmatprep.subr.mxu0 %v1162
        %1464 = vmatpush1.msra.mxu0 %v1161
        %1465 = vmatprep.subr.mxu0 %v1170
        %1466 = vmatpush1.msra.mxu0 %v1169
        %1467 = vmatprep.subr.mxu0 %v1178
        %1468 = vmatpush1.msra.mxu0 %v1177
        %1469 = vmatprep.mubr.f32.mxu0 %v398
        %1470 = vmatmul.mubr.f32.gmra.mrb[0].mxu0 %v397
        %v1471 = vpop.f32.mrb[0].mxu0
        %v1472 = vadd.f32 %v1383, %v1471
        %v1473 = vpop.f32.mrb[0].mxu0
        %v1474 = vadd.f32 %v1385, %v1473
        %1475 = vmatprep.mubr.f32.mxu0 %v404
        %1476 = vmatmul.mubr.f32.gmra.mrb[0].mxu0 %v403
        %v1477 = vpop.f32.mrb[0].mxu0
        %v1478 = vadd.f32 %v1389, %v1477
        %v1479 = vpop.f32.mrb[0].mxu0
        %v1480 = vadd.f32 %v1391, %v1479
        %1481 = vmatprep.mubr.f32.mxu0 %v410
        %1482 = vmatmul.mubr.f32.gmra.mrb[0].mxu0 %v409
        %v1483 = vpop.f32.mrb[0].mxu0
        %v1484 = vadd.f32 %v1395, %v1483
        %v1485 = vpop.f32.mrb[0].mxu0
        %v1486 = vadd.f32 %v1397, %v1485
        %1487 = vmatprep.mubr.f32.mxu0 %v416
        %1488 = vmatmul.mubr.f32.gmra.mrb[0].mxu0 %v415
        %v1489 = vpop.f32.mrb[0].mxu0
        %v1490 = vadd.f32 %v1401, %v1489
        %v1491 = vpop.f32.mrb[0].mxu0
        %v1492 = vadd.f32 %v1403, %v1491
        %1493 = vdwg.mxu0
        %1494 = vmatprep.subr.mxu0 %v420
        %1495 = vmatpush1.msra.mxu0 %v419
        %1496 = vmatprep.subr.mxu0 %v428
        %1497 = vmatpush1.msra.mxu0 %v427
        %1498 = vmatprep.subr.mxu0 %v436
        %1499 = vmatpush1.msra.mxu0 %v435
        %1500 = vmatprep.subr.mxu0 %v444
        %1501 = vmatpush1.msra.mxu0 %v443
        %1502 = vmatprep.subr.mxu0 %v452
        %1503 = vmatpush1.msra.mxu0 %v451
        %1504 = vmatprep.subr.mxu0 %v460
        %1505 = vmatpush1.msra.mxu0 %v459
        %1506 = vmatprep.subr.mxu0 %v468
        %1507 = vmatpush1.msra.mxu0 %v467
        %1508 = vmatprep.subr.mxu0 %v476
        %1509 = vmatpush1.msra.mxu0 %v475
        %1510 = vmatprep.subr.mxu0 %v484
        %1511 = vmatpush1.msra.mxu0 %v483
        %1512 = vmatprep.subr.mxu0 %v492
        %1513 = vmatpush1.msra.mxu0 %v491
        %1514 = vmatprep.subr.mxu0 %v500
        %1515 = vmatpush1.msra.mxu0 %v499
        %1516 = vmatprep.subr.mxu0 %v508
        %1517 = vmatpush1.msra.mxu0 %v507
        %1518 = vmatprep.subr.mxu0 %v516
        %1519 = vmatpush1.msra.mxu0 %v515
        %1520 = vmatprep.subr.mxu0 %v524
        %1521 = vmatpush1.msra.mxu0 %v523
        %1522 = vmatprep.subr.mxu0 %v532
        %1523 = vmatpush1.msra.mxu0 %v531
        %1524 = vmatprep.subr.mxu0 %v540
        %1525 = vmatpush1.msra.mxu0 %v539
        %1526 = vmatprep.subr.mxu0 %v548
        %1527 = vmatpush1.msra.mxu0 %v547
        %1528 = vmatprep.subr.mxu0 %v556
        %1529 = vmatpush1.msra.mxu0 %v555
        %1530 = vmatprep.subr.mxu0 %v564
        %1531 = vmatpush1.msra.mxu0 %v563
        %1532 = vmatprep.subr.mxu0 %v572
        %1533 = vmatpush1.msra.mxu0 %v571
        %1534 = vmatprep.subr.mxu0 %v580
        %1535 = vmatpush1.msra.mxu0 %v579
        %1536 = vmatprep.subr.mxu0 %v588
        %1537 = vmatpush1.msra.mxu0 %v587
        %1538 = vmatprep.subr.mxu0 %v596
        %1539 = vmatpush1.msra.mxu0 %v595
        %1540 = vmatprep.subr.mxu0 %v604
        %1541 = vmatpush1.msra.mxu0 %v603
        %1542 = vmatprep.subr.mxu0 %v612
        %1543 = vmatpush1.msra.mxu0 %v611
        %1544 = vmatprep.subr.mxu0 %v620
        %1545 = vmatpush1.msra.mxu0 %v619
        %1546 = vmatprep.subr.mxu0 %v628
        %1547 = vmatpush1.msra.mxu0 %v627
        %1548 = vmatprep.subr.mxu0 %v636
        %1549 = vmatpush1.msra.mxu0 %v635
        %1550 = vmatprep.subr.mxu0 %v644
        %1551 = vmatpush1.msra.mxu0 %v643
        %1552 = vmatprep.subr.mxu0 %v652
        %1553 = vmatpush1.msra.mxu0 %v651
        %1554 = vmatprep.subr.mxu0 %v660
        %1555 = vmatpush1.msra.mxu0 %v659
        %1556 = vmatprep.subr.mxu0 %v668
        %1557 = vmatpush1.msra.mxu0 %v667
        %1558 = vmatprep.mubr.f32.mxu0 %v394
        %1559 = vmatmul.mubr.f32.gmra.mrb[0].mxu0 %v393
        %v1560 = vpop.f32.mrb[0].mxu0
        %v1561 = vadd.f32 %v1198, %v1560
        %v1562 = vpop.f32.mrb[0].mxu0
        %v1563 = vadd.f32 %v1202, %v1562
        %1564 = vmatprep.mubr.f32.mxu0 %v400
        %1565 = vmatmul.mubr.f32.gmra.mrb[0].mxu0 %v399
        %v1566 = vpop.f32.mrb[0].mxu0
        %v1567 = vadd.f32 %v1198, %v1566
        %v1568 = vpop.f32.mrb[0].mxu0
        %v1569 = vadd.f32 %v1202, %v1568
        %1570 = vmatprep.mubr.f32.mxu0 %v406
        %1571 = vmatmul.mubr.f32.gmra.mrb[0].mxu0 %v405
        %v1572 = vpop.f32.mrb[0].mxu0
        %v1573 = vadd.f32 %v1198, %v1572
        %v1574 = vpop.f32.mrb[0].mxu0
        %v1575 = vadd.f32 %v1202, %v1574
        %1576 = vmatprep.mubr.f32.mxu0 %v412
        %1577 = vmatmul.mubr.f32.gmra.mrb[0].mxu0 %v411
        %v1578 = vpop.f32.mrb[0].mxu0
        %v1579 = vadd.f32 %v1198, %v1578
        %v1580 = vpop.f32.mrb[0].mxu0
        %v1581 = vadd.f32 %v1202, %v1580
        %1582 = vdwg.mxu0
        %1583 = vmatprep.subr.mxu0 %v676
        %1584 = vmatpush1.msra.mxu0 %v675
        %1585 = vmatprep.subr.mxu0 %v684
        %1586 = vmatpush1.msra.mxu0 %v683
        %1587 = vmatprep.subr.mxu0 %v692
        %1588 = vmatpush1.msra.mxu0 %v691
        %1589 = vmatprep.subr.mxu0 %v700
        %1590 = vmatpush1.msra.mxu0 %v699
        %1591 = vmatprep.subr.mxu0 %v708
        %1592 = vmatpush1.msra.mxu0 %v707
        %1593 = vmatprep.subr.mxu0 %v716
        %1594 = vmatpush1.msra.mxu0 %v715
        %1595 = vmatprep.subr.mxu0 %v724
        %1596 = vmatpush1.msra.mxu0 %v723
        %1597 = vmatprep.subr.mxu0 %v732
        %1598 = vmatpush1.msra.mxu0 %v731
        %1599 = vmatprep.subr.mxu0 %v740
        %1600 = vmatpush1.msra.mxu0 %v739
        %1601 = vmatprep.subr.mxu0 %v748
        %1602 = vmatpush1.msra.mxu0 %v747
        %1603 = vmatprep.subr.mxu0 %v756
        %1604 = vmatpush1.msra.mxu0 %v755
        %1605 = vmatprep.subr.mxu0 %v764
        %1606 = vmatpush1.msra.mxu0 %v763
        %1607 = vmatprep.subr.mxu0 %v772
        %1608 = vmatpush1.msra.mxu0 %v771
        %1609 = vmatprep.subr.mxu0 %v780
        %1610 = vmatpush1.msra.mxu0 %v779
        %1611 = vmatprep.subr.mxu0 %v788
        %1612 = vmatpush1.msra.mxu0 %v787
        %1613 = vmatprep.subr.mxu0 %v796
        %1614 = vmatpush1.msra.mxu0 %v795
        %1615 = vmatprep.subr.mxu0 %v804
        %1616 = vmatpush1.msra.mxu0 %v803
        %1617 = vmatprep.subr.mxu0 %v812
        %1618 = vmatpush1.msra.mxu0 %v811
        %1619 = vmatprep.subr.mxu0 %v820
        %1620 = vmatpush1.msra.mxu0 %v819
        %1621 = vmatprep.subr.mxu0 %v828
        %1622 = vmatpush1.msra.mxu0 %v827
        %1623 = vmatprep.subr.mxu0 %v836
        %1624 = vmatpush1.msra.mxu0 %v835
        %1625 = vmatprep.subr.mxu0 %v844
        %1626 = vmatpush1.msra.mxu0 %v843
        %1627 = vmatprep.subr.mxu0 %v852
        %1628 = vmatpush1.msra.mxu0 %v851
        %1629 = vmatprep.subr.mxu0 %v860
        %1630 = vmatpush1.msra.mxu0 %v859
        %1631 = vmatprep.subr.mxu0 %v868
        %1632 = vmatpush1.msra.mxu0 %v867
        %1633 = vmatprep.subr.mxu0 %v876
        %1634 = vmatpush1.msra.mxu0 %v875
        %1635 = vmatprep.subr.mxu0 %v884
        %1636 = vmatpush1.msra.mxu0 %v883
        %1637 = vmatprep.subr.mxu0 %v892
        %1638 = vmatpush1.msra.mxu0 %v891
        %1639 = vmatprep.subr.mxu0 %v900
        %1640 = vmatpush1.msra.mxu0 %v899
        %1641 = vmatprep.subr.mxu0 %v908
        %1642 = vmatpush1.msra.mxu0 %v907
        %1643 = vmatprep.subr.mxu0 %v916
        %1644 = vmatpush1.msra.mxu0 %v915
        %1645 = vmatprep.subr.mxu0 %v924
        %1646 = vmatpush1.msra.mxu0 %v923
        %1647 = vmatprep.mubr.f32.mxu0 %v396
        %1648 = vmatmul.mubr.f32.gmra.mrb[0].mxu0 %v395
        %v1649 = vpop.f32.mrb[0].mxu0
        %v1650 = vadd.f32 %v1561, %v1649
        %v1651 = vpop.f32.mrb[0].mxu0
        %v1652 = vadd.f32 %v1563, %v1651
        %1653 = vmatprep.mubr.f32.mxu0 %v402
        %1654 = vmatmul.mubr.f32.gmra.mrb[0].mxu0 %v401
        %v1655 = vpop.f32.mrb[0].mxu0
        %v1656 = vadd.f32 %v1567, %v1655
        %v1657 = vpop.f32.mrb[0].mxu0
        %v1658 = vadd.f32 %v1569, %v1657
        %1659 = vmatprep.mubr.f32.mxu0 %v408
        %1660 = vmatmul.mubr.f32.gmra.mrb[0].mxu0 %v407
        %v1661 = vpop.f32.mrb[0].mxu0
        %v1662 = vadd.f32 %v1573, %v1661
        %v1663 = vpop.f32.mrb[0].mxu0
        %v1664 = vadd.f32 %v1575, %v1663
        %1665 = vmatprep.mubr.f32.mxu0 %v414
        %1666 = vmatmul.mubr.f32.gmra.mrb[0].mxu0 %v413
        %v1667 = vpop.f32.mrb[0].mxu0
        %v1668 = vadd.f32 %v1579, %v1667
        %v1669 = vpop.f32.mrb[0].mxu0
        %v1670 = vadd.f32 %v1581, %v1669
        %1671 = vdwg.mxu0
        %1672 = vmatprep.subr.mxu0 %v932
        %1673 = vmatpush1.msra.mxu0 %v931
        %1674 = vmatprep.subr.mxu0 %v940
        %1675 = vmatpush1.msra.mxu0 %v939
        %1676 = vmatprep.subr.mxu0 %v948
        %1677 = vmatpush1.msra.mxu0 %v947
        %1678 = vmatprep.subr.mxu0 %v956
        %1679 = vmatpush1.msra.mxu0 %v955
        %1680 = vmatprep.subr.mxu0 %v964
        %1681 = vmatpush1.msra.mxu0 %v963
        %1682 = vmatprep.subr.mxu0 %v972
        %1683 = vmatpush1.msra.mxu0 %v971
        %1684 = vmatprep.subr.mxu0 %v980
        %1685 = vmatpush1.msra.mxu0 %v979
        %1686 = vmatprep.subr.mxu0 %v988
        %1687 = vmatpush1.msra.mxu0 %v987
        %1688 = vmatprep.subr.mxu0 %v996
        %1689 = vmatpush1.msra.mxu0 %v995
        %1690 = vmatprep.subr.mxu0 %v1004
        %1691 = vmatpush1.msra.mxu0 %v1003
        %1692 = vmatprep.subr.mxu0 %v1012
        %1693 = vmatpush1.msra.mxu0 %v1011
        %1694 = vmatprep.subr.mxu0 %v1020
        %1695 = vmatpush1.msra.mxu0 %v1019
        %1696 = vmatprep.subr.mxu0 %v1028
        %1697 = vmatpush1.msra.mxu0 %v1027
        %1698 = vmatprep.subr.mxu0 %v1036
        %1699 = vmatpush1.msra.mxu0 %v1035
        %1700 = vmatprep.subr.mxu0 %v1044
        %1701 = vmatpush1.msra.mxu0 %v1043
        %1702 = vmatprep.subr.mxu0 %v1052
        %1703 = vmatpush1.msra.mxu0 %v1051
        %1704 = vmatprep.subr.mxu0 %v1060
        %1705 = vmatpush1.msra.mxu0 %v1059
        %1706 = vmatprep.subr.mxu0 %v1068
        %1707 = vmatpush1.msra.mxu0 %v1067
        %1708 = vmatprep.subr.mxu0 %v1076
        %1709 = vmatpush1.msra.mxu0 %v1075
        %1710 = vmatprep.subr.mxu0 %v1084
        %1711 = vmatpush1.msra.mxu0 %v1083
        %1712 = vmatprep.subr.mxu0 %v1092
        %1713 = vmatpush1.msra.mxu0 %v1091
        %1714 = vmatprep.subr.mxu0 %v1100
        %1715 = vmatpush1.msra.mxu0 %v1099
        %1716 = vmatprep.subr.mxu0 %v1108
        %1717 = vmatpush1.msra.mxu0 %v1107
        %1718 = vmatprep.subr.mxu0 %v1116
        %1719 = vmatpush1.msra.mxu0 %v1115
        %1720 = vmatprep.subr.mxu0 %v1124
        %1721 = vmatpush1.msra.mxu0 %v1123
        %1722 = vmatprep.subr.mxu0 %v1132
        %1723 = vmatpush1.msra.mxu0 %v1131
        %1724 = vmatprep.subr.mxu0 %v1140
        %1725 = vmatpush1.msra.mxu0 %v1139
        %1726 = vmatprep.subr.mxu0 %v1148
        %1727 = vmatpush1.msra.mxu0 %v1147
        %1728 = vmatprep.subr.mxu0 %v1156
        %1729 = vmatpush1.msra.mxu0 %v1155
        %1730 = vmatprep.subr.mxu0 %v1164
        %1731 = vmatpush1.msra.mxu0 %v1163
        %1732 = vmatprep.subr.mxu0 %v1172
        %1733 = vmatpush1.msra.mxu0 %v1171
        %1734 = vmatprep.subr.mxu0 %v1180
        %1735 = vmatpush1.msra.mxu0 %v1179
        %1736 = vmatprep.mubr.f32.mxu0 %v398
        %1737 = vmatmul.mubr.f32.gmra.mrb[0].mxu0 %v397
        %v1738 = vpop.f32.mrb[0].mxu0
        %v1739 = vadd.f32 %v1650, %v1738
        %v1740 = vpop.f32.mrb[0].mxu0
        %v1741 = vadd.f32 %v1652, %v1740
        %1742 = vmatprep.mubr.f32.mxu0 %v404
        %1743 = vmatmul.mubr.f32.gmra.mrb[0].mxu0 %v403
        %v1744 = vpop.f32.mrb[0].mxu0
        %v1745 = vadd.f32 %v1656, %v1744
        %v1746 = vpop.f32.mrb[0].mxu0
        %v1747 = vadd.f32 %v1658, %v1746
        %1748 = vmatprep.mubr.f32.mxu0 %v410
        %1749 = vmatmul.mubr.f32.gmra.mrb[0].mxu0 %v409
        %v1750 = vpop.f32.mrb[0].mxu0
        %v1751 = vadd.f32 %v1662, %v1750
        %v1752 = vpop.f32.mrb[0].mxu0
        %v1753 = vadd.f32 %v1664, %v1752
        %1754 = vmatprep.mubr.f32.mxu0 %v416
        %1755 = vmatmul.mubr.f32.gmra.mrb[0].mxu0 %v415
        %v1756 = vpop.f32.mrb[0].mxu0
        %v1757 = vadd.f32 %v1668, %v1756
        %v1758 = vpop.f32.mrb[0].mxu0
        %v1759 = vadd.f32 %v1670, %v1758
        %1760 = vdwg.mxu0
        %1761 = vmatprep.subr.mxu0 %v422
        %1762 = vmatpush1.msra.mxu0 %v421
        %1763 = vmatprep.subr.mxu0 %v430
        %1764 = vmatpush1.msra.mxu0 %v429
        %1765 = vmatprep.subr.mxu0 %v438
        %1766 = vmatpush1.msra.mxu0 %v437
        %1767 = vmatprep.subr.mxu0 %v446
        %1768 = vmatpush1.msra.mxu0 %v445
        %1769 = vmatprep.subr.mxu0 %v454
        %1770 = vmatpush1.msra.mxu0 %v453
        %1771 = vmatprep.subr.mxu0 %v462
        %1772 = vmatpush1.msra.mxu0 %v461
        %1773 = vmatprep.subr.mxu0 %v470
        %1774 = vmatpush1.msra.mxu0 %v469
        %1775 = vmatprep.subr.mxu0 %v478
        %1776 = vmatpush1.msra.mxu0 %v477
        %1777 = vmatprep.subr.mxu0 %v486
        %1778 = vmatpush1.msra.mxu0 %v485
        %1779 = vmatprep.subr.mxu0 %v494
        %1780 = vmatpush1.msra.mxu0 %v493
        %1781 = vmatprep.subr.mxu0 %v502
        %1782 = vmatpush1.msra.mxu0 %v501
        %1783 = vmatprep.subr.mxu0 %v510
        %1784 = vmatpush1.msra.mxu0 %v509
        %1785 = vmatprep.subr.mxu0 %v518
        %1786 = vmatpush1.msra.mxu0 %v517
        %1787 = vmatprep.subr.mxu0 %v526
        %1788 = vmatpush1.msra.mxu0 %v525
        %1789 = vmatprep.subr.mxu0 %v534
        %1790 = vmatpush1.msra.mxu0 %v533
        %1791 = vmatprep.subr.mxu0 %v542
        %1792 = vmatpush1.msra.mxu0 %v541
        %1793 = vmatprep.subr.mxu0 %v550
        %1794 = vmatpush1.msra.mxu0 %v549
        %1795 = vmatprep.subr.mxu0 %v558
        %1796 = vmatpush1.msra.mxu0 %v557
        %1797 = vmatprep.subr.mxu0 %v566
        %1798 = vmatpush1.msra.mxu0 %v565
        %1799 = vmatprep.subr.mxu0 %v574
        %1800 = vmatpush1.msra.mxu0 %v573
        %1801 = vmatprep.subr.mxu0 %v582
        %1802 = vmatpush1.msra.mxu0 %v581
        %1803 = vmatprep.subr.mxu0 %v590
        %1804 = vmatpush1.msra.mxu0 %v589
        %1805 = vmatprep.subr.mxu0 %v598
        %1806 = vmatpush1.msra.mxu0 %v597
        %1807 = vmatprep.subr.mxu0 %v606
        %1808 = vmatpush1.msra.mxu0 %v605
        %1809 = vmatprep.subr.mxu0 %v614
        %1810 = vmatpush1.msra.mxu0 %v613
        %1811 = vmatprep.subr.mxu0 %v622
        %1812 = vmatpush1.msra.mxu0 %v621
        %1813 = vmatprep.subr.mxu0 %v630
        %1814 = vmatpush1.msra.mxu0 %v629
        %1815 = vmatprep.subr.mxu0 %v638
        %1816 = vmatpush1.msra.mxu0 %v637
        %1817 = vmatprep.subr.mxu0 %v646
        %1818 = vmatpush1.msra.mxu0 %v645
        %1819 = vmatprep.subr.mxu0 %v654
        %1820 = vmatpush1.msra.mxu0 %v653
        %1821 = vmatprep.subr.mxu0 %v662
        %1822 = vmatpush1.msra.mxu0 %v661
        %1823 = vmatprep.subr.mxu0 %v670
        %1824 = vmatpush1.msra.mxu0 %v669
        %1825 = vmatprep.mubr.f32.mxu0 %v394
        %1826 = vmatmul.mubr.f32.gmra.mrb[0].mxu0 %v393
        %v1827 = vpop.f32.mrb[0].mxu0
        %v1828 = vadd.f32 %v1206, %v1827
        %v1829 = vpop.f32.mrb[0].mxu0
        %v1830 = vadd.f32 %v1210, %v1829
        %1831 = vmatprep.mubr.f32.mxu0 %v400
        %1832 = vmatmul.mubr.f32.gmra.mrb[0].mxu0 %v399
        %v1833 = vpop.f32.mrb[0].mxu0
        %v1834 = vadd.f32 %v1206, %v1833
        %v1835 = vpop.f32.mrb[0].mxu0
        %v1836 = vadd.f32 %v1210, %v1835
        %1837 = vmatprep.mubr.f32.mxu0 %v406
        %1838 = vmatmul.mubr.f32.gmra.mrb[0].mxu0 %v405
        %v1839 = vpop.f32.mrb[0].mxu0
        %v1840 = vadd.f32 %v1206, %v1839
        %v1841 = vpop.f32.mrb[0].mxu0
        %v1842 = vadd.f32 %v1210, %v1841
        %1843 = vmatprep.mubr.f32.mxu0 %v412
        %1844 = vmatmul.mubr.f32.gmra.mrb[0].mxu0 %v411
        %v1845 = vpop.f32.mrb[0].mxu0
        %v1846 = vadd.f32 %v1206, %v1845
        %v1847 = vpop.f32.mrb[0].mxu0
        %v1848 = vadd.f32 %v1210, %v1847
        %1849 = vdwg.mxu0
        %1850 = vmatprep.subr.mxu0 %v678
        %1851 = vmatpush1.msra.mxu0 %v677
        %1852 = vmatprep.subr.mxu0 %v686
        %1853 = vmatpush1.msra.mxu0 %v685
        %1854 = vmatprep.subr.mxu0 %v694
        %1855 = vmatpush1.msra.mxu0 %v693
        %1856 = vmatprep.subr.mxu0 %v702
        %1857 = vmatpush1.msra.mxu0 %v701
        %1858 = vmatprep.subr.mxu0 %v710
        %1859 = vmatpush1.msra.mxu0 %v709
        %1860 = vmatprep.subr.mxu0 %v718
        %1861 = vmatpush1.msra.mxu0 %v717
        %1862 = vmatprep.subr.mxu0 %v726
        %1863 = vmatpush1.msra.mxu0 %v725
        %1864 = vmatprep.subr.mxu0 %v734
        %1865 = vmatpush1.msra.mxu0 %v733
        %1866 = vmatprep.subr.mxu0 %v742
        %1867 = vmatpush1.msra.mxu0 %v741
        %1868 = vmatprep.subr.mxu0 %v750
        %1869 = vmatpush1.msra.mxu0 %v749
        %1870 = vmatprep.subr.mxu0 %v758
        %1871 = vmatpush1.msra.mxu0 %v757
        %1872 = vmatprep.subr.mxu0 %v766
        %1873 = vmatpush1.msra.mxu0 %v765
        %1874 = vmatprep.subr.mxu0 %v774
        %1875 = vmatpush1.msra.mxu0 %v773
        %1876 = vmatprep.subr.mxu0 %v782
        %1877 = vmatpush1.msra.mxu0 %v781
        %1878 = vmatprep.subr.mxu0 %v790
        %1879 = vmatpush1.msra.mxu0 %v789
        %1880 = vmatprep.subr.mxu0 %v798
        %1881 = vmatpush1.msra.mxu0 %v797
        %1882 = vmatprep.subr.mxu0 %v806
        %1883 = vmatpush1.msra.mxu0 %v805
        %1884 = vmatprep.subr.mxu0 %v814
        %1885 = vmatpush1.msra.mxu0 %v813
        %1886 = vmatprep.subr.mxu0 %v822
        %1887 = vmatpush1.msra.mxu0 %v821
        %1888 = vmatprep.subr.mxu0 %v830
        %1889 = vmatpush1.msra.mxu0 %v829
        %1890 = vmatprep.subr.mxu0 %v838
        %1891 = vmatpush1.msra.mxu0 %v837
        %1892 = vmatprep.subr.mxu0 %v846
        %1893 = vmatpush1.msra.mxu0 %v845
        %1894 = vmatprep.subr.mxu0 %v854
        %1895 = vmatpush1.msra.mxu0 %v853
        %1896 = vmatprep.subr.mxu0 %v862
        %1897 = vmatpush1.msra.mxu0 %v861
        %1898 = vmatprep.subr.mxu0 %v870
        %1899 = vmatpush1.msra.mxu0 %v869
        %1900 = vmatprep.subr.mxu0 %v878
        %1901 = vmatpush1.msra.mxu0 %v877
        %1902 = vmatprep.subr.mxu0 %v886
        %1903 = vmatpush1.msra.mxu0 %v885
        %1904 = vmatprep.subr.mxu0 %v894
        %1905 = vmatpush1.msra.mxu0 %v893
        %1906 = vmatprep.subr.mxu0 %v902
        %1907 = vmatpush1.msra.mxu0 %v901
        %1908 = vmatprep.subr.mxu0 %v910
        %1909 = vmatpush1.msra.mxu0 %v909
        %1910 = vmatprep.subr.mxu0 %v918
        %1911 = vmatpush1.msra.mxu0 %v917
        %1912 = vmatprep.subr.mxu0 %v926
        %1913 = vmatpush1.msra.mxu0 %v925
        %1914 = vmatprep.mubr.f32.mxu0 %v396
        %1915 = vmatmul.mubr.f32.gmra.mrb[0].mxu0 %v395
        %v1916 = vpop.f32.mrb[0].mxu0
        %v1917 = vadd.f32 %v1828, %v1916
        %v1918 = vpop.f32.mrb[0].mxu0
        %v1919 = vadd.f32 %v1830, %v1918
        %1920 = vmatprep.mubr.f32.mxu0 %v402
        %1921 = vmatmul.mubr.f32.gmra.mrb[0].mxu0 %v401
        %v1922 = vpop.f32.mrb[0].mxu0
        %v1923 = vadd.f32 %v1834, %v1922
        %v1924 = vpop.f32.mrb[0].mxu0
        %v1925 = vadd.f32 %v1836, %v1924
        %1926 = vmatprep.mubr.f32.mxu0 %v408
        %1927 = vmatmul.mubr.f32.gmra.mrb[0].mxu0 %v407
        %v1928 = vpop.f32.mrb[0].mxu0
        %v1929 = vadd.f32 %v1840, %v1928
        %v1930 = vpop.f32.mrb[0].mxu0
        %v1931 = vadd.f32 %v1842, %v1930
        %1932 = vmatprep.mubr.f32.mxu0 %v414
        %1933 = vmatmul.mubr.f32.gmra.mrb[0].mxu0 %v413
        %v1934 = vpop.f32.mrb[0].mxu0
        %v1935 = vadd.f32 %v1846, %v1934
        %v1936 = vpop.f32.mrb[0].mxu0
        %v1937 = vadd.f32 %v1848, %v1936
        %1938 = vdwg.mxu0
        %1939 = vmatprep.subr.mxu0 %v934
        %1940 = vmatpush1.msra.mxu0 %v933
        %1941 = vmatprep.subr.mxu0 %v942
        %1942 = vmatpush1.msra.mxu0 %v941
        %1943 = vmatprep.subr.mxu0 %v950
        %1944 = vmatpush1.msra.mxu0 %v949
        %1945 = vmatprep.subr.mxu0 %v958
        %1946 = vmatpush1.msra.mxu0 %v957
        %1947 = vmatprep.subr.mxu0 %v966
        %1948 = vmatpush1.msra.mxu0 %v965
        %1949 = vmatprep.subr.mxu0 %v974
        %1950 = vmatpush1.msra.mxu0 %v973
        %1951 = vmatprep.subr.mxu0 %v982
        %1952 = vmatpush1.msra.mxu0 %v981
        %1953 = vmatprep.subr.mxu0 %v990
        %1954 = vmatpush1.msra.mxu0 %v989
        %1955 = vmatprep.subr.mxu0 %v998
        %1956 = vmatpush1.msra.mxu0 %v997
        %1957 = vmatprep.subr.mxu0 %v1006
        %1958 = vmatpush1.msra.mxu0 %v1005
        %1959 = vmatprep.subr.mxu0 %v1014
        %1960 = vmatpush1.msra.mxu0 %v1013
        %1961 = vmatprep.subr.mxu0 %v1022
        %1962 = vmatpush1.msra.mxu0 %v1021
        %1963 = vmatprep.subr.mxu0 %v1030
        %1964 = vmatpush1.msra.mxu0 %v1029
        %1965 = vmatprep.subr.mxu0 %v1038
        %1966 = vmatpush1.msra.mxu0 %v1037
        %1967 = vmatprep.subr.mxu0 %v1046
        %1968 = vmatpush1.msra.mxu0 %v1045
        %1969 = vmatprep.subr.mxu0 %v1054
        %1970 = vmatpush1.msra.mxu0 %v1053
        %1971 = vmatprep.subr.mxu0 %v1062
        %1972 = vmatpush1.msra.mxu0 %v1061
        %1973 = vmatprep.subr.mxu0 %v1070
        %1974 = vmatpush1.msra.mxu0 %v1069
        %1975 = vmatprep.subr.mxu0 %v1078
        %1976 = vmatpush1.msra.mxu0 %v1077
        %1977 = vmatprep.subr.mxu0 %v1086
        %1978 = vmatpush1.msra.mxu0 %v1085
        %1979 = vmatprep.subr.mxu0 %v1094
        %1980 = vmatpush1.msra.mxu0 %v1093
        %1981 = vmatprep.subr.mxu0 %v1102
        %1982 = vmatpush1.msra.mxu0 %v1101
        %1983 = vmatprep.subr.mxu0 %v1110
        %1984 = vmatpush1.msra.mxu0 %v1109
        %1985 = vmatprep.subr.mxu0 %v1118
        %1986 = vmatpush1.msra.mxu0 %v1117
        %1987 = vmatprep.subr.mxu0 %v1126
        %1988 = vmatpush1.msra.mxu0 %v1125
        %1989 = vmatprep.subr.mxu0 %v1134
        %1990 = vmatpush1.msra.mxu0 %v1133
        %1991 = vmatprep.subr.mxu0 %v1142
        %1992 = vmatpush1.msra.mxu0 %v1141
        %1993 = vmatprep.subr.mxu0 %v1150
        %1994 = vmatpush1.msra.mxu0 %v1149
        %1995 = vmatprep.subr.mxu0 %v1158
        %1996 = vmatpush1.msra.mxu0 %v1157
        %1997 = vmatprep.subr.mxu0 %v1166
        %1998 = vmatpush1.msra.mxu0 %v1165
        %1999 = vmatprep.subr.mxu0 %v1174
        %2000 = vmatpush1.msra.mxu0 %v1173
        %2001 = vmatprep.subr.mxu0 %v1182
        %2002 = vmatpush1.msra.mxu0 %v1181
        %2003 = vmatprep.mubr.f32.mxu0 %v398
        %2004 = vmatmul.mubr.f32.gmra.mrb[0].mxu0 %v397
        %v2005 = vpop.f32.mrb[0].mxu0
        %v2006 = vadd.f32 %v1917, %v2005
        %v2007 = vpop.f32.mrb[0].mxu0
        %v2008 = vadd.f32 %v1919, %v2007
        %2009 = vmatprep.mubr.f32.mxu0 %v404
        %2010 = vmatmul.mubr.f32.gmra.mrb[0].mxu0 %v403
        %v2011 = vpop.f32.mrb[0].mxu0
        %v2012 = vadd.f32 %v1923, %v2011
        %v2013 = vpop.f32.mrb[0].mxu0
        %v2014 = vadd.f32 %v1925, %v2013
        %2015 = vmatprep.mubr.f32.mxu0 %v410
        %2016 = vmatmul.mubr.f32.gmra.mrb[0].mxu0 %v409
        %v2017 = vpop.f32.mrb[0].mxu0
        %v2018 = vadd.f32 %v1929, %v2017
        %v2019 = vpop.f32.mrb[0].mxu0
        %v2020 = vadd.f32 %v1931, %v2019
        %2021 = vmatprep.mubr.f32.mxu0 %v416
        %2022 = vmatmul.mubr.f32.gmra.mrb[0].mxu0 %v415
        %v2023 = vpop.f32.mrb[0].mxu0
        %v2024 = vadd.f32 %v1935, %v2023
        %v2025 = vpop.f32.mrb[0].mxu0
        %v2026 = vadd.f32 %v1937, %v2025
        %2027 = vdwg.mxu0
        %2028 = vmatprep.subr.mxu0 %v424
        %2029 = vmatpush1.msra.mxu0 %v423
        %2030 = vmatprep.subr.mxu0 %v432
        %2031 = vmatpush1.msra.mxu0 %v431
        %2032 = vmatprep.subr.mxu0 %v440
        %2033 = vmatpush1.msra.mxu0 %v439
        %2034 = vmatprep.subr.mxu0 %v448
        %2035 = vmatpush1.msra.mxu0 %v447
        %2036 = vmatprep.subr.mxu0 %v456
        %2037 = vmatpush1.msra.mxu0 %v455
        %2038 = vmatprep.subr.mxu0 %v464
        %2039 = vmatpush1.msra.mxu0 %v463
        %2040 = vmatprep.subr.mxu0 %v472
        %2041 = vmatpush1.msra.mxu0 %v471
        %2042 = vmatprep.subr.mxu0 %v480
        %2043 = vmatpush1.msra.mxu0 %v479
        %2044 = vmatprep.subr.mxu0 %v488
        %2045 = vmatpush1.msra.mxu0 %v487
        %2046 = vmatprep.subr.mxu0 %v496
        %2047 = vmatpush1.msra.mxu0 %v495
        %2048 = vmatprep.subr.mxu0 %v504
        %2049 = vmatpush1.msra.mxu0 %v503
        %2050 = vmatprep.subr.mxu0 %v512
        %2051 = vmatpush1.msra.mxu0 %v511
        %2052 = vmatprep.subr.mxu0 %v520
        %2053 = vmatpush1.msra.mxu0 %v519
        %2054 = vmatprep.subr.mxu0 %v528
        %2055 = vmatpush1.msra.mxu0 %v527
        %2056 = vmatprep.subr.mxu0 %v536
        %2057 = vmatpush1.msra.mxu0 %v535
        %2058 = vmatprep.subr.mxu0 %v544
        %2059 = vmatpush1.msra.mxu0 %v543
        %2060 = vmatprep.subr.mxu0 %v552
        %2061 = vmatpush1.msra.mxu0 %v551
        %2062 = vmatprep.subr.mxu0 %v560
        %2063 = vmatpush1.msra.mxu0 %v559
        %2064 = vmatprep.subr.mxu0 %v568
        %2065 = vmatpush1.msra.mxu0 %v567
        %2066 = vmatprep.subr.mxu0 %v576
        %2067 = vmatpush1.msra.mxu0 %v575
        %2068 = vmatprep.subr.mxu0 %v584
        %2069 = vmatpush1.msra.mxu0 %v583
        %2070 = vmatprep.subr.mxu0 %v592
        %2071 = vmatpush1.msra.mxu0 %v591
        %2072 = vmatprep.subr.mxu0 %v600
        %2073 = vmatpush1.msra.mxu0 %v599
        %2074 = vmatprep.subr.mxu0 %v608
        %2075 = vmatpush1.msra.mxu0 %v607
        %2076 = vmatprep.subr.mxu0 %v616
        %2077 = vmatpush1.msra.mxu0 %v615
        %2078 = vmatprep.subr.mxu0 %v624
        %2079 = vmatpush1.msra.mxu0 %v623
        %2080 = vmatprep.subr.mxu0 %v632
        %2081 = vmatpush1.msra.mxu0 %v631
        %2082 = vmatprep.subr.mxu0 %v640
        %2083 = vmatpush1.msra.mxu0 %v639
        %2084 = vmatprep.subr.mxu0 %v648
        %2085 = vmatpush1.msra.mxu0 %v647
        %2086 = vmatprep.subr.mxu0 %v656
        %2087 = vmatpush1.msra.mxu0 %v655
        %2088 = vmatprep.subr.mxu0 %v664
        %2089 = vmatpush1.msra.mxu0 %v663
        %2090 = vmatprep.subr.mxu0 %v672
        %2091 = vmatpush1.msra.mxu0 %v671
        %2092 = vmatprep.mubr.f32.mxu0 %v394
        %2093 = vmatmul.mubr.f32.gmra.mrb[0].mxu0 %v393
        %v2094 = vpop.f32.mrb[0].mxu0
        %v2095 = vadd.f32 %v1214, %v2094
        %v2096 = vpop.f32.mrb[0].mxu0
        %v2097 = vadd.f32 %v1218, %v2096
        %2098 = vmatprep.mubr.f32.mxu0 %v400
        %2099 = vmatmul.mubr.f32.gmra.mrb[0].mxu0 %v399
        %v2100 = vpop.f32.mrb[0].mxu0
        %v2101 = vadd.f32 %v1214, %v2100
        %v2102 = vpop.f32.mrb[0].mxu0
        %v2103 = vadd.f32 %v1218, %v2102
        %2104 = vmatprep.mubr.f32.mxu0 %v406
        %2105 = vmatmul.mubr.f32.gmra.mrb[0].mxu0 %v405
        %v2106 = vpop.f32.mrb[0].mxu0
        %v2107 = vadd.f32 %v1214, %v2106
        %v2108 = vpop.f32.mrb[0].mxu0
        %v2109 = vadd.f32 %v1218, %v2108
        %2110 = vmatprep.mubr.f32.mxu0 %v412
        %2111 = vmatmul.mubr.f32.gmra.mrb[0].mxu0 %v411
        %v2112 = vpop.f32.mrb[0].mxu0
        %v2113 = vadd.f32 %v1214, %v2112
        %v2114 = vpop.f32.mrb[0].mxu0
        %v2115 = vadd.f32 %v1218, %v2114
        %2116 = vdwg.mxu0
        %2117 = vmatprep.subr.mxu0 %v680
        %2118 = vmatpush1.msra.mxu0 %v679
        %2119 = vmatprep.subr.mxu0 %v688
        %2120 = vmatpush1.msra.mxu0 %v687
        %2121 = vmatprep.subr.mxu0 %v696
        %2122 = vmatpush1.msra.mxu0 %v695
        %2123 = vmatprep.subr.mxu0 %v704
        %2124 = vmatpush1.msra.mxu0 %v703
        %2125 = vmatprep.subr.mxu0 %v712
        %2126 = vmatpush1.msra.mxu0 %v711
        %2127 = vmatprep.subr.mxu0 %v720
        %2128 = vmatpush1.msra.mxu0 %v719
        %2129 = vmatprep.subr.mxu0 %v728
        %2130 = vmatpush1.msra.mxu0 %v727
        %2131 = vmatprep.subr.mxu0 %v736
        %2132 = vmatpush1.msra.mxu0 %v735
        %2133 = vmatprep.subr.mxu0 %v744
        %2134 = vmatpush1.msra.mxu0 %v743
        %2135 = vmatprep.subr.mxu0 %v752
        %2136 = vmatpush1.msra.mxu0 %v751
        %2137 = vmatprep.subr.mxu0 %v760
        %2138 = vmatpush1.msra.mxu0 %v759
        %2139 = vmatprep.subr.mxu0 %v768
        %2140 = vmatpush1.msra.mxu0 %v767
        %2141 = vmatprep.subr.mxu0 %v776
        %2142 = vmatpush1.msra.mxu0 %v775
        %2143 = vmatprep.subr.mxu0 %v784
        %2144 = vmatpush1.msra.mxu0 %v783
        %2145 = vmatprep.subr.mxu0 %v792
        %2146 = vmatpush1.msra.mxu0 %v791
        %2147 = vmatprep.subr.mxu0 %v800
        %2148 = vmatpush1.msra.mxu0 %v799
        %2149 = vmatprep.subr.mxu0 %v808
        %2150 = vmatpush1.msra.mxu0 %v807
        %2151 = vmatprep.subr.mxu0 %v816
        %2152 = vmatpush1.msra.mxu0 %v815
        %2153 = vmatprep.subr.mxu0 %v824
        %2154 = vmatpush1.msra.mxu0 %v823
        %2155 = vmatprep.subr.mxu0 %v832
        %2156 = vmatpush1.msra.mxu0 %v831
        %2157 = vmatprep.subr.mxu0 %v840
        %2158 = vmatpush1.msra.mxu0 %v839
        %2159 = vmatprep.subr.mxu0 %v848
        %2160 = vmatpush1.msra.mxu0 %v847
        %2161 = vmatprep.subr.mxu0 %v856
        %2162 = vmatpush1.msra.mxu0 %v855
        %2163 = vmatprep.subr.mxu0 %v864
        %2164 = vmatpush1.msra.mxu0 %v863
        %2165 = vmatprep.subr.mxu0 %v872
        %2166 = vmatpush1.msra.mxu0 %v871
        %2167 = vmatprep.subr.mxu0 %v880
        %2168 = vmatpush1.msra.mxu0 %v879
        %2169 = vmatprep.subr.mxu0 %v888
        %2170 = vmatpush1.msra.mxu0 %v887
        %2171 = vmatprep.subr.mxu0 %v896
        %2172 = vmatpush1.msra.mxu0 %v895
        %2173 = vmatprep.subr.mxu0 %v904
        %2174 = vmatpush1.msra.mxu0 %v903
        %2175 = vmatprep.subr.mxu0 %v912
        %2176 = vmatpush1.msra.mxu0 %v911
        %2177 = vmatprep.subr.mxu0 %v920
        %2178 = vmatpush1.msra.mxu0 %v919
        %2179 = vmatprep.subr.mxu0 %v928
        %2180 = vmatpush1.msra.mxu0 %v927
        %2181 = vmatprep.mubr.f32.mxu0 %v396
        %2182 = vmatmul.mubr.f32.gmra.mrb[0].mxu0 %v395
        %v2183 = vpop.f32.mrb[0].mxu0
        %v2184 = vadd.f32 %v2095, %v2183
        %v2185 = vpop.f32.mrb[0].mxu0
        %v2186 = vadd.f32 %v2097, %v2185
        %2187 = vmatprep.mubr.f32.mxu0 %v402
        %2188 = vmatmul.mubr.f32.gmra.mrb[0].mxu0 %v401
        %v2189 = vpop.f32.mrb[0].mxu0
        %v2190 = vadd.f32 %v2101, %v2189
        %v2191 = vpop.f32.mrb[0].mxu0
        %v2192 = vadd.f32 %v2103, %v2191
        %2193 = vmatprep.mubr.f32.mxu0 %v408
        %2194 = vmatmul.mubr.f32.gmra.mrb[0].mxu0 %v407
        %v2195 = vpop.f32.mrb[0].mxu0
        %v2196 = vadd.f32 %v2107, %v2195
        %v2197 = vpop.f32.mrb[0].mxu0
        %v2198 = vadd.f32 %v2109, %v2197
        %2199 = vmatprep.mubr.f32.mxu0 %v414
        %2200 = vmatmul.mubr.f32.gmra.mrb[0].mxu0 %v413
        %v2201 = vpop.f32.mrb[0].mxu0
        %v2202 = vadd.f32 %v2113, %v2201
        %v2203 = vpop.f32.mrb[0].mxu0
        %v2204 = vadd.f32 %v2115, %v2203
        %2205 = vdwg.mxu0
        %2206 = vmatprep.subr.mxu0 %v936
        %2207 = vmatpush1.msra.mxu0 %v935
        %2208 = vmatprep.subr.mxu0 %v944
        %2209 = vmatpush1.msra.mxu0 %v943
        %2210 = vmatprep.subr.mxu0 %v952
        %2211 = vmatpush1.msra.mxu0 %v951
        %2212 = vmatprep.subr.mxu0 %v960
        %2213 = vmatpush1.msra.mxu0 %v959
        %2214 = vmatprep.subr.mxu0 %v968
        %2215 = vmatpush1.msra.mxu0 %v967
        %2216 = vmatprep.subr.mxu0 %v976
        %2217 = vmatpush1.msra.mxu0 %v975
        %2218 = vmatprep.subr.mxu0 %v984
        %2219 = vmatpush1.msra.mxu0 %v983
        %2220 = vmatprep.subr.mxu0 %v992
        %2221 = vmatpush1.msra.mxu0 %v991
        %2222 = vmatprep.subr.mxu0 %v1000
        %2223 = vmatpush1.msra.mxu0 %v999
        %2224 = vmatprep.subr.mxu0 %v1008
        %2225 = vmatpush1.msra.mxu0 %v1007
        %2226 = vmatprep.subr.mxu0 %v1016
        %2227 = vmatpush1.msra.mxu0 %v1015
        %2228 = vmatprep.subr.mxu0 %v1024
        %2229 = vmatpush1.msra.mxu0 %v1023
        %2230 = vmatprep.subr.mxu0 %v1032
        %2231 = vmatpush1.msra.mxu0 %v1031
        %2232 = vmatprep.subr.mxu0 %v1040
        %2233 = vmatpush1.msra.mxu0 %v1039
        %2234 = vmatprep.subr.mxu0 %v1048
        %2235 = vmatpush1.msra.mxu0 %v1047
        %2236 = vmatprep.subr.mxu0 %v1056
        %2237 = vmatpush1.msra.mxu0 %v1055
        %2238 = vmatprep.subr.mxu0 %v1064
        %2239 = vmatpush1.msra.mxu0 %v1063
        %2240 = vmatprep.subr.mxu0 %v1072
        %2241 = vmatpush1.msra.mxu0 %v1071
        %2242 = vmatprep.subr.mxu0 %v1080
        %2243 = vmatpush1.msra.mxu0 %v1079
        %2244 = vmatprep.subr.mxu0 %v1088
        %2245 = vmatpush1.msra.mxu0 %v1087
        %2246 = vmatprep.subr.mxu0 %v1096
        %2247 = vmatpush1.msra.mxu0 %v1095
        %2248 = vmatprep.subr.mxu0 %v1104
        %2249 = vmatpush1.msra.mxu0 %v1103
        %2250 = vmatprep.subr.mxu0 %v1112
        %2251 = vmatpush1.msra.mxu0 %v1111
        %2252 = vmatprep.subr.mxu0 %v1120
        %2253 = vmatpush1.msra.mxu0 %v1119
        %2254 = vmatprep.subr.mxu0 %v1128
        %2255 = vmatpush1.msra.mxu0 %v1127
        %2256 = vmatprep.subr.mxu0 %v1136
        %2257 = vmatpush1.msra.mxu0 %v1135
        %2258 = vmatprep.subr.mxu0 %v1144
        %2259 = vmatpush1.msra.mxu0 %v1143
        %2260 = vmatprep.subr.mxu0 %v1152
        %2261 = vmatpush1.msra.mxu0 %v1151
        %2262 = vmatprep.subr.mxu0 %v1160
        %2263 = vmatpush1.msra.mxu0 %v1159
        %2264 = vmatprep.subr.mxu0 %v1168
        %2265 = vmatpush1.msra.mxu0 %v1167
        %2266 = vmatprep.subr.mxu0 %v1176
        %2267 = vmatpush1.msra.mxu0 %v1175
        %2268 = vmatprep.subr.mxu0 %v1184
        %2269 = vmatpush1.msra.mxu0 %v1183
        %2270 = vmatprep.mubr.f32.mxu0 %v398
        %2271 = vmatmul.mubr.f32.gmra.mrb[0].mxu0 %v397
        %v2272 = vpop.f32.mrb[0].mxu0
        %v2273 = vadd.f32 %v2184, %v2272
        %v2274 = vpop.f32.mrb[0].mxu0
        %v2275 = vadd.f32 %v2186, %v2274
        %2276 = vmatprep.mubr.f32.mxu0 %v404
        %2277 = vmatmul.mubr.f32.gmra.mrb[0].mxu0 %v403
        %v2278 = vpop.f32.mrb[0].mxu0
        %v2279 = vadd.f32 %v2190, %v2278
        %v2280 = vpop.f32.mrb[0].mxu0
        %v2281 = vadd.f32 %v2192, %v2280
        %2282 = vmatprep.mubr.f32.mxu0 %v410
        %2283 = vmatmul.mubr.f32.gmra.mrb[0].mxu0 %v409
        %v2284 = vpop.f32.mrb[0].mxu0
        %v2285 = vadd.f32 %v2196, %v2284
        %v2286 = vpop.f32.mrb[0].mxu0
        %v2287 = vadd.f32 %v2198, %v2286
        %2288 = vmatprep.mubr.f32.mxu0 %v416
        %2289 = vmatmul.mubr.f32.gmra.mrb[0].mxu0 %v415
        %v2290 = vpop.f32.mrb[0].mxu0
        %v2291 = vadd.f32 %v2202, %v2290
        %v2292 = vpop.f32.mrb[0].mxu0
        %v2293 = vadd.f32 %v2204, %v2292
        %2294 = vdwg.mxu0
        %v2295 = vmul.f32 %v1472, %v1472
        %v2296 = vmul.f32 %v1474, %v1474
        %v2297 = vmul.f32 %v1739, %v1739
        %v2298 = vmul.f32 %v1741, %v1741
        %v2299 = vmul.f32 %v2006, %v2006
        %v2300 = vmul.f32 %v2008, %v2008
        %v2301 = vmul.f32 %v2273, %v2273
        %v2302 = vmul.f32 %v2275, %v2275
        %v2303 = vmul.f32 %v1478, %v1478
        %v2304 = vmul.f32 %v1480, %v1480
        %v2305 = vmul.f32 %v1745, %v1745
        %v2306 = vmul.f32 %v1747, %v1747
        %v2307 = vmul.f32 %v2012, %v2012
        %v2308 = vmul.f32 %v2014, %v2014
        %v2309 = vmul.f32 %v2279, %v2279
        %v2310 = vmul.f32 %v2281, %v2281
        %v2311 = vmul.f32 %v1484, %v1484
        %v2312 = vmul.f32 %v1486, %v1486
        %v2313 = vmul.f32 %v1751, %v1751
        %v2314 = vmul.f32 %v1753, %v1753
        %v2315 = vmul.f32 %v2018, %v2018
        %v2316 = vmul.f32 %v2020, %v2020
        %v2317 = vmul.f32 %v2285, %v2285
        %v2318 = vmul.f32 %v2287, %v2287
        %v2319 = vmul.f32 %v1490, %v1490
        %v2320 = vmul.f32 %v1492, %v1492
        %v2321 = vmul.f32 %v1757, %v1757
        %v2322 = vmul.f32 %v1759, %v1759
        %v2323 = vmul.f32 %v2024, %v2024
        %v2324 = vmul.f32 %v2026, %v2026
        %v2325 = vmul.f32 %v2291, %v2291
        %v2326 = vmul.f32 %v2293, %v2293
        %v2327 = vmul.f32 %v2295, %v1472
        %v2328 = vmul.f32 %v2296, %v1474
        %v2329 = vmul.f32 %v2297, %v1739
        %v2330 = vmul.f32 %v2298, %v1741
        %v2331 = vmul.f32 %v2299, %v2006
        %v2332 = vmul.f32 %v2300, %v2008
        %v2333 = vmul.f32 %v2301, %v2273
        %v2334 = vmul.f32 %v2302, %v2275
        %v2335 = vmul.f32 %v2303, %v1478
        %v2336 = vmul.f32 %v2304, %v1480
        %v2337 = vmul.f32 %v2305, %v1745
        %v2338 = vmul.f32 %v2306, %v1747
        %v2339 = vmul.f32 %v2307, %v2012
        %v2340 = vmul.f32 %v2308, %v2014
        %v2341 = vmul.f32 %v2309, %v2279
        %v2342 = vmul.f32 %v2310, %v2281
        %v2343 = vmul.f32 %v2311, %v1484
        %v2344 = vmul.f32 %v2312, %v1486
        %v2345 = vmul.f32 %v2313, %v1751
        %v2346 = vmul.f32 %v2314, %v1753
        %v2347 = vmul.f32 %v2315, %v2018
        %v2348 = vmul.f32 %v2316, %v2020
        %v2349 = vmul.f32 %v2317, %v2285
        %v2350 = vmul.f32 %v2318, %v2287
        %v2351 = vmul.f32 %v2319, %v1490
        %v2352 = vmul.f32 %v2320, %v1492
        %v2353 = vmul.f32 %v2321, %v1757
        %v2354 = vmul.f32 %v2322, %v1759
        %v2355 = vmul.f32 %v2323, %v2024
        %v2356 = vmul.f32 %v2324, %v2026
        %v2357 = vmul.f32 %v2325, %v2291
        %v2358 = vmul.f32 %v2326, %v2293
        %v2359 = vmul.f32 %v1472, 0.5
        %v2360 = vmul.f32 %v1474, 0.5
        %v2361 = vmul.f32 %v1739, 0.5
        %v2362 = vmul.f32 %v1741, 0.5
        %v2363 = vmul.f32 %v2006, 0.5
        %v2364 = vmul.f32 %v2008, 0.5
        %v2365 = vmul.f32 %v2273, 0.5
        %v2366 = vmul.f32 %v2275, 0.5
        %v2367 = vmul.f32 %v1478, 0.5
        %v2368 = vmul.f32 %v1480, 0.5
        %v2369 = vmul.f32 %v1745, 0.5
        %v2370 = vmul.f32 %v1747, 0.5
        %v2371 = vmul.f32 %v2012, 0.5
        %v2372 = vmul.f32 %v2014, 0.5
        %v2373 = vmul.f32 %v2279, 0.5
        %v2374 = vmul.f32 %v2281, 0.5
        %v2375 = vmul.f32 %v1484, 0.5
        %v2376 = vmul.f32 %v1486, 0.5
        %v2377 = vmul.f32 %v1751, 0.5
        %v2378 = vmul.f32 %v1753, 0.5
        %v2379 = vmul.f32 %v2018, 0.5
        %v2380 = vmul.f32 %v2020, 0.5
        %v2381 = vmul.f32 %v2285, 0.5
        %v2382 = vmul.f32 %v2287, 0.5
        %v2383 = vmul.f32 %v1490, 0.5
        %v2384 = vmul.f32 %v1492, 0.5
        %v2385 = vmul.f32 %v1757, 0.5
        %v2386 = vmul.f32 %v1759, 0.5
        %v2387 = vmul.f32 %v2024, 0.5
        %v2388 = vmul.f32 %v2026, 0.5
        %v2389 = vmul.f32 %v2291, 0.5
        %v2390 = vmul.f32 %v2293, 0.5
        %v2391 = vmul.f32 %v2327, 0.044715
        %v2392 = vmul.f32 %v2328, 0.044715
        %v2393 = vmul.f32 %v2329, 0.044715
        %v2394 = vmul.f32 %v2330, 0.044715
        %v2395 = vmul.f32 %v2331, 0.044715
        %v2396 = vmul.f32 %v2332, 0.044715
        %v2397 = vmul.f32 %v2333, 0.044715
        %v2398 = vmul.f32 %v2334, 0.044715
        %v2399 = vmul.f32 %v2335, 0.044715
        %v2400 = vmul.f32 %v2336, 0.044715
        %v2401 = vmul.f32 %v2337, 0.044715
        %v2402 = vmul.f32 %v2338, 0.044715
        %v2403 = vmul.f32 %v2339, 0.044715
        %v2404 = vmul.f32 %v2340, 0.044715
        %v2405 = vmul.f32 %v2341, 0.044715
        %v2406 = vmul.f32 %v2342, 0.044715
        %v2407 = vmul.f32 %v2343, 0.044715
        %v2408 = vmul.f32 %v2344, 0.044715
        %v2409 = vmul.f32 %v2345, 0.044715
        %v2410 = vmul.f32 %v2346, 0.044715
        %v2411 = vmul.f32 %v2347, 0.044715
        %v2412 = vmul.f32 %v2348, 0.044715
        %v2413 = vmul.f32 %v2349, 0.044715
        %v2414 = vmul.f32 %v2350, 0.044715
        %v2415 = vmul.f32 %v2351, 0.044715
        %v2416 = vmul.f32 %v2352, 0.044715
        %v2417 = vmul.f32 %v2353, 0.044715
        %v2418 = vmul.f32 %v2354, 0.044715
        %v2419 = vmul.f32 %v2355, 0.044715
        %v2420 = vmul.f32 %v2356, 0.044715
        %v2421 = vmul.f32 %v2357, 0.044715
        %v2422 = vmul.f32 %v2358, 0.044715
        %v2423 = vadd.f32 %v1472, %v2391
        %v2424 = vadd.f32 %v1474, %v2392
        %v2425 = vadd.f32 %v1739, %v2393
        %v2426 = vadd.f32 %v1741, %v2394
        %v2427 = vadd.f32 %v2006, %v2395
        %v2428 = vadd.f32 %v2008, %v2396
        %v2429 = vadd.f32 %v2273, %v2397
        %v2430 = vadd.f32 %v2275, %v2398
        %v2431 = vadd.f32 %v1478, %v2399
        %v2432 = vadd.f32 %v1480, %v2400
        %v2433 = vadd.f32 %v1745, %v2401
        %v2434 = vadd.f32 %v1747, %v2402
        %v2435 = vadd.f32 %v2012, %v2403
        %v2436 = vadd.f32 %v2014, %v2404
        %v2437 = vadd.f32 %v2279, %v2405
        %v2438 = vadd.f32 %v2281, %v2406
        %v2439 = vadd.f32 %v1484, %v2407
        %v2440 = vadd.f32 %v1486, %v2408
        %v2441 = vadd.f32 %v1751, %v2409
        %v2442 = vadd.f32 %v1753, %v2410
        %v2443 = vadd.f32 %v2018, %v2411
        %v2444 = vadd.f32 %v2020, %v2412
        %v2445 = vadd.f32 %v2285, %v2413
        %v2446 = vadd.f32 %v2287, %v2414
        %v2447 = vadd.f32 %v1490, %v2415
        %v2448 = vadd.f32 %v1492, %v2416
        %v2449 = vadd.f32 %v1757, %v2417
        %v2450 = vadd.f32 %v1759, %v2418
        %v2451 = vadd.f32 %v2024, %v2419
        %v2452 = vadd.f32 %v2026, %v2420
        %v2453 = vadd.f32 %v2291, %v2421
        %v2454 = vadd.f32 %v2293, %v2422
        %v2455 = vmul.f32 %v2423, 0.7978846
        %v2456 = vmul.f32 %v2424, 0.7978846
        %v2457 = vmul.f32 %v2425, 0.7978846
        %v2458 = vmul.f32 %v2426, 0.7978846
        %v2459 = vmul.f32 %v2427, 0.7978846
        %v2460 = vmul.f32 %v2428, 0.7978846
        %v2461 = vmul.f32 %v2429, 0.7978846
        %v2462 = vmul.f32 %v2430, 0.7978846
        %v2463 = vmul.f32 %v2431, 0.7978846
        %v2464 = vmul.f32 %v2432, 0.7978846
        %v2465 = vmul.f32 %v2433, 0.7978846
        %v2466 = vmul.f32 %v2434, 0.7978846
        %v2467 = vmul.f32 %v2435, 0.7978846
        %v2468 = vmul.f32 %v2436, 0.7978846
        %v2469 = vmul.f32 %v2437, 0.7978846
        %v2470 = vmul.f32 %v2438, 0.7978846
        %v2471 = vmul.f32 %v2439, 0.7978846
        %v2472 = vmul.f32 %v2440, 0.7978846
        %v2473 = vmul.f32 %v2441, 0.7978846
        %v2474 = vmul.f32 %v2442, 0.7978846
        %v2475 = vmul.f32 %v2443, 0.7978846
        %v2476 = vmul.f32 %v2444, 0.7978846
        %v2477 = vmul.f32 %v2445, 0.7978846
        %v2478 = vmul.f32 %v2446, 0.7978846
        %v2479 = vmul.f32 %v2447, 0.7978846
        %v2480 = vmul.f32 %v2448, 0.7978846
        %v2481 = vmul.f32 %v2449, 0.7978846
        %v2482 = vmul.f32 %v2450, 0.7978846
        %v2483 = vmul.f32 %v2451, 0.7978846
        %v2484 = vmul.f32 %v2452, 0.7978846
        %v2485 = vmul.f32 %v2453, 0.7978846
        %v2486 = vmul.f32 %v2454, 0.7978846
        %v2487 = vtanh.pop %v2455
        %v2488 = vtanh.pop %v2456
        %v2489 = vtanh.pop %v2457
        %v2490 = vtanh.pop %v2458
        %v2491 = vtanh.pop %v2459
        %v2492 = vtanh.pop %v2460
        %v2493 = vtanh.pop %v2461
        %v2494 = vtanh.pop %v2462
        %v2495 = vtanh.pop %v2463
        %v2496 = vtanh.pop %v2464
        %v2497 = vtanh.pop %v2465
        %v2498 = vtanh.pop %v2466
        %v2499 = vtanh.pop %v2467
        %v2500 = vtanh.pop %v2468
        %v2501 = vtanh.pop %v2469
        %v2502 = vtanh.pop %v2470
        %v2503 = vtanh.pop %v2471
        %v2504 = vtanh.pop %v2472
        %v2505 = vtanh.pop %v2473
        %v2506 = vtanh.pop %v2474
        %v2507 = vtanh.pop %v2475
        %v2508 = vtanh.pop %v2476
        %v2509 = vtanh.pop %v2477
        %v2510 = vtanh.pop %v2478
        %v2511 = vtanh.pop %v2479
        %v2512 = vtanh.pop %v2480
        %v2513 = vtanh.pop %v2481
        %v2514 = vtanh.pop %v2482
        %v2515 = vtanh.pop %v2483
        %v2516 = vtanh.pop %v2484
        %v2517 = vtanh.pop %v2485
        %v2518 = vtanh.pop %v2486
        %v2519 = vadd.f32 %v2487, 1.0
        %v2520 = vadd.f32 %v2488, 1.0
        %v2521 = vadd.f32 %v2489, 1.0
        %v2522 = vadd.f32 %v2490, 1.0
        %v2523 = vadd.f32 %v2491, 1.0
        %v2524 = vadd.f32 %v2492, 1.0
        %v2525 = vadd.f32 %v2493, 1.0
        %v2526 = vadd.f32 %v2494, 1.0
        %v2527 = vadd.f32 %v2495, 1.0
        %v2528 = vadd.f32 %v2496, 1.0
        %v2529 = vadd.f32 %v2497, 1.0
        %v2530 = vadd.f32 %v2498, 1.0
        %v2531 = vadd.f32 %v2499, 1.0
        %v2532 = vadd.f32 %v2500, 1.0
        %v2533 = vadd.f32 %v2501, 1.0
        %v2534 = vadd.f32 %v2502, 1.0
        %v2535 = vadd.f32 %v2503, 1.0
        %v2536 = vadd.f32 %v2504, 1.0
        %v2537 = vadd.f32 %v2505, 1.0
        %v2538 = vadd.f32 %v2506, 1.0
        %v2539 = vadd.f32 %v2507, 1.0
        %v2540 = vadd.f32 %v2508, 1.0
        %v2541 = vadd.f32 %v2509, 1.0
        %v2542 = vadd.f32 %v2510, 1.0
        %v2543 = vadd.f32 %v2511, 1.0
        %v2544 = vadd.f32 %v2512, 1.0
        %v2545 = vadd.f32 %v2513, 1.0
        %v2546 = vadd.f32 %v2514, 1.0
        %v2547 = vadd.f32 %v2515, 1.0
        %v2548 = vadd.f32 %v2516, 1.0
        %v2549 = vadd.f32 %v2517, 1.0
        %v2550 = vadd.f32 %v2518, 1.0
        %v2551 = vmul.f32 %v2359, %v2519
        %v2552 = vmul.f32 %v2360, %v2520
        %v2553 = vmul.f32 %v2361, %v2521
        %v2554 = vmul.f32 %v2362, %v2522
        %v2555 = vmul.f32 %v2363, %v2523
        %v2556 = vmul.f32 %v2364, %v2524
        %v2557 = vmul.f32 %v2365, %v2525
        %v2558 = vmul.f32 %v2366, %v2526
        %v2559 = vmul.f32 %v2367, %v2527
        %v2560 = vmul.f32 %v2368, %v2528
        %v2561 = vmul.f32 %v2369, %v2529
        %v2562 = vmul.f32 %v2370, %v2530
        %v2563 = vmul.f32 %v2371, %v2531
        %v2564 = vmul.f32 %v2372, %v2532
        %v2565 = vmul.f32 %v2373, %v2533
        %v2566 = vmul.f32 %v2374, %v2534
        %v2567 = vmul.f32 %v2375, %v2535
        %v2568 = vmul.f32 %v2376, %v2536
        %v2569 = vmul.f32 %v2377, %v2537
        %v2570 = vmul.f32 %v2378, %v2538
        %v2571 = vmul.f32 %v2379, %v2539
        %v2572 = vmul.f32 %v2380, %v2540
        %v2573 = vmul.f32 %v2381, %v2541
        %v2574 = vmul.f32 %v2382, %v2542
        %v2575 = vmul.f32 %v2383, %v2543
        %v2576 = vmul.f32 %v2384, %v2544
        %v2577 = vmul.f32 %v2385, %v2545
        %v2578 = vmul.f32 %v2386, %v2546
        %v2579 = vmul.f32 %v2387, %v2547
        %v2580 = vmul.f32 %v2388, %v2548
        %v2581 = vmul.f32 %v2389, %v2549
        %v2582 = vmul.f32 %v2390, %v2550
        %v2583 = vld [vmem:[#allocation2] sm:$0xff]
        %v2584 = vld [vmem:[#allocation2 + $0x8] sm:$0xff]
        %v2585 = vld [vmem:[#allocation2 + $0x10] sm:$0xff]
        %v2586 = vld [vmem:[#allocation2 + $0x18] sm:$0xff]
        %v2587 = vld [vmem:[#allocation2 + $0x20] sm:$0xff]
        %v2588 = vld [vmem:[#allocation2 + $0x28] sm:$0xff]
        %v2589 = vld [vmem:[#allocation2 + $0x30] sm:$0xff]
        %v2590 = vld [vmem:[#allocation2 + $0x38] sm:$0xff]
        %v2591 = vld [vmem:[#allocation2 + $0x40] sm:$0xff]
        %v2592 = vld [vmem:[#allocation2 + $0x48] sm:$0xff]
        %v2593 = vld [vmem:[#allocation2 + $0x50] sm:$0xff]
        %v2594 = vld [vmem:[#allocation2 + $0x58] sm:$0xff]
        %v2595 = vld [vmem:[#allocation2 + $0x60] sm:$0xff]
        %v2596 = vld [vmem:[#allocation2 + $0x68] sm:$0xff]
        %v2597 = vld [vmem:[#allocation2 + $0x70] sm:$0xff]
        %v2598 = vld [vmem:[#allocation2 + $0x78] sm:$0xff]
        %v2599 = vld [vmem:[#allocation2 + $0x80] sm:$0xff]
        %v2600 = vld [vmem:[#allocation2 + $0x88] sm:$0xff]
        %v2601 = vld [vmem:[#allocation2 + $0x90] sm:$0xff]
        %v2602 = vld [vmem:[#allocation2 + $0x98] sm:$0xff]
        %v2603 = vld [vmem:[#allocation2 + $0xa0] sm:$0xff]
        %v2604 = vld [vmem:[#allocation2 + $0xa8] sm:$0xff]
        %v2605 = vld [vmem:[#allocation2 + $0xb0] sm:$0xff]
        %v2606 = vld [vmem:[#allocation2 + $0xb8] sm:$0xff]
        %v2607 = vld [vmem:[%s324] sm:$0xff]
        %v2608 = vld [vmem:[%s324 + $0x8] sm:$0xff]
        %v2609 = vld [vmem:[%s324 + $0x10] sm:$0xff]
        %v2610 = vld [vmem:[%s324 + $0x18] sm:$0xff]
        %v2611 = vld [vmem:[%s324 + $0x20] sm:$0xff]
        %v2612 = vld [vmem:[%s324 + $0x28] sm:$0xff]
        %v2613 = vld [vmem:[%s324 + $0x30] sm:$0xff]
        %v2614 = vld [vmem:[%s324 + $0x38] sm:$0xff]
        %v2615 = vld [vmem:[%s324 + $0x40] sm:$0xff]
        %v2616 = vld [vmem:[%s324 + $0x48] sm:$0xff]
        %v2617 = vld [vmem:[%s324 + $0x50] sm:$0xff]
        %v2618 = vld [vmem:[%s324 + $0x58] sm:$0xff]
        %v2619 = vld [vmem:[%s324 + $0x60] sm:$0xff]
        %v2620 = vld [vmem:[%s324 + $0x68] sm:$0xff]
        %v2621 = vld [vmem:[%s324 + $0x70] sm:$0xff]
        %v2622 = vld [vmem:[%s324 + $0x78] sm:$0xff]
        %v2623 = vld [vmem:[%s324 + $0x80] sm:$0xff]
        %v2624 = vld [vmem:[%s324 + $0x88] sm:$0xff]
        %v2625 = vld [vmem:[%s324 + $0x90] sm:$0xff]
        %v2626 = vld [vmem:[%s324 + $0x98] sm:$0xff]
        %v2627 = vld [vmem:[%s324 + $0xa0] sm:$0xff]
        %v2628 = vld [vmem:[%s324 + $0xa8] sm:$0xff]
        %v2629 = vld [vmem:[%s324 + $0xb0] sm:$0xff]
        %v2630 = vld [vmem:[%s324 + $0xb8] sm:$0xff]
        %v2631 = vld [vmem:[%s324 + $0xc0] sm:$0xff]
        %v2632 = vld [vmem:[%s324 + $0xc8] sm:$0xff]
        %v2633 = vld [vmem:[%s324 + $0xd0] sm:$0xff]
        %v2634 = vld [vmem:[%s324 + $0xd8] sm:$0xff]
        %v2635 = vld [vmem:[%s324 + $0xe0] sm:$0xff]
        %v2636 = vld [vmem:[%s324 + $0xe8] sm:$0xff]
        %v2637 = vld [vmem:[%s324 + $0xf0] sm:$0xff]
        %v2638 = vld [vmem:[%s324 + $0xf8] sm:$0xff]
        %v2639 = vld [vmem:[%s324 + $0x100] sm:$0xff]
        %v2640 = vld [vmem:[%s324 + $0x108] sm:$0xff]
        %v2641 = vld [vmem:[%s324 + $0x110] sm:$0xff]
        %v2642 = vld [vmem:[%s324 + $0x118] sm:$0xff]
        %v2643 = vld [vmem:[%s324 + $0x120] sm:$0xff]
        %v2644 = vld [vmem:[%s324 + $0x128] sm:$0xff]
        %v2645 = vld [vmem:[%s324 + $0x130] sm:$0xff]
        %v2646 = vld [vmem:[%s324 + $0x138] sm:$0xff]
        %v2647 = vld [vmem:[%s324 + $0x140] sm:$0xff]
        %v2648 = vld [vmem:[%s324 + $0x148] sm:$0xff]
        %v2649 = vld [vmem:[%s324 + $0x150] sm:$0xff]
        %v2650 = vld [vmem:[%s324 + $0x158] sm:$0xff]
        %v2651 = vld [vmem:[%s324 + $0x160] sm:$0xff]
        %v2652 = vld [vmem:[%s324 + $0x168] sm:$0xff]
        %v2653 = vld [vmem:[%s324 + $0x170] sm:$0xff]
        %v2654 = vld [vmem:[%s324 + $0x178] sm:$0xff]
        %v2655 = vld [vmem:[%s324 + $0x180] sm:$0xff]
        %v2656 = vld [vmem:[%s324 + $0x188] sm:$0xff]
        %v2657 = vld [vmem:[%s324 + $0x190] sm:$0xff]
        %v2658 = vld [vmem:[%s324 + $0x198] sm:$0xff]
        %v2659 = vld [vmem:[%s324 + $0x1a0] sm:$0xff]
        %v2660 = vld [vmem:[%s324 + $0x1a8] sm:$0xff]
        %v2661 = vld [vmem:[%s324 + $0x1b0] sm:$0xff]
        %v2662 = vld [vmem:[%s324 + $0x1b8] sm:$0xff]
        %v2663 = vld [vmem:[%s324 + $0x1c0] sm:$0xff]
        %v2664 = vld [vmem:[%s324 + $0x1c8] sm:$0xff]
        %v2665 = vld [vmem:[%s324 + $0x1d0] sm:$0xff]
        %v2666 = vld [vmem:[%s324 + $0x1d8] sm:$0xff]
        %v2667 = vld [vmem:[%s324 + $0x1e0] sm:$0xff]
        %v2668 = vld [vmem:[%s324 + $0x1e8] sm:$0xff]
        %v2669 = vld [vmem:[%s324 + $0x1f0] sm:$0xff]
        %v2670 = vld [vmem:[%s324 + $0x1f8] sm:$0xff]
        %v2671 = vld [vmem:[%s324 + $0x200] sm:$0xff]
        %v2672 = vld [vmem:[%s324 + $0x208] sm:$0xff]
        %v2673 = vld [vmem:[%s324 + $0x210] sm:$0xff]
        %v2674 = vld [vmem:[%s324 + $0x218] sm:$0xff]
        %v2675 = vld [vmem:[%s324 + $0x220] sm:$0xff]
        %v2676 = vld [vmem:[%s324 + $0x228] sm:$0xff]
        %v2677 = vld [vmem:[%s324 + $0x230] sm:$0xff]
        %v2678 = vld [vmem:[%s324 + $0x238] sm:$0xff]
        %v2679 = vld [vmem:[%s324 + $0x240] sm:$0xff]
        %v2680 = vld [vmem:[%s324 + $0x248] sm:$0xff]
        %v2681 = vld [vmem:[%s324 + $0x250] sm:$0xff]
        %v2682 = vld [vmem:[%s324 + $0x258] sm:$0xff]
        %v2683 = vld [vmem:[%s324 + $0x260] sm:$0xff]
        %v2684 = vld [vmem:[%s324 + $0x268] sm:$0xff]
        %v2685 = vld [vmem:[%s324 + $0x270] sm:$0xff]
        %v2686 = vld [vmem:[%s324 + $0x278] sm:$0xff]
        %v2687 = vld [vmem:[%s324 + $0x280] sm:$0xff]
        %v2688 = vld [vmem:[%s324 + $0x288] sm:$0xff]
        %v2689 = vld [vmem:[%s324 + $0x290] sm:$0xff]
        %v2690 = vld [vmem:[%s324 + $0x298] sm:$0xff]
        %v2691 = vld [vmem:[%s324 + $0x2a0] sm:$0xff]
        %v2692 = vld [vmem:[%s324 + $0x2a8] sm:$0xff]
        %v2693 = vld [vmem:[%s324 + $0x2b0] sm:$0xff]
        %v2694 = vld [vmem:[%s324 + $0x2b8] sm:$0xff]
        %v2695 = vld [vmem:[%s324 + $0x2c0] sm:$0xff]
        %v2696 = vld [vmem:[%s324 + $0x2c8] sm:$0xff]
        %v2697 = vld [vmem:[%s324 + $0x2d0] sm:$0xff]
        %v2698 = vld [vmem:[%s324 + $0x2d8] sm:$0xff]
        %v2699 = vld [vmem:[%s324 + $0x2e0] sm:$0xff]
        %v2700 = vld [vmem:[%s324 + $0x2e8] sm:$0xff]
        %v2701 = vld [vmem:[%s324 + $0x2f0] sm:$0xff]
        %v2702 = vld [vmem:[%s324 + $0x2f8] sm:$0xff]
        %v2703 = vld [vmem:[%s324 + $0x300] sm:$0xff]
        %v2704 = vld [vmem:[%s324 + $0x308] sm:$0xff]
        %v2705 = vld [vmem:[%s324 + $0x310] sm:$0xff]
        %v2706 = vld [vmem:[%s324 + $0x318] sm:$0xff]
        %v2707 = vld [vmem:[%s324 + $0x320] sm:$0xff]
        %v2708 = vld [vmem:[%s324 + $0x328] sm:$0xff]
        %v2709 = vld [vmem:[%s324 + $0x330] sm:$0xff]
        %v2710 = vld [vmem:[%s324 + $0x338] sm:$0xff]
        %v2711 = vld [vmem:[%s324 + $0x340] sm:$0xff]
        %v2712 = vld [vmem:[%s324 + $0x348] sm:$0xff]
        %v2713 = vld [vmem:[%s324 + $0x350] sm:$0xff]
        %v2714 = vld [vmem:[%s324 + $0x358] sm:$0xff]
        %v2715 = vld [vmem:[%s324 + $0x360] sm:$0xff]
        %v2716 = vld [vmem:[%s324 + $0x368] sm:$0xff]
        %v2717 = vld [vmem:[%s324 + $0x370] sm:$0xff]
        %v2718 = vld [vmem:[%s324 + $0x378] sm:$0xff]
        %v2719 = vld [vmem:[%s324 + $0x380] sm:$0xff]
        %v2720 = vld [vmem:[%s324 + $0x388] sm:$0xff]
        %v2721 = vld [vmem:[%s324 + $0x390] sm:$0xff]
        %v2722 = vld [vmem:[%s324 + $0x398] sm:$0xff]
        %v2723 = vld [vmem:[%s324 + $0x3a0] sm:$0xff]
        %v2724 = vld [vmem:[%s324 + $0x3a8] sm:$0xff]
        %v2725 = vld [vmem:[%s324 + $0x3b0] sm:$0xff]
        %v2726 = vld [vmem:[%s324 + $0x3b8] sm:$0xff]
        %v2727 = vld [vmem:[%s324 + $0x3c0] sm:$0xff]
        %v2728 = vld [vmem:[%s324 + $0x3c8] sm:$0xff]
        %v2729 = vld [vmem:[%s324 + $0x3d0] sm:$0xff]
        %v2730 = vld [vmem:[%s324 + $0x3d8] sm:$0xff]
        %v2731 = vld [vmem:[%s324 + $0x3e0] sm:$0xff]
        %v2732 = vld [vmem:[%s324 + $0x3e8] sm:$0xff]
        %v2733 = vld [vmem:[%s324 + $0x3f0] sm:$0xff]
        %v2734 = vld [vmem:[%s324 + $0x3f8] sm:$0xff]
        %v2735 = vld [vmem:[%s324 + $0x400] sm:$0xff]
        %v2736 = vld [vmem:[%s324 + $0x408] sm:$0xff]
        %v2737 = vld [vmem:[%s324 + $0x410] sm:$0xff]
        %v2738 = vld [vmem:[%s324 + $0x418] sm:$0xff]
        %v2739 = vld [vmem:[%s324 + $0x420] sm:$0xff]
        %v2740 = vld [vmem:[%s324 + $0x428] sm:$0xff]
        %v2741 = vld [vmem:[%s324 + $0x430] sm:$0xff]
        %v2742 = vld [vmem:[%s324 + $0x438] sm:$0xff]
        %v2743 = vld [vmem:[%s324 + $0x440] sm:$0xff]
        %v2744 = vld [vmem:[%s324 + $0x448] sm:$0xff]
        %v2745 = vld [vmem:[%s324 + $0x450] sm:$0xff]
        %v2746 = vld [vmem:[%s324 + $0x458] sm:$0xff]
        %v2747 = vld [vmem:[%s324 + $0x460] sm:$0xff]
        %v2748 = vld [vmem:[%s324 + $0x468] sm:$0xff]
        %v2749 = vld [vmem:[%s324 + $0x470] sm:$0xff]
        %v2750 = vld [vmem:[%s324 + $0x478] sm:$0xff]
        %v2751 = vld [vmem:[%s324 + $0x480] sm:$0xff]
        %v2752 = vld [vmem:[%s324 + $0x488] sm:$0xff]
        %v2753 = vld [vmem:[%s324 + $0x490] sm:$0xff]
        %v2754 = vld [vmem:[%s324 + $0x498] sm:$0xff]
        %v2755 = vld [vmem:[%s324 + $0x4a0] sm:$0xff]
        %v2756 = vld [vmem:[%s324 + $0x4a8] sm:$0xff]
        %v2757 = vld [vmem:[%s324 + $0x4b0] sm:$0xff]
        %v2758 = vld [vmem:[%s324 + $0x4b8] sm:$0xff]
        %v2759 = vld [vmem:[%s324 + $0x4c0] sm:$0xff]
        %v2760 = vld [vmem:[%s324 + $0x4c8] sm:$0xff]
        %v2761 = vld [vmem:[%s324 + $0x4d0] sm:$0xff]
        %v2762 = vld [vmem:[%s324 + $0x4d8] sm:$0xff]
        %v2763 = vld [vmem:[%s324 + $0x4e0] sm:$0xff]
        %v2764 = vld [vmem:[%s324 + $0x4e8] sm:$0xff]
        %v2765 = vld [vmem:[%s324 + $0x4f0] sm:$0xff]
        %v2766 = vld [vmem:[%s324 + $0x4f8] sm:$0xff]
        %v2767 = vld [vmem:[%s324 + $0x500] sm:$0xff]
        %v2768 = vld [vmem:[%s324 + $0x508] sm:$0xff]
        %v2769 = vld [vmem:[%s324 + $0x510] sm:$0xff]
        %v2770 = vld [vmem:[%s324 + $0x518] sm:$0xff]
        %v2771 = vld [vmem:[%s324 + $0x520] sm:$0xff]
        %v2772 = vld [vmem:[%s324 + $0x528] sm:$0xff]
        %v2773 = vld [vmem:[%s324 + $0x530] sm:$0xff]
        %v2774 = vld [vmem:[%s324 + $0x538] sm:$0xff]
        %v2775 = vld [vmem:[%s324 + $0x540] sm:$0xff]
        %v2776 = vld [vmem:[%s324 + $0x548] sm:$0xff]
        %v2777 = vld [vmem:[%s324 + $0x550] sm:$0xff]
        %v2778 = vld [vmem:[%s324 + $0x558] sm:$0xff]
        %v2779 = vld [vmem:[%s324 + $0x560] sm:$0xff]
        %v2780 = vld [vmem:[%s324 + $0x568] sm:$0xff]
        %v2781 = vld [vmem:[%s324 + $0x570] sm:$0xff]
        %v2782 = vld [vmem:[%s324 + $0x578] sm:$0xff]
        %v2783 = vld [vmem:[%s324 + $0x580] sm:$0xff]
        %v2784 = vld [vmem:[%s324 + $0x588] sm:$0xff]
        %v2785 = vld [vmem:[%s324 + $0x590] sm:$0xff]
        %v2786 = vld [vmem:[%s324 + $0x598] sm:$0xff]
        %v2787 = vld [vmem:[%s324 + $0x5a0] sm:$0xff]
        %v2788 = vld [vmem:[%s324 + $0x5a8] sm:$0xff]
        %v2789 = vld [vmem:[%s324 + $0x5b0] sm:$0xff]
        %v2790 = vld [vmem:[%s324 + $0x5b8] sm:$0xff]
        %v2791 = vld [vmem:[%s324 + $0x5c0] sm:$0xff]
        %v2792 = vld [vmem:[%s324 + $0x5c8] sm:$0xff]
        %v2793 = vld [vmem:[%s324 + $0x5d0] sm:$0xff]
        %v2794 = vld [vmem:[%s324 + $0x5d8] sm:$0xff]
        %v2795 = vld [vmem:[%s324 + $0x5e0] sm:$0xff]
        %v2796 = vld [vmem:[%s324 + $0x5e8] sm:$0xff]
        %v2797 = vld [vmem:[%s324 + $0x5f0] sm:$0xff]
        %v2798 = vld [vmem:[%s324 + $0x5f8] sm:$0xff]
        %v2799 = vld [vmem:[%s324 + $0x600] sm:$0xff]
        %v2800 = vld [vmem:[%s324 + $0x608] sm:$0xff]
        %v2801 = vld [vmem:[%s324 + $0x610] sm:$0xff]
        %v2802 = vld [vmem:[%s324 + $0x618] sm:$0xff]
        %v2803 = vld [vmem:[%s324 + $0x620] sm:$0xff]
        %v2804 = vld [vmem:[%s324 + $0x628] sm:$0xff]
        %v2805 = vld [vmem:[%s324 + $0x630] sm:$0xff]
        %v2806 = vld [vmem:[%s324 + $0x638] sm:$0xff]
        %v2807 = vld [vmem:[%s324 + $0x640] sm:$0xff]
        %v2808 = vld [vmem:[%s324 + $0x648] sm:$0xff]
        %v2809 = vld [vmem:[%s324 + $0x650] sm:$0xff]
        %v2810 = vld [vmem:[%s324 + $0x658] sm:$0xff]
        %v2811 = vld [vmem:[%s324 + $0x660] sm:$0xff]
        %v2812 = vld [vmem:[%s324 + $0x668] sm:$0xff]
        %v2813 = vld [vmem:[%s324 + $0x670] sm:$0xff]
        %v2814 = vld [vmem:[%s324 + $0x678] sm:$0xff]
        %v2815 = vld [vmem:[%s324 + $0x680] sm:$0xff]
        %v2816 = vld [vmem:[%s324 + $0x688] sm:$0xff]
        %v2817 = vld [vmem:[%s324 + $0x690] sm:$0xff]
        %v2818 = vld [vmem:[%s324 + $0x698] sm:$0xff]
        %v2819 = vld [vmem:[%s324 + $0x6a0] sm:$0xff]
        %v2820 = vld [vmem:[%s324 + $0x6a8] sm:$0xff]
        %v2821 = vld [vmem:[%s324 + $0x6b0] sm:$0xff]
        %v2822 = vld [vmem:[%s324 + $0x6b8] sm:$0xff]
        %v2823 = vld [vmem:[%s324 + $0x6c0] sm:$0xff]
        %v2824 = vld [vmem:[%s324 + $0x6c8] sm:$0xff]
        %v2825 = vld [vmem:[%s324 + $0x6d0] sm:$0xff]
        %v2826 = vld [vmem:[%s324 + $0x6d8] sm:$0xff]
        %v2827 = vld [vmem:[%s324 + $0x6e0] sm:$0xff]
        %v2828 = vld [vmem:[%s324 + $0x6e8] sm:$0xff]
        %v2829 = vld [vmem:[%s324 + $0x6f0] sm:$0xff]
        %v2830 = vld [vmem:[%s324 + $0x6f8] sm:$0xff]
        %v2831 = vld [vmem:[%s324 + $0x700] sm:$0xff]
        %v2832 = vld [vmem:[%s324 + $0x708] sm:$0xff]
        %v2833 = vld [vmem:[%s324 + $0x710] sm:$0xff]
        %v2834 = vld [vmem:[%s324 + $0x718] sm:$0xff]
        %v2835 = vld [vmem:[%s324 + $0x720] sm:$0xff]
        %v2836 = vld [vmem:[%s324 + $0x728] sm:$0xff]
        %v2837 = vld [vmem:[%s324 + $0x730] sm:$0xff]
        %v2838 = vld [vmem:[%s324 + $0x738] sm:$0xff]
        %v2839 = vld [vmem:[%s324 + $0x740] sm:$0xff]
        %v2840 = vld [vmem:[%s324 + $0x748] sm:$0xff]
        %v2841 = vld [vmem:[%s324 + $0x750] sm:$0xff]
        %v2842 = vld [vmem:[%s324 + $0x758] sm:$0xff]
        %v2843 = vld [vmem:[%s324 + $0x760] sm:$0xff]
        %v2844 = vld [vmem:[%s324 + $0x768] sm:$0xff]
        %v2845 = vld [vmem:[%s324 + $0x770] sm:$0xff]
        %v2846 = vld [vmem:[%s324 + $0x778] sm:$0xff]
        %v2847 = vld [vmem:[%s324 + $0x780] sm:$0xff]
        %v2848 = vld [vmem:[%s324 + $0x788] sm:$0xff]
        %v2849 = vld [vmem:[%s324 + $0x790] sm:$0xff]
        %v2850 = vld [vmem:[%s324 + $0x798] sm:$0xff]
        %v2851 = vld [vmem:[%s324 + $0x7a0] sm:$0xff]
        %v2852 = vld [vmem:[%s324 + $0x7a8] sm:$0xff]
        %v2853 = vld [vmem:[%s324 + $0x7b0] sm:$0xff]
        %v2854 = vld [vmem:[%s324 + $0x7b8] sm:$0xff]
        %v2855 = vld [vmem:[%s324 + $0x7c0] sm:$0xff]
        %v2856 = vld [vmem:[%s324 + $0x7c8] sm:$0xff]
        %v2857 = vld [vmem:[%s324 + $0x7d0] sm:$0xff]
        %v2858 = vld [vmem:[%s324 + $0x7d8] sm:$0xff]
        %v2859 = vld [vmem:[%s324 + $0x7e0] sm:$0xff]
        %v2860 = vld [vmem:[%s324 + $0x7e8] sm:$0xff]
        %v2861 = vld [vmem:[%s324 + $0x7f0] sm:$0xff]
        %v2862 = vld [vmem:[%s324 + $0x7f8] sm:$0xff]
        %v2863 = vld [vmem:[%s324 + $0x800] sm:$0xff]
        %v2864 = vld [vmem:[%s324 + $0x808] sm:$0xff]
        %v2865 = vld [vmem:[%s324 + $0x810] sm:$0xff]
        %v2866 = vld [vmem:[%s324 + $0x818] sm:$0xff]
        %v2867 = vld [vmem:[%s324 + $0x820] sm:$0xff]
        %v2868 = vld [vmem:[%s324 + $0x828] sm:$0xff]
        %v2869 = vld [vmem:[%s324 + $0x830] sm:$0xff]
        %v2870 = vld [vmem:[%s324 + $0x838] sm:$0xff]
        %v2871 = vld [vmem:[%s324 + $0x840] sm:$0xff]
        %v2872 = vld [vmem:[%s324 + $0x848] sm:$0xff]
        %v2873 = vld [vmem:[%s324 + $0x850] sm:$0xff]
        %v2874 = vld [vmem:[%s324 + $0x858] sm:$0xff]
        %v2875 = vld [vmem:[%s324 + $0x860] sm:$0xff]
        %v2876 = vld [vmem:[%s324 + $0x868] sm:$0xff]
        %v2877 = vld [vmem:[%s324 + $0x870] sm:$0xff]
        %v2878 = vld [vmem:[%s324 + $0x878] sm:$0xff]
        %v2879 = vld [vmem:[%s324 + $0x880] sm:$0xff]
        %v2880 = vld [vmem:[%s324 + $0x888] sm:$0xff]
        %v2881 = vld [vmem:[%s324 + $0x890] sm:$0xff]
        %v2882 = vld [vmem:[%s324 + $0x898] sm:$0xff]
        %v2883 = vld [vmem:[%s324 + $0x8a0] sm:$0xff]
        %v2884 = vld [vmem:[%s324 + $0x8a8] sm:$0xff]
        %v2885 = vld [vmem:[%s324 + $0x8b0] sm:$0xff]
        %v2886 = vld [vmem:[%s324 + $0x8b8] sm:$0xff]
        %v2887 = vld [vmem:[%s324 + $0x8c0] sm:$0xff]
        %v2888 = vld [vmem:[%s324 + $0x8c8] sm:$0xff]
        %v2889 = vld [vmem:[%s324 + $0x8d0] sm:$0xff]
        %v2890 = vld [vmem:[%s324 + $0x8d8] sm:$0xff]
        %v2891 = vld [vmem:[%s324 + $0x8e0] sm:$0xff]
        %v2892 = vld [vmem:[%s324 + $0x8e8] sm:$0xff]
        %v2893 = vld [vmem:[%s324 + $0x8f0] sm:$0xff]
        %v2894 = vld [vmem:[%s324 + $0x8f8] sm:$0xff]
        %v2895 = vld [vmem:[%s324 + $0x900] sm:$0xff]
        %v2896 = vld [vmem:[%s324 + $0x908] sm:$0xff]
        %v2897 = vld [vmem:[%s324 + $0x910] sm:$0xff]
        %v2898 = vld [vmem:[%s324 + $0x918] sm:$0xff]
        %v2899 = vld [vmem:[%s324 + $0x920] sm:$0xff]
        %v2900 = vld [vmem:[%s324 + $0x928] sm:$0xff]
        %v2901 = vld [vmem:[%s324 + $0x930] sm:$0xff]
        %v2902 = vld [vmem:[%s324 + $0x938] sm:$0xff]
        %v2903 = vld [vmem:[%s324 + $0x940] sm:$0xff]
        %v2904 = vld [vmem:[%s324 + $0x948] sm:$0xff]
        %v2905 = vld [vmem:[%s324 + $0x950] sm:$0xff]
        %v2906 = vld [vmem:[%s324 + $0x958] sm:$0xff]
        %v2907 = vld [vmem:[%s324 + $0x960] sm:$0xff]
        %v2908 = vld [vmem:[%s324 + $0x968] sm:$0xff]
        %v2909 = vld [vmem:[%s324 + $0x970] sm:$0xff]
        %v2910 = vld [vmem:[%s324 + $0x978] sm:$0xff]
        %v2911 = vld [vmem:[%s324 + $0x980] sm:$0xff]
        %v2912 = vld [vmem:[%s324 + $0x988] sm:$0xff]
        %v2913 = vld [vmem:[%s324 + $0x990] sm:$0xff]
        %v2914 = vld [vmem:[%s324 + $0x998] sm:$0xff]
        %v2915 = vld [vmem:[%s324 + $0x9a0] sm:$0xff]
        %v2916 = vld [vmem:[%s324 + $0x9a8] sm:$0xff]
        %v2917 = vld [vmem:[%s324 + $0x9b0] sm:$0xff]
        %v2918 = vld [vmem:[%s324 + $0x9b8] sm:$0xff]
        %v2919 = vld [vmem:[%s324 + $0x9c0] sm:$0xff]
        %v2920 = vld [vmem:[%s324 + $0x9c8] sm:$0xff]
        %v2921 = vld [vmem:[%s324 + $0x9d0] sm:$0xff]
        %v2922 = vld [vmem:[%s324 + $0x9d8] sm:$0xff]
        %v2923 = vld [vmem:[%s324 + $0x9e0] sm:$0xff]
        %v2924 = vld [vmem:[%s324 + $0x9e8] sm:$0xff]
        %v2925 = vld [vmem:[%s324 + $0x9f0] sm:$0xff]
        %v2926 = vld [vmem:[%s324 + $0x9f8] sm:$0xff]
        %v2927 = vld [vmem:[%s324 + $0xa00] sm:$0xff]
        %v2928 = vld [vmem:[%s324 + $0xa08] sm:$0xff]
        %v2929 = vld [vmem:[%s324 + $0xa10] sm:$0xff]
        %v2930 = vld [vmem:[%s324 + $0xa18] sm:$0xff]
        %v2931 = vld [vmem:[%s324 + $0xa20] sm:$0xff]
        %v2932 = vld [vmem:[%s324 + $0xa28] sm:$0xff]
        %v2933 = vld [vmem:[%s324 + $0xa30] sm:$0xff]
        %v2934 = vld [vmem:[%s324 + $0xa38] sm:$0xff]
        %v2935 = vld [vmem:[%s324 + $0xa40] sm:$0xff]
        %v2936 = vld [vmem:[%s324 + $0xa48] sm:$0xff]
        %v2937 = vld [vmem:[%s324 + $0xa50] sm:$0xff]
        %v2938 = vld [vmem:[%s324 + $0xa58] sm:$0xff]
        %v2939 = vld [vmem:[%s324 + $0xa60] sm:$0xff]
        %v2940 = vld [vmem:[%s324 + $0xa68] sm:$0xff]
        %v2941 = vld [vmem:[%s324 + $0xa70] sm:$0xff]
        %v2942 = vld [vmem:[%s324 + $0xa78] sm:$0xff]
        %v2943 = vld [vmem:[%s324 + $0xa80] sm:$0xff]
        %v2944 = vld [vmem:[%s324 + $0xa88] sm:$0xff]
        %v2945 = vld [vmem:[%s324 + $0xa90] sm:$0xff]
        %v2946 = vld [vmem:[%s324 + $0xa98] sm:$0xff]
        %v2947 = vld [vmem:[%s324 + $0xaa0] sm:$0xff]
        %v2948 = vld [vmem:[%s324 + $0xaa8] sm:$0xff]
        %v2949 = vld [vmem:[%s324 + $0xab0] sm:$0xff]
        %v2950 = vld [vmem:[%s324 + $0xab8] sm:$0xff]
        %v2951 = vld [vmem:[%s324 + $0xac0] sm:$0xff]
        %v2952 = vld [vmem:[%s324 + $0xac8] sm:$0xff]
        %v2953 = vld [vmem:[%s324 + $0xad0] sm:$0xff]
        %v2954 = vld [vmem:[%s324 + $0xad8] sm:$0xff]
        %v2955 = vld [vmem:[%s324 + $0xae0] sm:$0xff]
        %v2956 = vld [vmem:[%s324 + $0xae8] sm:$0xff]
        %v2957 = vld [vmem:[%s324 + $0xaf0] sm:$0xff]
        %v2958 = vld [vmem:[%s324 + $0xaf8] sm:$0xff]
        %v2959 = vld [vmem:[%s324 + $0xb00] sm:$0xff]
        %v2960 = vld [vmem:[%s324 + $0xb08] sm:$0xff]
        %v2961 = vld [vmem:[%s324 + $0xb10] sm:$0xff]
        %v2962 = vld [vmem:[%s324 + $0xb18] sm:$0xff]
        %v2963 = vld [vmem:[%s324 + $0xb20] sm:$0xff]
        %v2964 = vld [vmem:[%s324 + $0xb28] sm:$0xff]
        %v2965 = vld [vmem:[%s324 + $0xb30] sm:$0xff]
        %v2966 = vld [vmem:[%s324 + $0xb38] sm:$0xff]
        %v2967 = vld [vmem:[%s324 + $0xb40] sm:$0xff]
        %v2968 = vld [vmem:[%s324 + $0xb48] sm:$0xff]
        %v2969 = vld [vmem:[%s324 + $0xb50] sm:$0xff]
        %v2970 = vld [vmem:[%s324 + $0xb58] sm:$0xff]
        %v2971 = vld [vmem:[%s324 + $0xb60] sm:$0xff]
        %v2972 = vld [vmem:[%s324 + $0xb68] sm:$0xff]
        %v2973 = vld [vmem:[%s324 + $0xb70] sm:$0xff]
        %v2974 = vld [vmem:[%s324 + $0xb78] sm:$0xff]
        %v2975 = vld [vmem:[%s324 + $0xb80] sm:$0xff]
        %v2976 = vld [vmem:[%s324 + $0xb88] sm:$0xff]
        %v2977 = vld [vmem:[%s324 + $0xb90] sm:$0xff]
        %v2978 = vld [vmem:[%s324 + $0xb98] sm:$0xff]
        %v2979 = vld [vmem:[%s324 + $0xba0] sm:$0xff]
        %v2980 = vld [vmem:[%s324 + $0xba8] sm:$0xff]
        %v2981 = vld [vmem:[%s324 + $0xbb0] sm:$0xff]
        %v2982 = vld [vmem:[%s324 + $0xbb8] sm:$0xff]
        %v2983 = vld [vmem:[%s324 + $0xbc0] sm:$0xff]
        %v2984 = vld [vmem:[%s324 + $0xbc8] sm:$0xff]
        %v2985 = vld [vmem:[%s324 + $0xbd0] sm:$0xff]
        %v2986 = vld [vmem:[%s324 + $0xbd8] sm:$0xff]
        %v2987 = vld [vmem:[%s324 + $0xbe0] sm:$0xff]
        %v2988 = vld [vmem:[%s324 + $0xbe8] sm:$0xff]
        %v2989 = vld [vmem:[%s324 + $0xbf0] sm:$0xff]
        %v2990 = vld [vmem:[%s324 + $0xbf8] sm:$0xff]
        %v2991 = vld [vmem:[%s324 + $0xc00] sm:$0xff]
        %v2992 = vld [vmem:[%s324 + $0xc08] sm:$0xff]
        %v2993 = vld [vmem:[%s324 + $0xc10] sm:$0xff]
        %v2994 = vld [vmem:[%s324 + $0xc18] sm:$0xff]
        %v2995 = vld [vmem:[%s324 + $0xc20] sm:$0xff]
        %v2996 = vld [vmem:[%s324 + $0xc28] sm:$0xff]
        %v2997 = vld [vmem:[%s324 + $0xc30] sm:$0xff]
        %v2998 = vld [vmem:[%s324 + $0xc38] sm:$0xff]
        %v2999 = vld [vmem:[%s324 + $0xc40] sm:$0xff]
        %v3000 = vld [vmem:[%s324 + $0xc48] sm:$0xff]
        %v3001 = vld [vmem:[%s324 + $0xc50] sm:$0xff]
        %v3002 = vld [vmem:[%s324 + $0xc58] sm:$0xff]
        %v3003 = vld [vmem:[%s324 + $0xc60] sm:$0xff]
        %v3004 = vld [vmem:[%s324 + $0xc68] sm:$0xff]
        %v3005 = vld [vmem:[%s324 + $0xc70] sm:$0xff]
        %v3006 = vld [vmem:[%s324 + $0xc78] sm:$0xff]
        %v3007 = vld [vmem:[%s324 + $0xc80] sm:$0xff]
        %v3008 = vld [vmem:[%s324 + $0xc88] sm:$0xff]
        %v3009 = vld [vmem:[%s324 + $0xc90] sm:$0xff]
        %v3010 = vld [vmem:[%s324 + $0xc98] sm:$0xff]
        %v3011 = vld [vmem:[%s324 + $0xca0] sm:$0xff]
        %v3012 = vld [vmem:[%s324 + $0xca8] sm:$0xff]
        %v3013 = vld [vmem:[%s324 + $0xcb0] sm:$0xff]
        %v3014 = vld [vmem:[%s324 + $0xcb8] sm:$0xff]
        %v3015 = vld [vmem:[%s324 + $0xcc0] sm:$0xff]
        %v3016 = vld [vmem:[%s324 + $0xcc8] sm:$0xff]
        %v3017 = vld [vmem:[%s324 + $0xcd0] sm:$0xff]
        %v3018 = vld [vmem:[%s324 + $0xcd8] sm:$0xff]
        %v3019 = vld [vmem:[%s324 + $0xce0] sm:$0xff]
        %v3020 = vld [vmem:[%s324 + $0xce8] sm:$0xff]
        %v3021 = vld [vmem:[%s324 + $0xcf0] sm:$0xff]
        %v3022 = vld [vmem:[%s324 + $0xcf8] sm:$0xff]
        %v3023 = vld [vmem:[%s324 + $0xd00] sm:$0xff]
        %v3024 = vld [vmem:[%s324 + $0xd08] sm:$0xff]
        %v3025 = vld [vmem:[%s324 + $0xd10] sm:$0xff]
        %v3026 = vld [vmem:[%s324 + $0xd18] sm:$0xff]
        %v3027 = vld [vmem:[%s324 + $0xd20] sm:$0xff]
        %v3028 = vld [vmem:[%s324 + $0xd28] sm:$0xff]
        %v3029 = vld [vmem:[%s324 + $0xd30] sm:$0xff]
        %v3030 = vld [vmem:[%s324 + $0xd38] sm:$0xff]
        %v3031 = vld [vmem:[%s324 + $0xd40] sm:$0xff]
        %v3032 = vld [vmem:[%s324 + $0xd48] sm:$0xff]
        %v3033 = vld [vmem:[%s324 + $0xd50] sm:$0xff]
        %v3034 = vld [vmem:[%s324 + $0xd58] sm:$0xff]
        %v3035 = vld [vmem:[%s324 + $0xd60] sm:$0xff]
        %v3036 = vld [vmem:[%s324 + $0xd68] sm:$0xff]
        %v3037 = vld [vmem:[%s324 + $0xd70] sm:$0xff]
        %v3038 = vld [vmem:[%s324 + $0xd78] sm:$0xff]
        %v3039 = vld [vmem:[%s324 + $0xd80] sm:$0xff]
        %v3040 = vld [vmem:[%s324 + $0xd88] sm:$0xff]
        %v3041 = vld [vmem:[%s324 + $0xd90] sm:$0xff]
        %v3042 = vld [vmem:[%s324 + $0xd98] sm:$0xff]
        %v3043 = vld [vmem:[%s324 + $0xda0] sm:$0xff]
        %v3044 = vld [vmem:[%s324 + $0xda8] sm:$0xff]
        %v3045 = vld [vmem:[%s324 + $0xdb0] sm:$0xff]
        %v3046 = vld [vmem:[%s324 + $0xdb8] sm:$0xff]
        %v3047 = vld [vmem:[%s324 + $0xdc0] sm:$0xff]
        %v3048 = vld [vmem:[%s324 + $0xdc8] sm:$0xff]
        %v3049 = vld [vmem:[%s324 + $0xdd0] sm:$0xff]
        %v3050 = vld [vmem:[%s324 + $0xdd8] sm:$0xff]
        %v3051 = vld [vmem:[%s324 + $0xde0] sm:$0xff]
        %v3052 = vld [vmem:[%s324 + $0xde8] sm:$0xff]
        %v3053 = vld [vmem:[%s324 + $0xdf0] sm:$0xff]
        %v3054 = vld [vmem:[%s324 + $0xdf8] sm:$0xff]
        %v3055 = vld [vmem:[%s324 + $0xe00] sm:$0xff]
        %v3056 = vld [vmem:[%s324 + $0xe08] sm:$0xff]
        %v3057 = vld [vmem:[%s324 + $0xe10] sm:$0xff]
        %v3058 = vld [vmem:[%s324 + $0xe18] sm:$0xff]
        %v3059 = vld [vmem:[%s324 + $0xe20] sm:$0xff]
        %v3060 = vld [vmem:[%s324 + $0xe28] sm:$0xff]
        %v3061 = vld [vmem:[%s324 + $0xe30] sm:$0xff]
        %v3062 = vld [vmem:[%s324 + $0xe38] sm:$0xff]
        %v3063 = vld [vmem:[%s324 + $0xe40] sm:$0xff]
        %v3064 = vld [vmem:[%s324 + $0xe48] sm:$0xff]
        %v3065 = vld [vmem:[%s324 + $0xe50] sm:$0xff]
        %v3066 = vld [vmem:[%s324 + $0xe58] sm:$0xff]
        %v3067 = vld [vmem:[%s324 + $0xe60] sm:$0xff]
        %v3068 = vld [vmem:[%s324 + $0xe68] sm:$0xff]
        %v3069 = vld [vmem:[%s324 + $0xe70] sm:$0xff]
        %v3070 = vld [vmem:[%s324 + $0xe78] sm:$0xff]
        %v3071 = vld [vmem:[%s324 + $0xe80] sm:$0xff]
        %v3072 = vld [vmem:[%s324 + $0xe88] sm:$0xff]
        %v3073 = vld [vmem:[%s324 + $0xe90] sm:$0xff]
        %v3074 = vld [vmem:[%s324 + $0xe98] sm:$0xff]
        %v3075 = vld [vmem:[%s324 + $0xea0] sm:$0xff]
        %v3076 = vld [vmem:[%s324 + $0xea8] sm:$0xff]
        %v3077 = vld [vmem:[%s324 + $0xeb0] sm:$0xff]
        %v3078 = vld [vmem:[%s324 + $0xeb8] sm:$0xff]
        %v3079 = vld [vmem:[%s324 + $0xec0] sm:$0xff]
        %v3080 = vld [vmem:[%s324 + $0xec8] sm:$0xff]
        %v3081 = vld [vmem:[%s324 + $0xed0] sm:$0xff]
        %v3082 = vld [vmem:[%s324 + $0xed8] sm:$0xff]
        %v3083 = vld [vmem:[%s324 + $0xee0] sm:$0xff]
        %v3084 = vld [vmem:[%s324 + $0xee8] sm:$0xff]
        %v3085 = vld [vmem:[%s324 + $0xef0] sm:$0xff]
        %v3086 = vld [vmem:[%s324 + $0xef8] sm:$0xff]
        %v3087 = vld [vmem:[%s324 + $0xf00] sm:$0xff]
        %v3088 = vld [vmem:[%s324 + $0xf08] sm:$0xff]
        %v3089 = vld [vmem:[%s324 + $0xf10] sm:$0xff]
        %v3090 = vld [vmem:[%s324 + $0xf18] sm:$0xff]
        %v3091 = vld [vmem:[%s324 + $0xf20] sm:$0xff]
        %v3092 = vld [vmem:[%s324 + $0xf28] sm:$0xff]
        %v3093 = vld [vmem:[%s324 + $0xf30] sm:$0xff]
        %v3094 = vld [vmem:[%s324 + $0xf38] sm:$0xff]
        %v3095 = vld [vmem:[%s324 + $0xf40] sm:$0xff]
        %v3096 = vld [vmem:[%s324 + $0xf48] sm:$0xff]
        %v3097 = vld [vmem:[%s324 + $0xf50] sm:$0xff]
        %v3098 = vld [vmem:[%s324 + $0xf58] sm:$0xff]
        %v3099 = vld [vmem:[%s324 + $0xf60] sm:$0xff]
        %v3100 = vld [vmem:[%s324 + $0xf68] sm:$0xff]
        %v3101 = vld [vmem:[%s324 + $0xf70] sm:$0xff]
        %v3102 = vld [vmem:[%s324 + $0xf78] sm:$0xff]
        %v3103 = vld [vmem:[%s324 + $0xf80] sm:$0xff]
        %v3104 = vld [vmem:[%s324 + $0xf88] sm:$0xff]
        %v3105 = vld [vmem:[%s324 + $0xf90] sm:$0xff]
        %v3106 = vld [vmem:[%s324 + $0xf98] sm:$0xff]
        %v3107 = vld [vmem:[%s324 + $0xfa0] sm:$0xff]
        %v3108 = vld [vmem:[%s324 + $0xfa8] sm:$0xff]
        %v3109 = vld [vmem:[%s324 + $0xfb0] sm:$0xff]
        %v3110 = vld [vmem:[%s324 + $0xfb8] sm:$0xff]
        %v3111 = vld [vmem:[%s324 + $0xfc0] sm:$0xff]
        %v3112 = vld [vmem:[%s324 + $0xfc8] sm:$0xff]
        %v3113 = vld [vmem:[%s324 + $0xfd0] sm:$0xff]
        %v3114 = vld [vmem:[%s324 + $0xfd8] sm:$0xff]
        %v3115 = vld [vmem:[%s324 + $0xfe0] sm:$0xff]
        %v3116 = vld [vmem:[%s324 + $0xfe8] sm:$0xff]
        %v3117 = vld [vmem:[%s324 + $0xff0] sm:$0xff]
        %v3118 = vld [vmem:[%s324 + $0xff8] sm:$0xff]
        %v3119 = vld [vmem:[%s324 + $0x1000] sm:$0xff]
        %v3120 = vld [vmem:[%s324 + $0x1008] sm:$0xff]
        %v3121 = vld [vmem:[%s324 + $0x1010] sm:$0xff]
        %v3122 = vld [vmem:[%s324 + $0x1018] sm:$0xff]
        %v3123 = vld [vmem:[%s324 + $0x1020] sm:$0xff]
        %v3124 = vld [vmem:[%s324 + $0x1028] sm:$0xff]
        %v3125 = vld [vmem:[%s324 + $0x1030] sm:$0xff]
        %v3126 = vld [vmem:[%s324 + $0x1038] sm:$0xff]
        %v3127 = vld [vmem:[%s324 + $0x1040] sm:$0xff]
        %v3128 = vld [vmem:[%s324 + $0x1048] sm:$0xff]
        %v3129 = vld [vmem:[%s324 + $0x1050] sm:$0xff]
        %v3130 = vld [vmem:[%s324 + $0x1058] sm:$0xff]
        %v3131 = vld [vmem:[%s324 + $0x1060] sm:$0xff]
        %v3132 = vld [vmem:[%s324 + $0x1068] sm:$0xff]
        %v3133 = vld [vmem:[%s324 + $0x1070] sm:$0xff]
        %v3134 = vld [vmem:[%s324 + $0x1078] sm:$0xff]
        %v3135 = vld [vmem:[%s324 + $0x1080] sm:$0xff]
        %v3136 = vld [vmem:[%s324 + $0x1088] sm:$0xff]
        %v3137 = vld [vmem:[%s324 + $0x1090] sm:$0xff]
        %v3138 = vld [vmem:[%s324 + $0x1098] sm:$0xff]
        %v3139 = vld [vmem:[%s324 + $0x10a0] sm:$0xff]
        %v3140 = vld [vmem:[%s324 + $0x10a8] sm:$0xff]
        %v3141 = vld [vmem:[%s324 + $0x10b0] sm:$0xff]
        %v3142 = vld [vmem:[%s324 + $0x10b8] sm:$0xff]
        %v3143 = vld [vmem:[%s324 + $0x10c0] sm:$0xff]
        %v3144 = vld [vmem:[%s324 + $0x10c8] sm:$0xff]
        %v3145 = vld [vmem:[%s324 + $0x10d0] sm:$0xff]
        %v3146 = vld [vmem:[%s324 + $0x10d8] sm:$0xff]
        %v3147 = vld [vmem:[%s324 + $0x10e0] sm:$0xff]
        %v3148 = vld [vmem:[%s324 + $0x10e8] sm:$0xff]
        %v3149 = vld [vmem:[%s324 + $0x10f0] sm:$0xff]
        %v3150 = vld [vmem:[%s324 + $0x10f8] sm:$0xff]
        %v3151 = vld [vmem:[%s324 + $0x1100] sm:$0xff]
        %v3152 = vld [vmem:[%s324 + $0x1108] sm:$0xff]
        %v3153 = vld [vmem:[%s324 + $0x1110] sm:$0xff]
        %v3154 = vld [vmem:[%s324 + $0x1118] sm:$0xff]
        %v3155 = vld [vmem:[%s324 + $0x1120] sm:$0xff]
        %v3156 = vld [vmem:[%s324 + $0x1128] sm:$0xff]
        %v3157 = vld [vmem:[%s324 + $0x1130] sm:$0xff]
        %v3158 = vld [vmem:[%s324 + $0x1138] sm:$0xff]
        %v3159 = vld [vmem:[%s324 + $0x1140] sm:$0xff]
        %v3160 = vld [vmem:[%s324 + $0x1148] sm:$0xff]
        %v3161 = vld [vmem:[%s324 + $0x1150] sm:$0xff]
        %v3162 = vld [vmem:[%s324 + $0x1158] sm:$0xff]
        %v3163 = vld [vmem:[%s324 + $0x1160] sm:$0xff]
        %v3164 = vld [vmem:[%s324 + $0x1168] sm:$0xff]
        %v3165 = vld [vmem:[%s324 + $0x1170] sm:$0xff]
        %v3166 = vld [vmem:[%s324 + $0x1178] sm:$0xff]
        %v3167 = vld [vmem:[%s324 + $0x1180] sm:$0xff]
        %v3168 = vld [vmem:[%s324 + $0x1188] sm:$0xff]
        %v3169 = vld [vmem:[%s324 + $0x1190] sm:$0xff]
        %v3170 = vld [vmem:[%s324 + $0x1198] sm:$0xff]
        %v3171 = vld [vmem:[%s324 + $0x11a0] sm:$0xff]
        %v3172 = vld [vmem:[%s324 + $0x11a8] sm:$0xff]
        %v3173 = vld [vmem:[%s324 + $0x11b0] sm:$0xff]
        %v3174 = vld [vmem:[%s324 + $0x11b8] sm:$0xff]
        %v3175 = vld [vmem:[%s324 + $0x11c0] sm:$0xff]
        %v3176 = vld [vmem:[%s324 + $0x11c8] sm:$0xff]
        %v3177 = vld [vmem:[%s324 + $0x11d0] sm:$0xff]
        %v3178 = vld [vmem:[%s324 + $0x11d8] sm:$0xff]
        %v3179 = vld [vmem:[%s324 + $0x11e0] sm:$0xff]
        %v3180 = vld [vmem:[%s324 + $0x11e8] sm:$0xff]
        %v3181 = vld [vmem:[%s324 + $0x11f0] sm:$0xff]
        %v3182 = vld [vmem:[%s324 + $0x11f8] sm:$0xff]
        %v3183 = vld [vmem:[%s324 + $0x1200] sm:$0xff]
        %v3184 = vld [vmem:[%s324 + $0x1208] sm:$0xff]
        %v3185 = vld [vmem:[%s324 + $0x1210] sm:$0xff]
        %v3186 = vld [vmem:[%s324 + $0x1218] sm:$0xff]
        %v3187 = vld [vmem:[%s324 + $0x1220] sm:$0xff]
        %v3188 = vld [vmem:[%s324 + $0x1228] sm:$0xff]
        %v3189 = vld [vmem:[%s324 + $0x1230] sm:$0xff]
        %v3190 = vld [vmem:[%s324 + $0x1238] sm:$0xff]
        %v3191 = vld [vmem:[%s324 + $0x1240] sm:$0xff]
        %v3192 = vld [vmem:[%s324 + $0x1248] sm:$0xff]
        %v3193 = vld [vmem:[%s324 + $0x1250] sm:$0xff]
        %v3194 = vld [vmem:[%s324 + $0x1258] sm:$0xff]
        %v3195 = vld [vmem:[%s324 + $0x1260] sm:$0xff]
        %v3196 = vld [vmem:[%s324 + $0x1268] sm:$0xff]
        %v3197 = vld [vmem:[%s324 + $0x1270] sm:$0xff]
        %v3198 = vld [vmem:[%s324 + $0x1278] sm:$0xff]
        %v3199 = vld [vmem:[%s324 + $0x1280] sm:$0xff]
        %v3200 = vld [vmem:[%s324 + $0x1288] sm:$0xff]
        %v3201 = vld [vmem:[%s324 + $0x1290] sm:$0xff]
        %v3202 = vld [vmem:[%s324 + $0x1298] sm:$0xff]
        %v3203 = vld [vmem:[%s324 + $0x12a0] sm:$0xff]
        %v3204 = vld [vmem:[%s324 + $0x12a8] sm:$0xff]
        %v3205 = vld [vmem:[%s324 + $0x12b0] sm:$0xff]
        %v3206 = vld [vmem:[%s324 + $0x12b8] sm:$0xff]
        %v3207 = vld [vmem:[%s324 + $0x12c0] sm:$0xff]
        %v3208 = vld [vmem:[%s324 + $0x12c8] sm:$0xff]
        %v3209 = vld [vmem:[%s324 + $0x12d0] sm:$0xff]
        %v3210 = vld [vmem:[%s324 + $0x12d8] sm:$0xff]
        %v3211 = vld [vmem:[%s324 + $0x12e0] sm:$0xff]
        %v3212 = vld [vmem:[%s324 + $0x12e8] sm:$0xff]
        %v3213 = vld [vmem:[%s324 + $0x12f0] sm:$0xff]
        %v3214 = vld [vmem:[%s324 + $0x12f8] sm:$0xff]
        %v3215 = vld [vmem:[%s324 + $0x1300] sm:$0xff]
        %v3216 = vld [vmem:[%s324 + $0x1308] sm:$0xff]
        %v3217 = vld [vmem:[%s324 + $0x1310] sm:$0xff]
        %v3218 = vld [vmem:[%s324 + $0x1318] sm:$0xff]
        %v3219 = vld [vmem:[%s324 + $0x1320] sm:$0xff]
        %v3220 = vld [vmem:[%s324 + $0x1328] sm:$0xff]
        %v3221 = vld [vmem:[%s324 + $0x1330] sm:$0xff]
        %v3222 = vld [vmem:[%s324 + $0x1338] sm:$0xff]
        %v3223 = vld [vmem:[%s324 + $0x1340] sm:$0xff]
        %v3224 = vld [vmem:[%s324 + $0x1348] sm:$0xff]
        %v3225 = vld [vmem:[%s324 + $0x1350] sm:$0xff]
        %v3226 = vld [vmem:[%s324 + $0x1358] sm:$0xff]
        %v3227 = vld [vmem:[%s324 + $0x1360] sm:$0xff]
        %v3228 = vld [vmem:[%s324 + $0x1368] sm:$0xff]
        %v3229 = vld [vmem:[%s324 + $0x1370] sm:$0xff]
        %v3230 = vld [vmem:[%s324 + $0x1378] sm:$0xff]
        %v3231 = vld [vmem:[%s324 + $0x1380] sm:$0xff]
        %v3232 = vld [vmem:[%s324 + $0x1388] sm:$0xff]
        %v3233 = vld [vmem:[%s324 + $0x1390] sm:$0xff]
        %v3234 = vld [vmem:[%s324 + $0x1398] sm:$0xff]
        %v3235 = vld [vmem:[%s324 + $0x13a0] sm:$0xff]
        %v3236 = vld [vmem:[%s324 + $0x13a8] sm:$0xff]
        %v3237 = vld [vmem:[%s324 + $0x13b0] sm:$0xff]
        %v3238 = vld [vmem:[%s324 + $0x13b8] sm:$0xff]
        %v3239 = vld [vmem:[%s324 + $0x13c0] sm:$0xff]
        %v3240 = vld [vmem:[%s324 + $0x13c8] sm:$0xff]
        %v3241 = vld [vmem:[%s324 + $0x13d0] sm:$0xff]
        %v3242 = vld [vmem:[%s324 + $0x13d8] sm:$0xff]
        %v3243 = vld [vmem:[%s324 + $0x13e0] sm:$0xff]
        %v3244 = vld [vmem:[%s324 + $0x13e8] sm:$0xff]
        %v3245 = vld [vmem:[%s324 + $0x13f0] sm:$0xff]
        %v3246 = vld [vmem:[%s324 + $0x13f8] sm:$0xff]
        %v3247 = vld [vmem:[%s324 + $0x1400] sm:$0xff]
        %v3248 = vld [vmem:[%s324 + $0x1408] sm:$0xff]
        %v3249 = vld [vmem:[%s324 + $0x1410] sm:$0xff]
        %v3250 = vld [vmem:[%s324 + $0x1418] sm:$0xff]
        %v3251 = vld [vmem:[%s324 + $0x1420] sm:$0xff]
        %v3252 = vld [vmem:[%s324 + $0x1428] sm:$0xff]
        %v3253 = vld [vmem:[%s324 + $0x1430] sm:$0xff]
        %v3254 = vld [vmem:[%s324 + $0x1438] sm:$0xff]
        %v3255 = vld [vmem:[%s324 + $0x1440] sm:$0xff]
        %v3256 = vld [vmem:[%s324 + $0x1448] sm:$0xff]
        %v3257 = vld [vmem:[%s324 + $0x1450] sm:$0xff]
        %v3258 = vld [vmem:[%s324 + $0x1458] sm:$0xff]
        %v3259 = vld [vmem:[%s324 + $0x1460] sm:$0xff]
        %v3260 = vld [vmem:[%s324 + $0x1468] sm:$0xff]
        %v3261 = vld [vmem:[%s324 + $0x1470] sm:$0xff]
        %v3262 = vld [vmem:[%s324 + $0x1478] sm:$0xff]
        %v3263 = vld [vmem:[%s324 + $0x1480] sm:$0xff]
        %v3264 = vld [vmem:[%s324 + $0x1488] sm:$0xff]
        %v3265 = vld [vmem:[%s324 + $0x1490] sm:$0xff]
        %v3266 = vld [vmem:[%s324 + $0x1498] sm:$0xff]
        %v3267 = vld [vmem:[%s324 + $0x14a0] sm:$0xff]
        %v3268 = vld [vmem:[%s324 + $0x14a8] sm:$0xff]
        %v3269 = vld [vmem:[%s324 + $0x14b0] sm:$0xff]
        %v3270 = vld [vmem:[%s324 + $0x14b8] sm:$0xff]
        %v3271 = vld [vmem:[%s324 + $0x14c0] sm:$0xff]
        %v3272 = vld [vmem:[%s324 + $0x14c8] sm:$0xff]
        %v3273 = vld [vmem:[%s324 + $0x14d0] sm:$0xff]
        %v3274 = vld [vmem:[%s324 + $0x14d8] sm:$0xff]
        %v3275 = vld [vmem:[%s324 + $0x14e0] sm:$0xff]
        %v3276 = vld [vmem:[%s324 + $0x14e8] sm:$0xff]
        %v3277 = vld [vmem:[%s324 + $0x14f0] sm:$0xff]
        %v3278 = vld [vmem:[%s324 + $0x14f8] sm:$0xff]
        %v3279 = vld [vmem:[%s324 + $0x1500] sm:$0xff]
        %v3280 = vld [vmem:[%s324 + $0x1508] sm:$0xff]
        %v3281 = vld [vmem:[%s324 + $0x1510] sm:$0xff]
        %v3282 = vld [vmem:[%s324 + $0x1518] sm:$0xff]
        %v3283 = vld [vmem:[%s324 + $0x1520] sm:$0xff]
        %v3284 = vld [vmem:[%s324 + $0x1528] sm:$0xff]
        %v3285 = vld [vmem:[%s324 + $0x1530] sm:$0xff]
        %v3286 = vld [vmem:[%s324 + $0x1538] sm:$0xff]
        %v3287 = vld [vmem:[%s324 + $0x1540] sm:$0xff]
        %v3288 = vld [vmem:[%s324 + $0x1548] sm:$0xff]
        %v3289 = vld [vmem:[%s324 + $0x1550] sm:$0xff]
        %v3290 = vld [vmem:[%s324 + $0x1558] sm:$0xff]
        %v3291 = vld [vmem:[%s324 + $0x1560] sm:$0xff]
        %v3292 = vld [vmem:[%s324 + $0x1568] sm:$0xff]
        %v3293 = vld [vmem:[%s324 + $0x1570] sm:$0xff]
        %v3294 = vld [vmem:[%s324 + $0x1578] sm:$0xff]
        %v3295 = vld [vmem:[%s324 + $0x1580] sm:$0xff]
        %v3296 = vld [vmem:[%s324 + $0x1588] sm:$0xff]
        %v3297 = vld [vmem:[%s324 + $0x1590] sm:$0xff]
        %v3298 = vld [vmem:[%s324 + $0x1598] sm:$0xff]
        %v3299 = vld [vmem:[%s324 + $0x15a0] sm:$0xff]
        %v3300 = vld [vmem:[%s324 + $0x15a8] sm:$0xff]
        %v3301 = vld [vmem:[%s324 + $0x15b0] sm:$0xff]
        %v3302 = vld [vmem:[%s324 + $0x15b8] sm:$0xff]
        %v3303 = vld [vmem:[%s324 + $0x15c0] sm:$0xff]
        %v3304 = vld [vmem:[%s324 + $0x15c8] sm:$0xff]
        %v3305 = vld [vmem:[%s324 + $0x15d0] sm:$0xff]
        %v3306 = vld [vmem:[%s324 + $0x15d8] sm:$0xff]
        %v3307 = vld [vmem:[%s324 + $0x15e0] sm:$0xff]
        %v3308 = vld [vmem:[%s324 + $0x15e8] sm:$0xff]
        %v3309 = vld [vmem:[%s324 + $0x15f0] sm:$0xff]
        %v3310 = vld [vmem:[%s324 + $0x15f8] sm:$0xff]
        %v3311 = vld [vmem:[%s324 + $0x1600] sm:$0xff]
        %v3312 = vld [vmem:[%s324 + $0x1608] sm:$0xff]
        %v3313 = vld [vmem:[%s324 + $0x1610] sm:$0xff]
        %v3314 = vld [vmem:[%s324 + $0x1618] sm:$0xff]
        %v3315 = vld [vmem:[%s324 + $0x1620] sm:$0xff]
        %v3316 = vld [vmem:[%s324 + $0x1628] sm:$0xff]
        %v3317 = vld [vmem:[%s324 + $0x1630] sm:$0xff]
        %v3318 = vld [vmem:[%s324 + $0x1638] sm:$0xff]
        %v3319 = vld [vmem:[%s324 + $0x1640] sm:$0xff]
        %v3320 = vld [vmem:[%s324 + $0x1648] sm:$0xff]
        %v3321 = vld [vmem:[%s324 + $0x1650] sm:$0xff]
        %v3322 = vld [vmem:[%s324 + $0x1658] sm:$0xff]
        %v3323 = vld [vmem:[%s324 + $0x1660] sm:$0xff]
        %v3324 = vld [vmem:[%s324 + $0x1668] sm:$0xff]
        %v3325 = vld [vmem:[%s324 + $0x1670] sm:$0xff]
        %v3326 = vld [vmem:[%s324 + $0x1678] sm:$0xff]
        %v3327 = vld [vmem:[%s324 + $0x1680] sm:$0xff]
        %v3328 = vld [vmem:[%s324 + $0x1688] sm:$0xff]
        %v3329 = vld [vmem:[%s324 + $0x1690] sm:$0xff]
        %v3330 = vld [vmem:[%s324 + $0x1698] sm:$0xff]
        %v3331 = vld [vmem:[%s324 + $0x16a0] sm:$0xff]
        %v3332 = vld [vmem:[%s324 + $0x16a8] sm:$0xff]
        %v3333 = vld [vmem:[%s324 + $0x16b0] sm:$0xff]
        %v3334 = vld [vmem:[%s324 + $0x16b8] sm:$0xff]
        %v3335 = vld [vmem:[%s324 + $0x16c0] sm:$0xff]
        %v3336 = vld [vmem:[%s324 + $0x16c8] sm:$0xff]
        %v3337 = vld [vmem:[%s324 + $0x16d0] sm:$0xff]
        %v3338 = vld [vmem:[%s324 + $0x16d8] sm:$0xff]
        %v3339 = vld [vmem:[%s324 + $0x16e0] sm:$0xff]
        %v3340 = vld [vmem:[%s324 + $0x16e8] sm:$0xff]
        %v3341 = vld [vmem:[%s324 + $0x16f0] sm:$0xff]
        %v3342 = vld [vmem:[%s324 + $0x16f8] sm:$0xff]
        %v3343 = vld [vmem:[%s324 + $0x1700] sm:$0xff]
        %v3344 = vld [vmem:[%s324 + $0x1708] sm:$0xff]
        %v3345 = vld [vmem:[%s324 + $0x1710] sm:$0xff]
        %v3346 = vld [vmem:[%s324 + $0x1718] sm:$0xff]
        %v3347 = vld [vmem:[%s324 + $0x1720] sm:$0xff]
        %v3348 = vld [vmem:[%s324 + $0x1728] sm:$0xff]
        %v3349 = vld [vmem:[%s324 + $0x1730] sm:$0xff]
        %v3350 = vld [vmem:[%s324 + $0x1738] sm:$0xff]
        %v3351 = vld [vmem:[%s324 + $0x1740] sm:$0xff]
        %v3352 = vld [vmem:[%s324 + $0x1748] sm:$0xff]
        %v3353 = vld [vmem:[%s324 + $0x1750] sm:$0xff]
        %v3354 = vld [vmem:[%s324 + $0x1758] sm:$0xff]
        %v3355 = vld [vmem:[%s324 + $0x1760] sm:$0xff]
        %v3356 = vld [vmem:[%s324 + $0x1768] sm:$0xff]
        %v3357 = vld [vmem:[%s324 + $0x1770] sm:$0xff]
        %v3358 = vld [vmem:[%s324 + $0x1778] sm:$0xff]
        %v3359 = vld [vmem:[%s324 + $0x1780] sm:$0xff]
        %v3360 = vld [vmem:[%s324 + $0x1788] sm:$0xff]
        %v3361 = vld [vmem:[%s324 + $0x1790] sm:$0xff]
        %v3362 = vld [vmem:[%s324 + $0x1798] sm:$0xff]
        %v3363 = vld [vmem:[%s324 + $0x17a0] sm:$0xff]
        %v3364 = vld [vmem:[%s324 + $0x17a8] sm:$0xff]
        %v3365 = vld [vmem:[%s324 + $0x17b0] sm:$0xff]
        %v3366 = vld [vmem:[%s324 + $0x17b8] sm:$0xff]
        %v3367 = vld [vmem:[%s324 + $0x17c0] sm:$0xff]
        %v3368 = vld [vmem:[%s324 + $0x17c8] sm:$0xff]
        %v3369 = vld [vmem:[%s324 + $0x17d0] sm:$0xff]
        %v3370 = vld [vmem:[%s324 + $0x17d8] sm:$0xff]
        %v3371 = vld [vmem:[%s324 + $0x17e0] sm:$0xff]
        %v3372 = vld [vmem:[%s324 + $0x17e8] sm:$0xff]
        %v3373 = vld [vmem:[%s324 + $0x17f0] sm:$0xff]
        %v3374 = vld [vmem:[%s324 + $0x17f8] sm:$0xff]
        %3375 = vmatprep.subr.mxu0 %v2608
        %3376 = vmatpush1.msra.mxu0 %v2607
        %3377 = vmatprep.subr.mxu0 %v2614
        %3378 = vmatpush1.msra.mxu0 %v2613
        %3379 = vmatprep.subr.mxu0 %v2620
        %3380 = vmatpush1.msra.mxu0 %v2619
        %3381 = vmatprep.subr.mxu0 %v2626
        %3382 = vmatpush1.msra.mxu0 %v2625
        %3383 = vmatprep.subr.mxu0 %v2632
        %3384 = vmatpush1.msra.mxu0 %v2631
        %3385 = vmatprep.subr.mxu0 %v2638
        %3386 = vmatpush1.msra.mxu0 %v2637
        %3387 = vmatprep.subr.mxu0 %v2644
        %3388 = vmatpush1.msra.mxu0 %v2643
        %3389 = vmatprep.subr.mxu0 %v2650
        %3390 = vmatpush1.msra.mxu0 %v2649
        %3391 = vmatprep.subr.mxu0 %v2656
        %3392 = vmatpush1.msra.mxu0 %v2655
        %3393 = vmatprep.subr.mxu0 %v2662
        %3394 = vmatpush1.msra.mxu0 %v2661
        %3395 = vmatprep.subr.mxu0 %v2668
        %3396 = vmatpush1.msra.mxu0 %v2667
        %3397 = vmatprep.subr.mxu0 %v2674
        %3398 = vmatpush1.msra.mxu0 %v2673
        %3399 = vmatprep.subr.mxu0 %v2680
        %3400 = vmatpush1.msra.mxu0 %v2679
        %3401 = vmatprep.subr.mxu0 %v2686
        %3402 = vmatpush1.msra.mxu0 %v2685
        %3403 = vmatprep.subr.mxu0 %v2692
        %3404 = vmatpush1.msra.mxu0 %v2691
        %3405 = vmatprep.subr.mxu0 %v2698
        %3406 = vmatpush1.msra.mxu0 %v2697
        %3407 = vmatprep.subr.mxu0 %v2704
        %3408 = vmatpush1.msra.mxu0 %v2703
        %3409 = vmatprep.subr.mxu0 %v2710
        %3410 = vmatpush1.msra.mxu0 %v2709
        %3411 = vmatprep.subr.mxu0 %v2716
        %3412 = vmatpush1.msra.mxu0 %v2715
        %3413 = vmatprep.subr.mxu0 %v2722
        %3414 = vmatpush1.msra.mxu0 %v2721
        %3415 = vmatprep.subr.mxu0 %v2728
        %3416 = vmatpush1.msra.mxu0 %v2727
        %3417 = vmatprep.subr.mxu0 %v2734
        %3418 = vmatpush1.msra.mxu0 %v2733
        %3419 = vmatprep.subr.mxu0 %v2740
        %3420 = vmatpush1.msra.mxu0 %v2739
        %3421 = vmatprep.subr.mxu0 %v2746
        %3422 = vmatpush1.msra.mxu0 %v2745
        %3423 = vmatprep.subr.mxu0 %v2752
        %3424 = vmatpush1.msra.mxu0 %v2751
        %3425 = vmatprep.subr.mxu0 %v2758
        %3426 = vmatpush1.msra.mxu0 %v2757
        %3427 = vmatprep.subr.mxu0 %v2764
        %3428 = vmatpush1.msra.mxu0 %v2763
        %3429 = vmatprep.subr.mxu0 %v2770
        %3430 = vmatpush1.msra.mxu0 %v2769
        %3431 = vmatprep.subr.mxu0 %v2776
        %3432 = vmatpush1.msra.mxu0 %v2775
        %3433 = vmatprep.subr.mxu0 %v2782
        %3434 = vmatpush1.msra.mxu0 %v2781
        %3435 = vmatprep.subr.mxu0 %v2788
        %3436 = vmatpush1.msra.mxu0 %v2787
        %3437 = vmatprep.subr.mxu0 %v2794
        %3438 = vmatpush1.msra.mxu0 %v2793
        %3439 = vmatprep.mubr.f32.mxu0 %v2552
        %3440 = vmatmul.mubr.f32.gmra.mrb[0].mxu0 %v2551
        %v3441 = vpop.f32.mrb[0].mxu0
        %v3442 = vadd.f32 0.0, %v3441
        %v3443 = vpop.f32.mrb[0].mxu0
        %v3444 = vadd.f32 0.0, %v3443
        %3445 = vmatprep.mubr.f32.mxu0 %v2560
        %3446 = vmatmul.mubr.f32.gmra.mrb[0].mxu0 %v2559
        %v3447 = vpop.f32.mrb[0].mxu0
        %v3448 = vadd.f32 0.0, %v3447
        %v3449 = vpop.f32.mrb[0].mxu0
        %v3450 = vadd.f32 0.0, %v3449
        %3451 = vmatprep.mubr.f32.mxu0 %v2568
        %3452 = vmatmul.mubr.f32.gmra.mrb[0].mxu0 %v2567
        %v3453 = vpop.f32.mrb[0].mxu0
        %v3454 = vadd.f32 0.0, %v3453
        %v3455 = vpop.f32.mrb[0].mxu0
        %v3456 = vadd.f32 0.0, %v3455
        %3457 = vmatprep.mubr.f32.mxu0 %v2576
        %3458 = vmatmul.mubr.f32.gmra.mrb[0].mxu0 %v2575
        %v3459 = vpop.f32.mrb[0].mxu0
        %v3460 = vadd.f32 0.0, %v3459
        %v3461 = vpop.f32.mrb[0].mxu0
        %v3462 = vadd.f32 0.0, %v3461
        %3463 = vdwg.mxu0
        %3464 = vmatprep.subr.mxu0 %v2800
        %3465 = vmatpush1.msra.mxu0 %v2799
        %3466 = vmatprep.subr.mxu0 %v2806
        %3467 = vmatpush1.msra.mxu0 %v2805
        %3468 = vmatprep.subr.mxu0 %v2812
        %3469 = vmatpush1.msra.mxu0 %v2811
        %3470 = vmatprep.subr.mxu0 %v2818
        %3471 = vmatpush1.msra.mxu0 %v2817
        %3472 = vmatprep.subr.mxu0 %v2824
        %3473 = vmatpush1.msra.mxu0 %v2823
        %3474 = vmatprep.subr.mxu0 %v2830
        %3475 = vmatpush1.msra.mxu0 %v2829
        %3476 = vmatprep.subr.mxu0 %v2836
        %3477 = vmatpush1.msra.mxu0 %v2835
        %3478 = vmatprep.subr.mxu0 %v2842
        %3479 = vmatpush1.msra.mxu0 %v2841
        %3480 = vmatprep.subr.mxu0 %v2848
        %3481 = vmatpush1.msra.mxu0 %v2847
        %3482 = vmatprep.subr.mxu0 %v2854
        %3483 = vmatpush1.msra.mxu0 %v2853
        %3484 = vmatprep.subr.mxu0 %v2860
        %3485 = vmatpush1.msra.mxu0 %v2859
        %3486 = vmatprep.subr.mxu0 %v2866
        %3487 = vmatpush1.msra.mxu0 %v2865
        %3488 = vmatprep.subr.mxu0 %v2872
        %3489 = vmatpush1.msra.mxu0 %v2871
        %3490 = vmatprep.subr.mxu0 %v2878
        %3491 = vmatpush1.msra.mxu0 %v2877
        %3492 = vmatprep.subr.mxu0 %v2884
        %3493 = vmatpush1.msra.mxu0 %v2883
        %3494 = vmatprep.subr.mxu0 %v2890
        %3495 = vmatpush1.msra.mxu0 %v2889
        %3496 = vmatprep.subr.mxu0 %v2896
        %3497 = vmatpush1.msra.mxu0 %v2895
        %3498 = vmatprep.subr.mxu0 %v2902
        %3499 = vmatpush1.msra.mxu0 %v2901
        %3500 = vmatprep.subr.mxu0 %v2908
        %3501 = vmatpush1.msra.mxu0 %v2907
        %3502 = vmatprep.subr.mxu0 %v2914
        %3503 = vmatpush1.msra.mxu0 %v2913
        %3504 = vmatprep.subr.mxu0 %v2920
        %3505 = vmatpush1.msra.mxu0 %v2919
        %3506 = vmatprep.subr.mxu0 %v2926
        %3507 = vmatpush1.msra.mxu0 %v2925
        %3508 = vmatprep.subr.mxu0 %v2932
        %3509 = vmatpush1.msra.mxu0 %v2931
        %3510 = vmatprep.subr.mxu0 %v2938
        %3511 = vmatpush1.msra.mxu0 %v2937
        %3512 = vmatprep.subr.mxu0 %v2944
        %3513 = vmatpush1.msra.mxu0 %v2943
        %3514 = vmatprep.subr.mxu0 %v2950
        %3515 = vmatpush1.msra.mxu0 %v2949
        %3516 = vmatprep.subr.mxu0 %v2956
        %3517 = vmatpush1.msra.mxu0 %v2955
        %3518 = vmatprep.subr.mxu0 %v2962
        %3519 = vmatpush1.msra.mxu0 %v2961
        %3520 = vmatprep.subr.mxu0 %v2968
        %3521 = vmatpush1.msra.mxu0 %v2967
        %3522 = vmatprep.subr.mxu0 %v2974
        %3523 = vmatpush1.msra.mxu0 %v2973
        %3524 = vmatprep.subr.mxu0 %v2980
        %3525 = vmatpush1.msra.mxu0 %v2979
        %3526 = vmatprep.subr.mxu0 %v2986
        %3527 = vmatpush1.msra.mxu0 %v2985
        %3528 = vmatprep.mubr.f32.mxu0 %v2554
        %3529 = vmatmul.mubr.f32.gmra.mrb[0].mxu0 %v2553
        %v3530 = vpop.f32.mrb[0].mxu0
        %v3531 = vadd.f32 %v3442, %v3530
        %v3532 = vpop.f32.mrb[0].mxu0
        %v3533 = vadd.f32 %v3444, %v3532
        %3534 = vmatprep.mubr.f32.mxu0 %v2562
        %3535 = vmatmul.mubr.f32.gmra.mrb[0].mxu0 %v2561
        %v3536 = vpop.f32.mrb[0].mxu0
        %v3537 = vadd.f32 %v3448, %v3536
        %v3538 = vpop.f32.mrb[0].mxu0
        %v3539 = vadd.f32 %v3450, %v3538
        %3540 = vmatprep.mubr.f32.mxu0 %v2570
        %3541 = vmatmul.mubr.f32.gmra.mrb[0].mxu0 %v2569
        %v3542 = vpop.f32.mrb[0].mxu0
        %v3543 = vadd.f32 %v3454, %v3542
        %v3544 = vpop.f32.mrb[0].mxu0
        %v3545 = vadd.f32 %v3456, %v3544
        %3546 = vmatprep.mubr.f32.mxu0 %v2578
        %3547 = vmatmul.mubr.f32.gmra.mrb[0].mxu0 %v2577
        %v3548 = vpop.f32.mrb[0].mxu0
        %v3549 = vadd.f32 %v3460, %v3548
        %v3550 = vpop.f32.mrb[0].mxu0
        %v3551 = vadd.f32 %v3462, %v3550
        %3552 = vdwg.mxu0
        %3553 = vmatprep.subr.mxu0 %v2992
        %3554 = vmatpush1.msra.mxu0 %v2991
        %3555 = vmatprep.subr.mxu0 %v2998
        %3556 = vmatpush1.msra.mxu0 %v2997
        %3557 = vmatprep.subr.mxu0 %v3004
        %3558 = vmatpush1.msra.mxu0 %v3003
        %3559 = vmatprep.subr.mxu0 %v3010
        %3560 = vmatpush1.msra.mxu0 %v3009
        %3561 = vmatprep.subr.mxu0 %v3016
        %3562 = vmatpush1.msra.mxu0 %v3015
        %3563 = vmatprep.subr.mxu0 %v3022
        %3564 = vmatpush1.msra.mxu0 %v3021
        %3565 = vmatprep.subr.mxu0 %v3028
        %3566 = vmatpush1.msra.mxu0 %v3027
        %3567 = vmatprep.subr.mxu0 %v3034
        %3568 = vmatpush1.msra.mxu0 %v3033
        %3569 = vmatprep.subr.mxu0 %v3040
        %3570 = vmatpush1.msra.mxu0 %v3039
        %3571 = vmatprep.subr.mxu0 %v3046
        %3572 = vmatpush1.msra.mxu0 %v3045
        %3573 = vmatprep.subr.mxu0 %v3052
        %3574 = vmatpush1.msra.mxu0 %v3051
        %3575 = vmatprep.subr.mxu0 %v3058
        %3576 = vmatpush1.msra.mxu0 %v3057
        %3577 = vmatprep.subr.mxu0 %v3064
        %3578 = vmatpush1.msra.mxu0 %v3063
        %3579 = vmatprep.subr.mxu0 %v3070
        %3580 = vmatpush1.msra.mxu0 %v3069
        %3581 = vmatprep.subr.mxu0 %v3076
        %3582 = vmatpush1.msra.mxu0 %v3075
        %3583 = vmatprep.subr.mxu0 %v3082
        %3584 = vmatpush1.msra.mxu0 %v3081
        %3585 = vmatprep.subr.mxu0 %v3088
        %3586 = vmatpush1.msra.mxu0 %v3087
        %3587 = vmatprep.subr.mxu0 %v3094
        %3588 = vmatpush1.msra.mxu0 %v3093
        %3589 = vmatprep.subr.mxu0 %v3100
        %3590 = vmatpush1.msra.mxu0 %v3099
        %3591 = vmatprep.subr.mxu0 %v3106
        %3592 = vmatpush1.msra.mxu0 %v3105
        %3593 = vmatprep.subr.mxu0 %v3112
        %3594 = vmatpush1.msra.mxu0 %v3111
        %3595 = vmatprep.subr.mxu0 %v3118
        %3596 = vmatpush1.msra.mxu0 %v3117
        %3597 = vmatprep.subr.mxu0 %v3124
        %3598 = vmatpush1.msra.mxu0 %v3123
        %3599 = vmatprep.subr.mxu0 %v3130
        %3600 = vmatpush1.msra.mxu0 %v3129
        %3601 = vmatprep.subr.mxu0 %v3136
        %3602 = vmatpush1.msra.mxu0 %v3135
        %3603 = vmatprep.subr.mxu0 %v3142
        %3604 = vmatpush1.msra.mxu0 %v3141
        %3605 = vmatprep.subr.mxu0 %v3148
        %3606 = vmatpush1.msra.mxu0 %v3147
        %3607 = vmatprep.subr.mxu0 %v3154
        %3608 = vmatpush1.msra.mxu0 %v3153
        %3609 = vmatprep.subr.mxu0 %v3160
        %3610 = vmatpush1.msra.mxu0 %v3159
        %3611 = vmatprep.subr.mxu0 %v3166
        %3612 = vmatpush1.msra.mxu0 %v3165
        %3613 = vmatprep.subr.mxu0 %v3172
        %3614 = vmatpush1.msra.mxu0 %v3171
        %3615 = vmatprep.subr.mxu0 %v3178
        %3616 = vmatpush1.msra.mxu0 %v3177
        %3617 = vmatprep.mubr.f32.mxu0 %v2556
        %3618 = vmatmul.mubr.f32.gmra.mrb[0].mxu0 %v2555
        %v3619 = vpop.f32.mrb[0].mxu0
        %v3620 = vadd.f32 %v3531, %v3619
        %v3621 = vpop.f32.mrb[0].mxu0
        %v3622 = vadd.f32 %v3533, %v3621
        %3623 = vmatprep.mubr.f32.mxu0 %v2564
        %3624 = vmatmul.mubr.f32.gmra.mrb[0].mxu0 %v2563
        %v3625 = vpop.f32.mrb[0].mxu0
        %v3626 = vadd.f32 %v3537, %v3625
        %v3627 = vpop.f32.mrb[0].mxu0
        %v3628 = vadd.f32 %v3539, %v3627
        %3629 = vmatprep.mubr.f32.mxu0 %v2572
        %3630 = vmatmul.mubr.f32.gmra.mrb[0].mxu0 %v2571
        %v3631 = vpop.f32.mrb[0].mxu0
        %v3632 = vadd.f32 %v3543, %v3631
        %v3633 = vpop.f32.mrb[0].mxu0
        %v3634 = vadd.f32 %v3545, %v3633
        %3635 = vmatprep.mubr.f32.mxu0 %v2580
        %3636 = vmatmul.mubr.f32.gmra.mrb[0].mxu0 %v2579
        %v3637 = vpop.f32.mrb[0].mxu0
        %v3638 = vadd.f32 %v3549, %v3637
        %v3639 = vpop.f32.mrb[0].mxu0
        %v3640 = vadd.f32 %v3551, %v3639
        %3641 = vdwg.mxu0
        %3642 = vmatprep.subr.mxu0 %v3184
        %3643 = vmatpush1.msra.mxu0 %v3183
        %3644 = vmatprep.subr.mxu0 %v3190
        %3645 = vmatpush1.msra.mxu0 %v3189
        %3646 = vmatprep.subr.mxu0 %v3196
        %3647 = vmatpush1.msra.mxu0 %v3195
        %3648 = vmatprep.subr.mxu0 %v3202
        %3649 = vmatpush1.msra.mxu0 %v3201
        %3650 = vmatprep.subr.mxu0 %v3208
        %3651 = vmatpush1.msra.mxu0 %v3207
        %3652 = vmatprep.subr.mxu0 %v3214
        %3653 = vmatpush1.msra.mxu0 %v3213
        %3654 = vmatprep.subr.mxu0 %v3220
        %3655 = vmatpush1.msra.mxu0 %v3219
        %3656 = vmatprep.subr.mxu0 %v3226
        %3657 = vmatpush1.msra.mxu0 %v3225
        %3658 = vmatprep.subr.mxu0 %v3232
        %3659 = vmatpush1.msra.mxu0 %v3231
        %3660 = vmatprep.subr.mxu0 %v3238
        %3661 = vmatpush1.msra.mxu0 %v3237
        %3662 = vmatprep.subr.mxu0 %v3244
        %3663 = vmatpush1.msra.mxu0 %v3243
        %3664 = vmatprep.subr.mxu0 %v3250
        %3665 = vmatpush1.msra.mxu0 %v3249
        %3666 = vmatprep.subr.mxu0 %v3256
        %3667 = vmatpush1.msra.mxu0 %v3255
        %3668 = vmatprep.subr.mxu0 %v3262
        %3669 = vmatpush1.msra.mxu0 %v3261
        %3670 = vmatprep.subr.mxu0 %v3268
        %3671 = vmatpush1.msra.mxu0 %v3267
        %3672 = vmatprep.subr.mxu0 %v3274
        %3673 = vmatpush1.msra.mxu0 %v3273
        %3674 = vmatprep.subr.mxu0 %v3280
        %3675 = vmatpush1.msra.mxu0 %v3279
        %3676 = vmatprep.subr.mxu0 %v3286
        %3677 = vmatpush1.msra.mxu0 %v3285
        %3678 = vmatprep.subr.mxu0 %v3292
        %3679 = vmatpush1.msra.mxu0 %v3291
        %3680 = vmatprep.subr.mxu0 %v3298
        %3681 = vmatpush1.msra.mxu0 %v3297
        %3682 = vmatprep.subr.mxu0 %v3304
        %3683 = vmatpush1.msra.mxu0 %v3303
        %3684 = vmatprep.subr.mxu0 %v3310
        %3685 = vmatpush1.msra.mxu0 %v3309
        %3686 = vmatprep.subr.mxu0 %v3316
        %3687 = vmatpush1.msra.mxu0 %v3315
        %3688 = vmatprep.subr.mxu0 %v3322
        %3689 = vmatpush1.msra.mxu0 %v3321
        %3690 = vmatprep.subr.mxu0 %v3328
        %3691 = vmatpush1.msra.mxu0 %v3327
        %3692 = vmatprep.subr.mxu0 %v3334
        %3693 = vmatpush1.msra.mxu0 %v3333
        %3694 = vmatprep.subr.mxu0 %v3340
        %3695 = vmatpush1.msra.mxu0 %v3339
        %3696 = vmatprep.subr.mxu0 %v3346
        %3697 = vmatpush1.msra.mxu0 %v3345
        %3698 = vmatprep.subr.mxu0 %v3352
        %3699 = vmatpush1.msra.mxu0 %v3351
        %3700 = vmatprep.subr.mxu0 %v3358
        %3701 = vmatpush1.msra.mxu0 %v3357
        %3702 = vmatprep.subr.mxu0 %v3364
        %3703 = vmatpush1.msra.mxu0 %v3363
        %3704 = vmatprep.subr.mxu0 %v3370
        %3705 = vmatpush1.msra.mxu0 %v3369
        %3706 = vmatprep.mubr.f32.mxu0 %v2558
        %3707 = vmatmul.mubr.f32.gmra.mrb[0].mxu0 %v2557
        %v3708 = vpop.f32.mrb[0].mxu0
        %v3709 = vadd.f32 %v3620, %v3708
        %v3710 = vpop.f32.mrb[0].mxu0
        %v3711 = vadd.f32 %v3622, %v3710
        %3712 = vmatprep.mubr.f32.mxu0 %v2566
        %3713 = vmatmul.mubr.f32.gmra.mrb[0].mxu0 %v2565
        %v3714 = vpop.f32.mrb[0].mxu0
        %v3715 = vadd.f32 %v3626, %v3714
        %v3716 = vpop.f32.mrb[0].mxu0
        %v3717 = vadd.f32 %v3628, %v3716
        %3718 = vmatprep.mubr.f32.mxu0 %v2574
        %3719 = vmatmul.mubr.f32.gmra.mrb[0].mxu0 %v2573
        %v3720 = vpop.f32.mrb[0].mxu0
        %v3721 = vadd.f32 %v3632, %v3720
        %v3722 = vpop.f32.mrb[0].mxu0
        %v3723 = vadd.f32 %v3634, %v3722
        %3724 = vmatprep.mubr.f32.mxu0 %v2582
        %3725 = vmatmul.mubr.f32.gmra.mrb[0].mxu0 %v2581
        %v3726 = vpop.f32.mrb[0].mxu0
        %v3727 = vadd.f32 %v3638, %v3726
        %v3728 = vpop.f32.mrb[0].mxu0
        %v3729 = vadd.f32 %v3640, %v3728
        %3730 = vdwg.mxu0
        %3731 = vmatprep.subr.mxu0 %v2610
        %3732 = vmatpush1.msra.mxu0 %v2609
        %3733 = vmatprep.subr.mxu0 %v2616
        %3734 = vmatpush1.msra.mxu0 %v2615
        %3735 = vmatprep.subr.mxu0 %v2622
        %3736 = vmatpush1.msra.mxu0 %v2621
        %3737 = vmatprep.subr.mxu0 %v2628
        %3738 = vmatpush1.msra.mxu0 %v2627
        %3739 = vmatprep.subr.mxu0 %v2634
        %3740 = vmatpush1.msra.mxu0 %v2633
        %3741 = vmatprep.subr.mxu0 %v2640
        %3742 = vmatpush1.msra.mxu0 %v2639
        %3743 = vmatprep.subr.mxu0 %v2646
        %3744 = vmatpush1.msra.mxu0 %v2645
        %3745 = vmatprep.subr.mxu0 %v2652
        %3746 = vmatpush1.msra.mxu0 %v2651
        %3747 = vmatprep.subr.mxu0 %v2658
        %3748 = vmatpush1.msra.mxu0 %v2657
        %3749 = vmatprep.subr.mxu0 %v2664
        %3750 = vmatpush1.msra.mxu0 %v2663
        %3751 = vmatprep.subr.mxu0 %v2670
        %3752 = vmatpush1.msra.mxu0 %v2669
        %3753 = vmatprep.subr.mxu0 %v2676
        %3754 = vmatpush1.msra.mxu0 %v2675
        %3755 = vmatprep.subr.mxu0 %v2682
        %3756 = vmatpush1.msra.mxu0 %v2681
        %3757 = vmatprep.subr.mxu0 %v2688
        %3758 = vmatpush1.msra.mxu0 %v2687
        %3759 = vmatprep.subr.mxu0 %v2694
        %3760 = vmatpush1.msra.mxu0 %v2693
        %3761 = vmatprep.subr.mxu0 %v2700
        %3762 = vmatpush1.msra.mxu0 %v2699
        %3763 = vmatprep.subr.mxu0 %v2706
        %3764 = vmatpush1.msra.mxu0 %v2705
        %3765 = vmatprep.subr.mxu0 %v2712
        %3766 = vmatpush1.msra.mxu0 %v2711
        %3767 = vmatprep.subr.mxu0 %v2718
        %3768 = vmatpush1.msra.mxu0 %v2717
        %3769 = vmatprep.subr.mxu0 %v2724
        %3770 = vmatpush1.msra.mxu0 %v2723
        %3771 = vmatprep.subr.mxu0 %v2730
        %3772 = vmatpush1.msra.mxu0 %v2729
        %3773 = vmatprep.subr.mxu0 %v2736
        %3774 = vmatpush1.msra.mxu0 %v2735
        %3775 = vmatprep.subr.mxu0 %v2742
        %3776 = vmatpush1.msra.mxu0 %v2741
        %3777 = vmatprep.subr.mxu0 %v2748
        %3778 = vmatpush1.msra.mxu0 %v2747
        %3779 = vmatprep.subr.mxu0 %v2754
        %3780 = vmatpush1.msra.mxu0 %v2753
        %3781 = vmatprep.subr.mxu0 %v2760
        %3782 = vmatpush1.msra.mxu0 %v2759
        %3783 = vmatprep.subr.mxu0 %v2766
        %3784 = vmatpush1.msra.mxu0 %v2765
        %3785 = vmatprep.subr.mxu0 %v2772
        %3786 = vmatpush1.msra.mxu0 %v2771
        %3787 = vmatprep.subr.mxu0 %v2778
        %3788 = vmatpush1.msra.mxu0 %v2777
        %3789 = vmatprep.subr.mxu0 %v2784
        %3790 = vmatpush1.msra.mxu0 %v2783
        %3791 = vmatprep.subr.mxu0 %v2790
        %3792 = vmatpush1.msra.mxu0 %v2789
        %3793 = vmatprep.subr.mxu0 %v2796
        %3794 = vmatpush1.msra.mxu0 %v2795
        %3795 = vmatprep.mubr.f32.mxu0 %v2552
        %3796 = vmatmul.mubr.f32.gmra.mrb[0].mxu0 %v2551
        %v3797 = vpop.f32.mrb[0].mxu0
        %v3798 = vadd.f32 0.0, %v3797
        %v3799 = vpop.f32.mrb[0].mxu0
        %v3800 = vadd.f32 0.0, %v3799
        %3801 = vmatprep.mubr.f32.mxu0 %v2560
        %3802 = vmatmul.mubr.f32.gmra.mrb[0].mxu0 %v2559
        %v3803 = vpop.f32.mrb[0].mxu0
        %v3804 = vadd.f32 0.0, %v3803
        %v3805 = vpop.f32.mrb[0].mxu0
        %v3806 = vadd.f32 0.0, %v3805
        %3807 = vmatprep.mubr.f32.mxu0 %v2568
        %3808 = vmatmul.mubr.f32.gmra.mrb[0].mxu0 %v2567
        %v3809 = vpop.f32.mrb[0].mxu0
        %v3810 = vadd.f32 0.0, %v3809
        %v3811 = vpop.f32.mrb[0].mxu0
        %v3812 = vadd.f32 0.0, %v3811
        %3813 = vmatprep.mubr.f32.mxu0 %v2576
        %3814 = vmatmul.mubr.f32.gmra.mrb[0].mxu0 %v2575
        %v3815 = vpop.f32.mrb[0].mxu0
        %v3816 = vadd.f32 0.0, %v3815
        %v3817 = vpop.f32.mrb[0].mxu0
        %v3818 = vadd.f32 0.0, %v3817
        %3819 = vdwg.mxu0
        %3820 = vmatprep.subr.mxu0 %v2802
        %3821 = vmatpush1.msra.mxu0 %v2801
        %3822 = vmatprep.subr.mxu0 %v2808
        %3823 = vmatpush1.msra.mxu0 %v2807
        %3824 = vmatprep.subr.mxu0 %v2814
        %3825 = vmatpush1.msra.mxu0 %v2813
        %3826 = vmatprep.subr.mxu0 %v2820
        %3827 = vmatpush1.msra.mxu0 %v2819
        %3828 = vmatprep.subr.mxu0 %v2826
        %3829 = vmatpush1.msra.mxu0 %v2825
        %3830 = vmatprep.subr.mxu0 %v2832
        %3831 = vmatpush1.msra.mxu0 %v2831
        %3832 = vmatprep.subr.mxu0 %v2838
        %3833 = vmatpush1.msra.mxu0 %v2837
        %3834 = vmatprep.subr.mxu0 %v2844
        %3835 = vmatpush1.msra.mxu0 %v2843
        %3836 = vmatprep.subr.mxu0 %v2850
        %3837 = vmatpush1.msra.mxu0 %v2849
        %3838 = vmatprep.subr.mxu0 %v2856
        %3839 = vmatpush1.msra.mxu0 %v2855
        %3840 = vmatprep.subr.mxu0 %v2862
        %3841 = vmatpush1.msra.mxu0 %v2861
        %3842 = vmatprep.subr.mxu0 %v2868
        %3843 = vmatpush1.msra.mxu0 %v2867
        %3844 = vmatprep.subr.mxu0 %v2874
        %3845 = vmatpush1.msra.mxu0 %v2873
        %3846 = vmatprep.subr.mxu0 %v2880
        %3847 = vmatpush1.msra.mxu0 %v2879
        %3848 = vmatprep.subr.mxu0 %v2886
        %3849 = vmatpush1.msra.mxu0 %v2885
        %3850 = vmatprep.subr.mxu0 %v2892
        %3851 = vmatpush1.msra.mxu0 %v2891
        %3852 = vmatprep.subr.mxu0 %v2898
        %3853 = vmatpush1.msra.mxu0 %v2897
        %3854 = vmatprep.subr.mxu0 %v2904
        %3855 = vmatpush1.msra.mxu0 %v2903
        %3856 = vmatprep.subr.mxu0 %v2910
        %3857 = vmatpush1.msra.mxu0 %v2909
        %3858 = vmatprep.subr.mxu0 %v2916
        %3859 = vmatpush1.msra.mxu0 %v2915
        %3860 = vmatprep.subr.mxu0 %v2922
        %3861 = vmatpush1.msra.mxu0 %v2921
        %3862 = vmatprep.subr.mxu0 %v2928
        %3863 = vmatpush1.msra.mxu0 %v2927
        %3864 = vmatprep.subr.mxu0 %v2934
        %3865 = vmatpush1.msra.mxu0 %v2933
        %3866 = vmatprep.subr.mxu0 %v2940
        %3867 = vmatpush1.msra.mxu0 %v2939
        %3868 = vmatprep.subr.mxu0 %v2946
        %3869 = vmatpush1.msra.mxu0 %v2945
        %3870 = vmatprep.subr.mxu0 %v2952
        %3871 = vmatpush1.msra.mxu0 %v2951
        %3872 = vmatprep.subr.mxu0 %v2958
        %3873 = vmatpush1.msra.mxu0 %v2957
        %3874 = vmatprep.subr.mxu0 %v2964
        %3875 = vmatpush1.msra.mxu0 %v2963
        %3876 = vmatprep.subr.mxu0 %v2970
        %3877 = vmatpush1.msra.mxu0 %v2969
        %3878 = vmatprep.subr.mxu0 %v2976
        %3879 = vmatpush1.msra.mxu0 %v2975
        %3880 = vmatprep.subr.mxu0 %v2982
        %3881 = vmatpush1.msra.mxu0 %v2981
        %3882 = vmatprep.subr.mxu0 %v2988
        %3883 = vmatpush1.msra.mxu0 %v2987
        %3884 = vmatprep.mubr.f32.mxu0 %v2554
        %3885 = vmatmul.mubr.f32.gmra.mrb[0].mxu0 %v2553
        %v3886 = vpop.f32.mrb[0].mxu0
        %v3887 = vadd.f32 %v3798, %v3886
        %v3888 = vpop.f32.mrb[0].mxu0
        %v3889 = vadd.f32 %v3800, %v3888
        %3890 = vmatprep.mubr.f32.mxu0 %v2562
        %3891 = vmatmul.mubr.f32.gmra.mrb[0].mxu0 %v2561
        %v3892 = vpop.f32.mrb[0].mxu0
        %v3893 = vadd.f32 %v3804, %v3892
        %v3894 = vpop.f32.mrb[0].mxu0
        %v3895 = vadd.f32 %v3806, %v3894
        %3896 = vmatprep.mubr.f32.mxu0 %v2570
        %3897 = vmatmul.mubr.f32.gmra.mrb[0].mxu0 %v2569
        %v3898 = vpop.f32.mrb[0].mxu0
        %v3899 = vadd.f32 %v3810, %v3898
        %v3900 = vpop.f32.mrb[0].mxu0
        %v3901 = vadd.f32 %v3812, %v3900
        %3902 = vmatprep.mubr.f32.mxu0 %v2578
        %3903 = vmatmul.mubr.f32.gmra.mrb[0].mxu0 %v2577
        %v3904 = vpop.f32.mrb[0].mxu0
        %v3905 = vadd.f32 %v3816, %v3904
        %v3906 = vpop.f32.mrb[0].mxu0
        %v3907 = vadd.f32 %v3818, %v3906
        %3908 = vdwg.mxu0
        %3909 = vmatprep.subr.mxu0 %v2994
        %3910 = vmatpush1.msra.mxu0 %v2993
        %3911 = vmatprep.subr.mxu0 %v3000
        %3912 = vmatpush1.msra.mxu0 %v2999
        %3913 = vmatprep.subr.mxu0 %v3006
        %3914 = vmatpush1.msra.mxu0 %v3005
        %3915 = vmatprep.subr.mxu0 %v3012
        %3916 = vmatpush1.msra.mxu0 %v3011
        %3917 = vmatprep.subr.mxu0 %v3018
        %3918 = vmatpush1.msra.mxu0 %v3017
        %3919 = vmatprep.subr.mxu0 %v3024
        %3920 = vmatpush1.msra.mxu0 %v3023
        %3921 = vmatprep.subr.mxu0 %v3030
        %3922 = vmatpush1.msra.mxu0 %v3029
        %3923 = vmatprep.subr.mxu0 %v3036
        %3924 = vmatpush1.msra.mxu0 %v3035
        %3925 = vmatprep.subr.mxu0 %v3042
        %3926 = vmatpush1.msra.mxu0 %v3041
        %3927 = vmatprep.subr.mxu0 %v3048
        %3928 = vmatpush1.msra.mxu0 %v3047
        %3929 = vmatprep.subr.mxu0 %v3054
        %3930 = vmatpush1.msra.mxu0 %v3053
        %3931 = vmatprep.subr.mxu0 %v3060
        %3932 = vmatpush1.msra.mxu0 %v3059
        %3933 = vmatprep.subr.mxu0 %v3066
        %3934 = vmatpush1.msra.mxu0 %v3065
        %3935 = vmatprep.subr.mxu0 %v3072
        %3936 = vmatpush1.msra.mxu0 %v3071
        %3937 = vmatprep.subr.mxu0 %v3078
        %3938 = vmatpush1.msra.mxu0 %v3077
        %3939 = vmatprep.subr.mxu0 %v3084
        %3940 = vmatpush1.msra.mxu0 %v3083
        %3941 = vmatprep.subr.mxu0 %v3090
        %3942 = vmatpush1.msra.mxu0 %v3089
        %3943 = vmatprep.subr.mxu0 %v3096
        %3944 = vmatpush1.msra.mxu0 %v3095
        %3945 = vmatprep.subr.mxu0 %v3102
        %3946 = vmatpush1.msra.mxu0 %v3101
        %3947 = vmatprep.subr.mxu0 %v3108
        %3948 = vmatpush1.msra.mxu0 %v3107
        %3949 = vmatprep.subr.mxu0 %v3114
        %3950 = vmatpush1.msra.mxu0 %v3113
        %3951 = vmatprep.subr.mxu0 %v3120
        %3952 = vmatpush1.msra.mxu0 %v3119
        %3953 = vmatprep.subr.mxu0 %v3126
        %3954 = vmatpush1.msra.mxu0 %v3125
        %3955 = vmatprep.subr.mxu0 %v3132
        %3956 = vmatpush1.msra.mxu0 %v3131
        %3957 = vmatprep.subr.mxu0 %v3138
        %3958 = vmatpush1.msra.mxu0 %v3137
        %3959 = vmatprep.subr.mxu0 %v3144
        %3960 = vmatpush1.msra.mxu0 %v3143
        %3961 = vmatprep.subr.mxu0 %v3150
        %3962 = vmatpush1.msra.mxu0 %v3149
        %3963 = vmatprep.subr.mxu0 %v3156
        %3964 = vmatpush1.msra.mxu0 %v3155
        %3965 = vmatprep.subr.mxu0 %v3162
        %3966 = vmatpush1.msra.mxu0 %v3161
        %3967 = vmatprep.subr.mxu0 %v3168
        %3968 = vmatpush1.msra.mxu0 %v3167
        %3969 = vmatprep.subr.mxu0 %v3174
        %3970 = vmatpush1.msra.mxu0 %v3173
        %3971 = vmatprep.subr.mxu0 %v3180
        %3972 = vmatpush1.msra.mxu0 %v3179
        %3973 = vmatprep.mubr.f32.mxu0 %v2556
        %3974 = vmatmul.mubr.f32.gmra.mrb[0].mxu0 %v2555
        %v3975 = vpop.f32.mrb[0].mxu0
        %v3976 = vadd.f32 %v3887, %v3975
        %v3977 = vpop.f32.mrb[0].mxu0
        %v3978 = vadd.f32 %v3889, %v3977
        %3979 = vmatprep.mubr.f32.mxu0 %v2564
        %3980 = vmatmul.mubr.f32.gmra.mrb[0].mxu0 %v2563
        %v3981 = vpop.f32.mrb[0].mxu0
        %v3982 = vadd.f32 %v3893, %v3981
        %v3983 = vpop.f32.mrb[0].mxu0
        %v3984 = vadd.f32 %v3895, %v3983
        %3985 = vmatprep.mubr.f32.mxu0 %v2572
        %3986 = vmatmul.mubr.f32.gmra.mrb[0].mxu0 %v2571
        %v3987 = vpop.f32.mrb[0].mxu0
        %v3988 = vadd.f32 %v3899, %v3987
        %v3989 = vpop.f32.mrb[0].mxu0
        %v3990 = vadd.f32 %v3901, %v3989
        %3991 = vmatprep.mubr.f32.mxu0 %v2580
        %3992 = vmatmul.mubr.f32.gmra.mrb[0].mxu0 %v2579
        %v3993 = vpop.f32.mrb[0].mxu0
        %v3994 = vadd.f32 %v3905, %v3993
        %v3995 = vpop.f32.mrb[0].mxu0
        %v3996 = vadd.f32 %v3907, %v3995
        %3997 = vdwg.mxu0
        %3998 = vmatprep.subr.mxu0 %v3186
        %3999 = vmatpush1.msra.mxu0 %v3185
        %4000 = vmatprep.subr.mxu0 %v3192
        %4001 = vmatpush1.msra.mxu0 %v3191
        %4002 = vmatprep.subr.mxu0 %v3198
        %4003 = vmatpush1.msra.mxu0 %v3197
        %4004 = vmatprep.subr.mxu0 %v3204
        %4005 = vmatpush1.msra.mxu0 %v3203
        %4006 = vmatprep.subr.mxu0 %v3210
        %4007 = vmatpush1.msra.mxu0 %v3209
        %4008 = vmatprep.subr.mxu0 %v3216
        %4009 = vmatpush1.msra.mxu0 %v3215
        %4010 = vmatprep.subr.mxu0 %v3222
        %4011 = vmatpush1.msra.mxu0 %v3221
        %4012 = vmatprep.subr.mxu0 %v3228
        %4013 = vmatpush1.msra.mxu0 %v3227
        %4014 = vmatprep.subr.mxu0 %v3234
        %4015 = vmatpush1.msra.mxu0 %v3233
        %4016 = vmatprep.subr.mxu0 %v3240
        %4017 = vmatpush1.msra.mxu0 %v3239
        %4018 = vmatprep.subr.mxu0 %v3246
        %4019 = vmatpush1.msra.mxu0 %v3245
        %4020 = vmatprep.subr.mxu0 %v3252
        %4021 = vmatpush1.msra.mxu0 %v3251
        %4022 = vmatprep.subr.mxu0 %v3258
        %4023 = vmatpush1.msra.mxu0 %v3257
        %4024 = vmatprep.subr.mxu0 %v3264
        %4025 = vmatpush1.msra.mxu0 %v3263
        %4026 = vmatprep.subr.mxu0 %v3270
        %4027 = vmatpush1.msra.mxu0 %v3269
        %4028 = vmatprep.subr.mxu0 %v3276
        %4029 = vmatpush1.msra.mxu0 %v3275
        %4030 = vmatprep.subr.mxu0 %v3282
        %4031 = vmatpush1.msra.mxu0 %v3281
        %4032 = vmatprep.subr.mxu0 %v3288
        %4033 = vmatpush1.msra.mxu0 %v3287
        %4034 = vmatprep.subr.mxu0 %v3294
        %4035 = vmatpush1.msra.mxu0 %v3293
        %4036 = vmatprep.subr.mxu0 %v3300
        %4037 = vmatpush1.msra.mxu0 %v3299
        %4038 = vmatprep.subr.mxu0 %v3306
        %4039 = vmatpush1.msra.mxu0 %v3305
        %4040 = vmatprep.subr.mxu0 %v3312
        %4041 = vmatpush1.msra.mxu0 %v3311
        %4042 = vmatprep.subr.mxu0 %v3318
        %4043 = vmatpush1.msra.mxu0 %v3317
        %4044 = vmatprep.subr.mxu0 %v3324
        %4045 = vmatpush1.msra.mxu0 %v3323
        %4046 = vmatprep.subr.mxu0 %v3330
        %4047 = vmatpush1.msra.mxu0 %v3329
        %4048 = vmatprep.subr.mxu0 %v3336
        %4049 = vmatpush1.msra.mxu0 %v3335
        %4050 = vmatprep.subr.mxu0 %v3342
        %4051 = vmatpush1.msra.mxu0 %v3341
        %4052 = vmatprep.subr.mxu0 %v3348
        %4053 = vmatpush1.msra.mxu0 %v3347
        %4054 = vmatprep.subr.mxu0 %v3354
        %4055 = vmatpush1.msra.mxu0 %v3353
        %4056 = vmatprep.subr.mxu0 %v3360
        %4057 = vmatpush1.msra.mxu0 %v3359
        %4058 = vmatprep.subr.mxu0 %v3366
        %4059 = vmatpush1.msra.mxu0 %v3365
        %4060 = vmatprep.subr.mxu0 %v3372
        %4061 = vmatpush1.msra.mxu0 %v3371
        %4062 = vmatprep.mubr.f32.mxu0 %v2558
        %4063 = vmatmul.mubr.f32.gmra.mrb[0].mxu0 %v2557
        %v4064 = vpop.f32.mrb[0].mxu0
        %v4065 = vadd.f32 %v3976, %v4064
        %v4066 = vpop.f32.mrb[0].mxu0
        %v4067 = vadd.f32 %v3978, %v4066
        %4068 = vmatprep.mubr.f32.mxu0 %v2566
        %4069 = vmatmul.mubr.f32.gmra.mrb[0].mxu0 %v2565
        %v4070 = vpop.f32.mrb[0].mxu0
        %v4071 = vadd.f32 %v3982, %v4070
        %v4072 = vpop.f32.mrb[0].mxu0
        %v4073 = vadd.f32 %v3984, %v4072
        %4074 = vmatprep.mubr.f32.mxu0 %v2574
        %4075 = vmatmul.mubr.f32.gmra.mrb[0].mxu0 %v2573
        %v4076 = vpop.f32.mrb[0].mxu0
        %v4077 = vadd.f32 %v3988, %v4076
        %v4078 = vpop.f32.mrb[0].mxu0
        %v4079 = vadd.f32 %v3990, %v4078
        %4080 = vmatprep.mubr.f32.mxu0 %v2582
        %4081 = vmatmul.mubr.f32.gmra.mrb[0].mxu0 %v2581
        %v4082 = vpop.f32.mrb[0].mxu0
        %v4083 = vadd.f32 %v3994, %v4082
        %v4084 = vpop.f32.mrb[0].mxu0
        %v4085 = vadd.f32 %v3996, %v4084
        %4086 = vdwg.mxu0
        %4087 = vmatprep.subr.mxu0 %v2612
        %4088 = vmatpush1.msra.mxu0 %v2611
        %4089 = vmatprep.subr.mxu0 %v2618
        %4090 = vmatpush1.msra.mxu0 %v2617
        %4091 = vmatprep.subr.mxu0 %v2624
        %4092 = vmatpush1.msra.mxu0 %v2623
        %4093 = vmatprep.subr.mxu0 %v2630
        %4094 = vmatpush1.msra.mxu0 %v2629
        %4095 = vmatprep.subr.mxu0 %v2636
        %4096 = vmatpush1.msra.mxu0 %v2635
        %4097 = vmatprep.subr.mxu0 %v2642
        %4098 = vmatpush1.msra.mxu0 %v2641
        %4099 = vmatprep.subr.mxu0 %v2648
        %4100 = vmatpush1.msra.mxu0 %v2647
        %4101 = vmatprep.subr.mxu0 %v2654
        %4102 = vmatpush1.msra.mxu0 %v2653
        %4103 = vmatprep.subr.mxu0 %v2660
        %4104 = vmatpush1.msra.mxu0 %v2659
        %4105 = vmatprep.subr.mxu0 %v2666
        %4106 = vmatpush1.msra.mxu0 %v2665
        %4107 = vmatprep.subr.mxu0 %v2672
        %4108 = vmatpush1.msra.mxu0 %v2671
        %4109 = vmatprep.subr.mxu0 %v2678
        %4110 = vmatpush1.msra.mxu0 %v2677
        %4111 = vmatprep.subr.mxu0 %v2684
        %4112 = vmatpush1.msra.mxu0 %v2683
        %4113 = vmatprep.subr.mxu0 %v2690
        %4114 = vmatpush1.msra.mxu0 %v2689
        %4115 = vmatprep.subr.mxu0 %v2696
        %4116 = vmatpush1.msra.mxu0 %v2695
        %4117 = vmatprep.subr.mxu0 %v2702
        %4118 = vmatpush1.msra.mxu0 %v2701
        %4119 = vmatprep.subr.mxu0 %v2708
        %4120 = vmatpush1.msra.mxu0 %v2707
        %4121 = vmatprep.subr.mxu0 %v2714
        %4122 = vmatpush1.msra.mxu0 %v2713
        %4123 = vmatprep.subr.mxu0 %v2720
        %4124 = vmatpush1.msra.mxu0 %v2719
        %4125 = vmatprep.subr.mxu0 %v2726
        %4126 = vmatpush1.msra.mxu0 %v2725
        %4127 = vmatprep.subr.mxu0 %v2732
        %4128 = vmatpush1.msra.mxu0 %v2731
        %4129 = vmatprep.subr.mxu0 %v2738
        %4130 = vmatpush1.msra.mxu0 %v2737
        %4131 = vmatprep.subr.mxu0 %v2744
        %4132 = vmatpush1.msra.mxu0 %v2743
        %4133 = vmatprep.subr.mxu0 %v2750
        %4134 = vmatpush1.msra.mxu0 %v2749
        %4135 = vmatprep.subr.mxu0 %v2756
        %4136 = vmatpush1.msra.mxu0 %v2755
        %4137 = vmatprep.subr.mxu0 %v2762
        %4138 = vmatpush1.msra.mxu0 %v2761
        %4139 = vmatprep.subr.mxu0 %v2768
        %4140 = vmatpush1.msra.mxu0 %v2767
        %4141 = vmatprep.subr.mxu0 %v2774
        %4142 = vmatpush1.msra.mxu0 %v2773
        %4143 = vmatprep.subr.mxu0 %v2780
        %4144 = vmatpush1.msra.mxu0 %v2779
        %4145 = vmatprep.subr.mxu0 %v2786
        %4146 = vmatpush1.msra.mxu0 %v2785
        %4147 = vmatprep.subr.mxu0 %v2792
        %4148 = vmatpush1.msra.mxu0 %v2791
        %4149 = vmatprep.subr.mxu0 %v2798
        %4150 = vmatpush1.msra.mxu0 %v2797
        %4151 = vmatprep.mubr.f32.mxu0 %v2552
        %4152 = vmatmul.mubr.f32.gmra.mrb[0].mxu0 %v2551
        %v4153 = vpop.f32.mrb[0].mxu0
        %v4154 = vadd.f32 0.0, %v4153
        %v4155 = vpop.f32.mrb[0].mxu0
        %v4156 = vadd.f32 0.0, %v4155
        %4157 = vmatprep.mubr.f32.mxu0 %v2560
        %4158 = vmatmul.mubr.f32.gmra.mrb[0].mxu0 %v2559
        %v4159 = vpop.f32.mrb[0].mxu0
        %v4160 = vadd.f32 0.0, %v4159
        %v4161 = vpop.f32.mrb[0].mxu0
        %v4162 = vadd.f32 0.0, %v4161
        %4163 = vmatprep.mubr.f32.mxu0 %v2568
        %4164 = vmatmul.mubr.f32.gmra.mrb[0].mxu0 %v2567
        %v4165 = vpop.f32.mrb[0].mxu0
        %v4166 = vadd.f32 0.0, %v4165
        %v4167 = vpop.f32.mrb[0].mxu0
        %v4168 = vadd.f32 0.0, %v4167
        %4169 = vmatprep.mubr.f32.mxu0 %v2576
        %4170 = vmatmul.mubr.f32.gmra.mrb[0].mxu0 %v2575
        %v4171 = vpop.f32.mrb[0].mxu0
        %v4172 = vadd.f32 0.0, %v4171
        %v4173 = vpop.f32.mrb[0].mxu0
        %v4174 = vadd.f32 0.0, %v4173
        %4175 = vdwg.mxu0
        %4176 = vmatprep.subr.mxu0 %v2804
        %4177 = vmatpush1.msra.mxu0 %v2803
        %4178 = vmatprep.subr.mxu0 %v2810
        %4179 = vmatpush1.msra.mxu0 %v2809
        %4180 = vmatprep.subr.mxu0 %v2816
        %4181 = vmatpush1.msra.mxu0 %v2815
        %4182 = vmatprep.subr.mxu0 %v2822
        %4183 = vmatpush1.msra.mxu0 %v2821
        %4184 = vmatprep.subr.mxu0 %v2828
        %4185 = vmatpush1.msra.mxu0 %v2827
        %4186 = vmatprep.subr.mxu0 %v2834
        %4187 = vmatpush1.msra.mxu0 %v2833
        %4188 = vmatprep.subr.mxu0 %v2840
        %4189 = vmatpush1.msra.mxu0 %v2839
        %4190 = vmatprep.subr.mxu0 %v2846
        %4191 = vmatpush1.msra.mxu0 %v2845
        %4192 = vmatprep.subr.mxu0 %v2852
        %4193 = vmatpush1.msra.mxu0 %v2851
        %4194 = vmatprep.subr.mxu0 %v2858
        %4195 = vmatpush1.msra.mxu0 %v2857
        %4196 = vmatprep.subr.mxu0 %v2864
        %4197 = vmatpush1.msra.mxu0 %v2863
        %4198 = vmatprep.subr.mxu0 %v2870
        %4199 = vmatpush1.msra.mxu0 %v2869
        %4200 = vmatprep.subr.mxu0 %v2876
        %4201 = vmatpush1.msra.mxu0 %v2875
        %4202 = vmatprep.subr.mxu0 %v2882
        %4203 = vmatpush1.msra.mxu0 %v2881
        %4204 = vmatprep.subr.mxu0 %v2888
        %4205 = vmatpush1.msra.mxu0 %v2887
        %4206 = vmatprep.subr.mxu0 %v2894
        %4207 = vmatpush1.msra.mxu0 %v2893
        %4208 = vmatprep.subr.mxu0 %v2900
        %4209 = vmatpush1.msra.mxu0 %v2899
        %4210 = vmatprep.subr.mxu0 %v2906
        %4211 = vmatpush1.msra.mxu0 %v2905
        %4212 = vmatprep.subr.mxu0 %v2912
        %4213 = vmatpush1.msra.mxu0 %v2911
        %4214 = vmatprep.subr.mxu0 %v2918
        %4215 = vmatpush1.msra.mxu0 %v2917
        %4216 = vmatprep.subr.mxu0 %v2924
        %4217 = vmatpush1.msra.mxu0 %v2923
        %4218 = vmatprep.subr.mxu0 %v2930
        %4219 = vmatpush1.msra.mxu0 %v2929
        %4220 = vmatprep.subr.mxu0 %v2936
        %4221 = vmatpush1.msra.mxu0 %v2935
        %4222 = vmatprep.subr.mxu0 %v2942
        %4223 = vmatpush1.msra.mxu0 %v2941
        %4224 = vmatprep.subr.mxu0 %v2948
        %4225 = vmatpush1.msra.mxu0 %v2947
        %4226 = vmatprep.subr.mxu0 %v2954
        %4227 = vmatpush1.msra.mxu0 %v2953
        %4228 = vmatprep.subr.mxu0 %v2960
        %4229 = vmatpush1.msra.mxu0 %v2959
        %4230 = vmatprep.subr.mxu0 %v2966
        %4231 = vmatpush1.msra.mxu0 %v2965
        %4232 = vmatprep.subr.mxu0 %v2972
        %4233 = vmatpush1.msra.mxu0 %v2971
        %4234 = vmatprep.subr.mxu0 %v2978
        %4235 = vmatpush1.msra.mxu0 %v2977
        %4236 = vmatprep.subr.mxu0 %v2984
        %4237 = vmatpush1.msra.mxu0 %v2983
        %4238 = vmatprep.subr.mxu0 %v2990
        %4239 = vmatpush1.msra.mxu0 %v2989
        %4240 = vmatprep.mubr.f32.mxu0 %v2554
        %4241 = vmatmul.mubr.f32.gmra.mrb[0].mxu0 %v2553
        %v4242 = vpop.f32.mrb[0].mxu0
        %v4243 = vadd.f32 %v4154, %v4242
        %v4244 = vpop.f32.mrb[0].mxu0
        %v4245 = vadd.f32 %v4156, %v4244
        %4246 = vmatprep.mubr.f32.mxu0 %v2562
        %4247 = vmatmul.mubr.f32.gmra.mrb[0].mxu0 %v2561
        %v4248 = vpop.f32.mrb[0].mxu0
        %v4249 = vadd.f32 %v4160, %v4248
        %v4250 = vpop.f32.mrb[0].mxu0
        %v4251 = vadd.f32 %v4162, %v4250
        %4252 = vmatprep.mubr.f32.mxu0 %v2570
        %4253 = vmatmul.mubr.f32.gmra.mrb[0].mxu0 %v2569
        %v4254 = vpop.f32.mrb[0].mxu0
        %v4255 = vadd.f32 %v4166, %v4254
        %v4256 = vpop.f32.mrb[0].mxu0
        %v4257 = vadd.f32 %v4168, %v4256
        %4258 = vmatprep.mubr.f32.mxu0 %v2578
        %4259 = vmatmul.mubr.f32.gmra.mrb[0].mxu0 %v2577
        %v4260 = vpop.f32.mrb[0].mxu0
        %v4261 = vadd.f32 %v4172, %v4260
        %v4262 = vpop.f32.mrb[0].mxu0
        %v4263 = vadd.f32 %v4174, %v4262
        %4264 = vdwg.mxu0
        %4265 = vmatprep.subr.mxu0 %v2996
        %4266 = vmatpush1.msra.mxu0 %v2995
        %4267 = vmatprep.subr.mxu0 %v3002
        %4268 = vmatpush1.msra.mxu0 %v3001
        %4269 = vmatprep.subr.mxu0 %v3008
        %4270 = vmatpush1.msra.mxu0 %v3007
        %4271 = vmatprep.subr.mxu0 %v3014
        %4272 = vmatpush1.msra.mxu0 %v3013
        %4273 = vmatprep.subr.mxu0 %v3020
        %4274 = vmatpush1.msra.mxu0 %v3019
        %4275 = vmatprep.subr.mxu0 %v3026
        %4276 = vmatpush1.msra.mxu0 %v3025
        %4277 = vmatprep.subr.mxu0 %v3032
        %4278 = vmatpush1.msra.mxu0 %v3031
        %4279 = vmatprep.subr.mxu0 %v3038
        %4280 = vmatpush1.msra.mxu0 %v3037
        %4281 = vmatprep.subr.mxu0 %v3044
        %4282 = vmatpush1.msra.mxu0 %v3043
        %4283 = vmatprep.subr.mxu0 %v3050
        %4284 = vmatpush1.msra.mxu0 %v3049
        %4285 = vmatprep.subr.mxu0 %v3056
        %4286 = vmatpush1.msra.mxu0 %v3055
        %4287 = vmatprep.subr.mxu0 %v3062
        %4288 = vmatpush1.msra.mxu0 %v3061
        %4289 = vmatprep.subr.mxu0 %v3068
        %4290 = vmatpush1.msra.mxu0 %v3067
        %4291 = vmatprep.subr.mxu0 %v3074
        %4292 = vmatpush1.msra.mxu0 %v3073
        %4293 = vmatprep.subr.mxu0 %v3080
        %4294 = vmatpush1.msra.mxu0 %v3079
        %4295 = vmatprep.subr.mxu0 %v3086
        %4296 = vmatpush1.msra.mxu0 %v3085
        %4297 = vmatprep.subr.mxu0 %v3092
        %4298 = vmatpush1.msra.mxu0 %v3091
        %4299 = vmatprep.subr.mxu0 %v3098
        %4300 = vmatpush1.msra.mxu0 %v3097
        %4301 = vmatprep.subr.mxu0 %v3104
        %4302 = vmatpush1.msra.mxu0 %v3103
        %4303 = vmatprep.subr.mxu0 %v3110
        %4304 = vmatpush1.msra.mxu0 %v3109
        %4305 = vmatprep.subr.mxu0 %v3116
        %4306 = vmatpush1.msra.mxu0 %v3115
        %4307 = vmatprep.subr.mxu0 %v3122
        %4308 = vmatpush1.msra.mxu0 %v3121
        %4309 = vmatprep.subr.mxu0 %v3128
        %4310 = vmatpush1.msra.mxu0 %v3127
        %4311 = vmatprep.subr.mxu0 %v3134
        %4312 = vmatpush1.msra.mxu0 %v3133
        %4313 = vmatprep.subr.mxu0 %v3140
        %4314 = vmatpush1.msra.mxu0 %v3139
        %4315 = vmatprep.subr.mxu0 %v3146
        %4316 = vmatpush1.msra.mxu0 %v3145
        %4317 = vmatprep.subr.mxu0 %v3152
        %4318 = vmatpush1.msra.mxu0 %v3151
        %4319 = vmatprep.subr.mxu0 %v3158
        %4320 = vmatpush1.msra.mxu0 %v3157
        %4321 = vmatprep.subr.mxu0 %v3164
        %4322 = vmatpush1.msra.mxu0 %v3163
        %4323 = vmatprep.subr.mxu0 %v3170
        %4324 = vmatpush1.msra.mxu0 %v3169
        %4325 = vmatprep.subr.mxu0 %v3176
        %4326 = vmatpush1.msra.mxu0 %v3175
        %4327 = vmatprep.subr.mxu0 %v3182
        %4328 = vmatpush1.msra.mxu0 %v3181
        %4329 = vmatprep.mubr.f32.mxu0 %v2556
        %4330 = vmatmul.mubr.f32.gmra.mrb[0].mxu0 %v2555
        %v4331 = vpop.f32.mrb[0].mxu0
        %v4332 = vadd.f32 %v4243, %v4331
        %v4333 = vpop.f32.mrb[0].mxu0
        %v4334 = vadd.f32 %v4245, %v4333
        %4335 = vmatprep.mubr.f32.mxu0 %v2564
        %4336 = vmatmul.mubr.f32.gmra.mrb[0].mxu0 %v2563
        %v4337 = vpop.f32.mrb[0].mxu0
        %v4338 = vadd.f32 %v4249, %v4337
        %v4339 = vpop.f32.mrb[0].mxu0
        %v4340 = vadd.f32 %v4251, %v4339
        %4341 = vmatprep.mubr.f32.mxu0 %v2572
        %4342 = vmatmul.mubr.f32.gmra.mrb[0].mxu0 %v2571
        %v4343 = vpop.f32.mrb[0].mxu0
        %v4344 = vadd.f32 %v4255, %v4343
        %v4345 = vpop.f32.mrb[0].mxu0
        %v4346 = vadd.f32 %v4257, %v4345
        %4347 = vmatprep.mubr.f32.mxu0 %v2580
        %4348 = vmatmul.mubr.f32.gmra.mrb[0].mxu0 %v2579
        %v4349 = vpop.f32.mrb[0].mxu0
        %v4350 = vadd.f32 %v4261, %v4349
        %v4351 = vpop.f32.mrb[0].mxu0
        %v4352 = vadd.f32 %v4263, %v4351
        %4353 = vdwg.mxu0
        %4354 = vmatprep.subr.mxu0 %v3188
        %4355 = vmatpush1.msra.mxu0 %v3187
        %4356 = vmatprep.subr.mxu0 %v3194
        %4357 = vmatpush1.msra.mxu0 %v3193
        %4358 = vmatprep.subr.mxu0 %v3200
        %4359 = vmatpush1.msra.mxu0 %v3199
        %4360 = vmatprep.subr.mxu0 %v3206
        %4361 = vmatpush1.msra.mxu0 %v3205
        %4362 = vmatprep.subr.mxu0 %v3212
        %4363 = vmatpush1.msra.mxu0 %v3211
        %4364 = vmatprep.subr.mxu0 %v3218
        %4365 = vmatpush1.msra.mxu0 %v3217
        %4366 = vmatprep.subr.mxu0 %v3224
        %4367 = vmatpush1.msra.mxu0 %v3223
        %4368 = vmatprep.subr.mxu0 %v3230
        %4369 = vmatpush1.msra.mxu0 %v3229
        %4370 = vmatprep.subr.mxu0 %v3236
        %4371 = vmatpush1.msra.mxu0 %v3235
        %4372 = vmatprep.subr.mxu0 %v3242
        %4373 = vmatpush1.msra.mxu0 %v3241
        %4374 = vmatprep.subr.mxu0 %v3248
        %4375 = vmatpush1.msra.mxu0 %v3247
        %4376 = vmatprep.subr.mxu0 %v3254
        %4377 = vmatpush1.msra.mxu0 %v3253
        %4378 = vmatprep.subr.mxu0 %v3260
        %4379 = vmatpush1.msra.mxu0 %v3259
        %4380 = vmatprep.subr.mxu0 %v3266
        %4381 = vmatpush1.msra.mxu0 %v3265
        %4382 = vmatprep.subr.mxu0 %v3272
        %4383 = vmatpush1.msra.mxu0 %v3271
        %4384 = vmatprep.subr.mxu0 %v3278
        %4385 = vmatpush1.msra.mxu0 %v3277
        %4386 = vmatprep.subr.mxu0 %v3284
        %4387 = vmatpush1.msra.mxu0 %v3283
        %4388 = vmatprep.subr.mxu0 %v3290
        %4389 = vmatpush1.msra.mxu0 %v3289
        %4390 = vmatprep.subr.mxu0 %v3296
        %4391 = vmatpush1.msra.mxu0 %v3295
        %4392 = vmatprep.subr.mxu0 %v3302
        %4393 = vmatpush1.msra.mxu0 %v3301
        %4394 = vmatprep.subr.mxu0 %v3308
        %4395 = vmatpush1.msra.mxu0 %v3307
        %4396 = vmatprep.subr.mxu0 %v3314
        %4397 = vmatpush1.msra.mxu0 %v3313
        %4398 = vmatprep.subr.mxu0 %v3320
        %4399 = vmatpush1.msra.mxu0 %v3319
        %4400 = vmatprep.subr.mxu0 %v3326
        %4401 = vmatpush1.msra.mxu0 %v3325
        %4402 = vmatprep.subr.mxu0 %v3332
        %4403 = vmatpush1.msra.mxu0 %v3331
        %4404 = vmatprep.subr.mxu0 %v3338
        %4405 = vmatpush1.msra.mxu0 %v3337
        %4406 = vmatprep.subr.mxu0 %v3344
        %4407 = vmatpush1.msra.mxu0 %v3343
        %4408 = vmatprep.subr.mxu0 %v3350
        %4409 = vmatpush1.msra.mxu0 %v3349
        %4410 = vmatprep.subr.mxu0 %v3356
        %4411 = vmatpush1.msra.mxu0 %v3355
        %4412 = vmatprep.subr.mxu0 %v3362
        %4413 = vmatpush1.msra.mxu0 %v3361
        %4414 = vmatprep.subr.mxu0 %v3368
        %4415 = vmatpush1.msra.mxu0 %v3367
        %4416 = vmatprep.subr.mxu0 %v3374
        %4417 = vmatpush1.msra.mxu0 %v3373
        %4418 = vmatprep.mubr.f32.mxu0 %v2558
        %4419 = vmatmul.mubr.f32.gmra.mrb[0].mxu0 %v2557
        %v4420 = vpop.f32.mrb[0].mxu0
        %v4421 = vadd.f32 %v4332, %v4420
        %v4422 = vpop.f32.mrb[0].mxu0
        %v4423 = vadd.f32 %v4334, %v4422
        %4424 = vmatprep.mubr.f32.mxu0 %v2566
        %4425 = vmatmul.mubr.f32.gmra.mrb[0].mxu0 %v2565
        %v4426 = vpop.f32.mrb[0].mxu0
        %v4427 = vadd.f32 %v4338, %v4426
        %v4428 = vpop.f32.mrb[0].mxu0
        %v4429 = vadd.f32 %v4340, %v4428
        %4430 = vmatprep.mubr.f32.mxu0 %v2574
        %4431 = vmatmul.mubr.f32.gmra.mrb[0].mxu0 %v2573
        %v4432 = vpop.f32.mrb[0].mxu0
        %v4433 = vadd.f32 %v4344, %v4432
        %v4434 = vpop.f32.mrb[0].mxu0
        %v4435 = vadd.f32 %v4346, %v4434
        %4436 = vmatprep.mubr.f32.mxu0 %v2582
        %4437 = vmatmul.mubr.f32.gmra.mrb[0].mxu0 %v2581
        %v4438 = vpop.f32.mrb[0].mxu0
        %v4439 = vadd.f32 %v4350, %v4438
        %v4440 = vpop.f32.mrb[0].mxu0
        %v4441 = vadd.f32 %v4352, %v4440
        %4442 = vdwg.mxu0
        %v4443 = vadd.f32 %v2583, %v3709
        %v4444 = vadd.f32 %v2584, %v3711
        %v4445 = vadd.f32 %v2585, %v4065
        %v4446 = vadd.f32 %v2586, %v4067
        %v4447 = vadd.f32 %v2587, %v4421
        %v4448 = vadd.f32 %v2588, %v4423
        %v4449 = vadd.f32 %v2589, %v3715
        %v4450 = vadd.f32 %v2590, %v3717
        %v4451 = vadd.f32 %v2591, %v4071
        %v4452 = vadd.f32 %v2592, %v4073
        %v4453 = vadd.f32 %v2593, %v4427
        %v4454 = vadd.f32 %v2594, %v4429
        %v4455 = vadd.f32 %v2595, %v3721
        %v4456 = vadd.f32 %v2596, %v3723
        %v4457 = vadd.f32 %v2597, %v4077
        %v4458 = vadd.f32 %v2598, %v4079
        %v4459 = vadd.f32 %v2599, %v4433
        %v4460 = vadd.f32 %v2600, %v4435
        %v4461 = vadd.f32 %v2601, %v3727
        %v4462 = vadd.f32 %v2602, %v3729
        %v4463 = vadd.f32 %v2603, %v4083
        %v4464 = vadd.f32 %v2604, %v4085
        %v4465 = vadd.f32 %v2605, %v4439
        %v4466 = vadd.f32 %v2606, %v4441
        %4467 = vst [vmem:[#allocation2] sm:$0xff] %v4443
        %4468 = vst [vmem:[#allocation2 + $0x8] sm:$0xff] %v4444
        %4469 = vst [vmem:[#allocation2 + $0x10] sm:$0xff] %v4445
        %4470 = vst [vmem:[#allocation2 + $0x18] sm:$0xff] %v4446
        %4471 = vst [vmem:[#allocation2 + $0x20] sm:$0xff] %v4447
        %4472 = vst [vmem:[#allocation2 + $0x28] sm:$0xff] %v4448
        %4473 = vst [vmem:[#allocation2 + $0x30] sm:$0xff] %v4449
        %4474 = vst [vmem:[#allocation2 + $0x38] sm:$0xff] %v4450
        %4475 = vst [vmem:[#allocation2 + $0x40] sm:$0xff] %v4451
        %4476 = vst [vmem:[#allocation2 + $0x48] sm:$0xff] %v4452
        %4477 = vst [vmem:[#allocation2 + $0x50] sm:$0xff] %v4453
        %4478 = vst [vmem:[#allocation2 + $0x58] sm:$0xff] %v4454
        %4479 = vst [vmem:[#allocation2 + $0x60] sm:$0xff] %v4455
        %4480 = vst [vmem:[#allocation2 + $0x68] sm:$0xff] %v4456
        %4481 = vst [vmem:[#allocation2 + $0x70] sm:$0xff] %v4457
        %4482 = vst [vmem:[#allocation2 + $0x78] sm:$0xff] %v4458
        %4483 = vst [vmem:[#allocation2 + $0x80] sm:$0xff] %v4459
        %4484 = vst [vmem:[#allocation2 + $0x88] sm:$0xff] %v4460
        %4485 = vst [vmem:[#allocation2 + $0x90] sm:$0xff] %v4461
        %4486 = vst [vmem:[#allocation2 + $0x98] sm:$0xff] %v4462
        %4487 = vst [vmem:[#allocation2 + $0xa0] sm:$0xff] %v4463
        %4488 = vst [vmem:[#allocation2 + $0xa8] sm:$0xff] %v4464
        %4489 = vst [vmem:[#allocation2 + $0xb0] sm:$0xff] %v4465
        %4490 = vst [vmem:[#allocation2 + $0xb8] sm:$0xff] %v4466
        %p4491 = scmp.eq.s32.totalorder %s29, 2
        // Predicated region
        $region65: #{tpu_custom_call.1} parent=39 // pred_check
          %p4492 = pneg %p4491
        $region66: #{tpu_custom_call.1} parent=39 // pred_check_branch
          %4494 = sbr.rel (%p4492) target = $region68
        $region67: #{tpu_custom_call.1} parent=39 // pred_region
          %v4495 = vld [vmem:[#allocation2] sm:$0xff]
          %v4496 = vld [vmem:[#allocation2 + $0x8] sm:$0xff]
          %v4497 = vld [vmem:[#allocation2 + $0x10] sm:$0xff]
          %v4498 = vld [vmem:[#allocation2 + $0x18] sm:$0xff]
          %v4499 = vld [vmem:[#allocation2 + $0x20] sm:$0xff]
          %v4500 = vld [vmem:[#allocation2 + $0x28] sm:$0xff]
          %v4501 = vld [vmem:[#allocation2 + $0x30] sm:$0xff]
          %v4502 = vld [vmem:[#allocation2 + $0x38] sm:$0xff]
          %v4503 = vld [vmem:[#allocation2 + $0x40] sm:$0xff]
          %v4504 = vld [vmem:[#allocation2 + $0x48] sm:$0xff]
          %v4505 = vld [vmem:[#allocation2 + $0x50] sm:$0xff]
          %v4506 = vld [vmem:[#allocation2 + $0x58] sm:$0xff]
          %v4507 = vld [vmem:[#allocation2 + $0x60] sm:$0xff]
          %v4508 = vld [vmem:[#allocation2 + $0x68] sm:$0xff]
          %v4509 = vld [vmem:[#allocation2 + $0x70] sm:$0xff]
          %v4510 = vld [vmem:[#allocation2 + $0x78] sm:$0xff]
          %v4511 = vld [vmem:[#allocation2 + $0x80] sm:$0xff]
          %v4512 = vld [vmem:[#allocation2 + $0x88] sm:$0xff]
          %v4513 = vld [vmem:[#allocation2 + $0x90] sm:$0xff]
          %v4514 = vld [vmem:[#allocation2 + $0x98] sm:$0xff]
          %v4515 = vld [vmem:[#allocation2 + $0xa0] sm:$0xff]
          %v4516 = vld [vmem:[#allocation2 + $0xa8] sm:$0xff]
          %v4517 = vld [vmem:[#allocation2 + $0xb0] sm:$0xff]
          %v4518 = vld [vmem:[#allocation2 + $0xb8] sm:$0xff]
          %v4519 = vld [vmem:[#allocation11] sm:$0x3f]
          %v4521 = vlaneseq
          %v4522 = vshrl.u32 %v4521, 7
          %v4523 = vsub.s32 0, %v4522
          %v4524 = vrot.slane %v4519, %v4523
          %v4525 = vlaneseq
          %v4526 = vshrl.u32 %v4525, 7
          %v4527 = vsub.s32 1, %v4526
          %v4528 = vrot.slane %v4519, %v4527
          %v4529 = vlaneseq
          %v4530 = vshrl.u32 %v4529, 7
          %v4531 = vsub.s32 2, %v4530
          %v4532 = vrot.slane %v4519, %v4531
          %v4533 = vlaneseq
          %v4534 = vshrl.u32 %v4533, 7
          %v4535 = vsub.s32 3, %v4534
          %v4536 = vrot.slane %v4519, %v4535
          %v4537 = vlaneseq
          %v4538 = vshrl.u32 %v4537, 7
          %v4539 = vsub.s32 4, %v4538
          %v4540 = vrot.slane %v4519, %v4539
          %v4541 = vlaneseq
          %v4542 = vshrl.u32 %v4541, 7
          %v4543 = vsub.s32 5, %v4542
          %v4544 = vrot.slane %v4519, %v4543
          %v4551 = vadd.f32 %v4495, %v4524
          %v4552 = vadd.f32 %v4496, %v4528
          %v4553 = vadd.f32 %v4497, %v4532
          %v4554 = vadd.f32 %v4498, %v4536
          %v4555 = vadd.f32 %v4499, %v4540
          %v4556 = vadd.f32 %v4500, %v4544
          %v4557 = vadd.f32 %v4501, %v4524
          %v4558 = vadd.f32 %v4502, %v4528
          %v4559 = vadd.f32 %v4503, %v4532
          %v4560 = vadd.f32 %v4504, %v4536
          %v4561 = vadd.f32 %v4505, %v4540
          %v4562 = vadd.f32 %v4506, %v4544
          %v4563 = vadd.f32 %v4507, %v4524
          %v4564 = vadd.f32 %v4508, %v4528
          %v4565 = vadd.f32 %v4509, %v4532
          %v4566 = vadd.f32 %v4510, %v4536
          %v4567 = vadd.f32 %v4511, %v4540
          %v4568 = vadd.f32 %v4512, %v4544
          %v4569 = vadd.f32 %v4513, %v4524
          %v4570 = vadd.f32 %v4514, %v4528
          %v4571 = vadd.f32 %v4515, %v4532
          %v4572 = vadd.f32 %v4516, %v4536
          %v4573 = vadd.f32 %v4517, %v4540
          %v4574 = vadd.f32 %v4518, %v4544
          %4575 = vst [vmem:[#allocation12] sm:$0xff] %v4551
          %4576 = vst [vmem:[#allocation12 + $0x8] sm:$0xff] %v4552
          %4577 = vst [vmem:[#allocation12 + $0x10] sm:$0xff] %v4553
          %4578 = vst [vmem:[#allocation12 + $0x18] sm:$0xff] %v4554
          %4579 = vst [vmem:[#allocation12 + $0x20] sm:$0xff] %v4555
          %4580 = vst [vmem:[#allocation12 + $0x28] sm:$0xff] %v4556
          %4581 = vst [vmem:[#allocation12 + $0x30] sm:$0xff] %v4557
          %4582 = vst [vmem:[#allocation12 + $0x38] sm:$0xff] %v4558
          %4583 = vst [vmem:[#allocation12 + $0x40] sm:$0xff] %v4559
          %4584 = vst [vmem:[#allocation12 + $0x48] sm:$0xff] %v4560
          %4585 = vst [vmem:[#allocation12 + $0x50] sm:$0xff] %v4561
          %4586 = vst [vmem:[#allocation12 + $0x58] sm:$0xff] %v4562
          %4587 = vst [vmem:[#allocation12 + $0x60] sm:$0xff] %v4563
          %4588 = vst [vmem:[#allocation12 + $0x68] sm:$0xff] %v4564
          %4589 = vst [vmem:[#allocation12 + $0x70] sm:$0xff] %v4565
          %4590 = vst [vmem:[#allocation12 + $0x78] sm:$0xff] %v4566
          %4591 = vst [vmem:[#allocation12 + $0x80] sm:$0xff] %v4567
          %4592 = vst [vmem:[#allocation12 + $0x88] sm:$0xff] %v4568
          %4593 = vst [vmem:[#allocation12 + $0x90] sm:$0xff] %v4569
          %4594 = vst [vmem:[#allocation12 + $0x98] sm:$0xff] %v4570
          %4595 = vst [vmem:[#allocation12 + $0xa0] sm:$0xff] %v4571
          %4596 = vst [vmem:[#allocation12 + $0xa8] sm:$0xff] %v4572
          %4597 = vst [vmem:[#allocation12 + $0xb0] sm:$0xff] %v4573
          %4598 = vst [vmem:[#allocation12 + $0xb8] sm:$0xff] %v4574
        $region68: #{tpu_custom_call.1} parent=39 // pred_fallthru
          _
        // Predicated region
        $region69: #{tpu_custom_call.1} parent=39 // pred_check
          %p4599 = pneg %p179
        $region70: #{tpu_custom_call.1} parent=39 // pred_check_branch
          %4601 = sbr.rel (%p4599) target = $region72
        $region71: #{tpu_custom_call.1} parent=39 // pred_region
          %s4602 = smul.u32 4, %s28
          %s4604 = ssub.s32 3072, 3072
          %4605 = vsyncadd [#allocation5], %s4604
          %s4606 = smul.addr %s4602, 6
          %s4607 = smul.addr %s4606, 128
          %s4608 = scalar_lea.hbm %s5, %s4607
          %s4609 = sshll.u32 [#allocation12], 4
          %s4610 = int_to_ptr.vmem [resolvable:$true] %s4609
          %4615 = dma.vmem_to_hbm [thread:$0]  %s4610, 3072, %s4608, [#allocation5], 768, 768, 48
        $region72: #{tpu_custom_call.1} parent=39 // pred_fallthru
          _
        // Predicated region
        $region73: #{tpu_custom_call.1} parent=39 // pred_check
          %p4616 = pneg %p179
        $region74: #{tpu_custom_call.1} parent=39 // pred_check_branch
          %4618 = sbr.rel (%p4616) target = $region76
        $region75: #{tpu_custom_call.1} parent=39 // pred_region
          %4619 = dma.done [#allocation5], 3072
        $region76: #{tpu_custom_call.1} parent=39 // pred_fallthru
          _
      $region40: #{tpu_custom_call.1} parent=5 // pred_fallthru
        _
      %p4620 = scmp.le.s32.totalorder 2, %s19
      // Predicated region
      $region77: #{tpu_custom_call.1} parent=5 // pred_check
        %p4621 = pneg %p4620
      $region78: #{tpu_custom_call.1} parent=5 // pred_check_branch
        %4623 = sbr.rel (%p4621) target = $region80
      $region79: #{tpu_custom_call.1} parent=5 // pred_region
        %s4624 = ssub.s32 %s19, 2
      $region80: #{tpu_custom_call.1} parent=5 // pred_fallthru
        _
    $region6: #{tpu_custom_call.1} parent=1 // loop_footer
      %s23 = sadd.s32 1, %s19
    $region7: #{tpu_custom_call.1} parent=1 // loop_footer_branch
      %18 = sbr.rel target = $region3
    $region8: #{tpu_custom_call.1} parent=1 // loop_exit
      _
    %4625 = vsyncpa [#allocation4], 1
    %s4626 = scalar_lea.sflag [#allocation4], 1
    %4627 = vsyncpa %s4626, 1
    %4628 = vsyncpa [#allocation7], 1
    %s4629 = scalar_lea.sflag [#allocation7], 1
    %4630 = vsyncpa %s4629, 1
    %4631 = vsyncpa [#allocation10], 1
    %s4632 = scalar_lea.sflag [#allocation10], 1
    %4633 = vsyncpa %s4632, 1
    %4634 = vsyncpa [#allocation5], 1
    %s4635 = scalar_lea.sflag [#allocation5], 1
    %4636 = vsyncpa %s4635, 1

</llo_original>
